<compile_context>
chip_gen: v7x
topology: tpu7x:2x2x1
jax: 0.10.0
libtpu: 0.0.40
codegen_flags: <defaults>
</compile_context>

<pallas_src>
import functools

import jax
import jax.numpy as jnp
import numpy as np
from jax import lax
from jax.experimental import pallas as pl
from jax.experimental.pallas import tpu as pltpu


# Tap order matches the (kh, kw) order of an HWIO 3x3 kernel reshaped to 9 taps:
# tap = (dy + 1) * 3 + (dx + 1).
_TAPS = tuple((dy, dx) for dy in (-1, 0, 1) for dx in (-1, 0, 1))


def projnet_kernel(x_ref, masks_ref, w1_ref, b1_ref, w2_ref, b2_ref, out_ref,
                   *, W, NB):
    # x_ref / out_ref : (1, R, L)   R = C*NB packed rows (channel-major, image-minor)
    # masks_ref       : (9, L)      1.0 = neighbour inside the image, 0.0 = outside
    # w*_ref          : (T, R, 9*C) [t, r, tap*C + s] = w[tap, ci=(c+s)%C, co=c], c=r//NB
    # b*_ref          : (T, R, 1)   bias of channel r // NB
    _, R, L = x_ref.shape
    T = w1_ref.shape[0]
    C = w1_ref.shape[2] // 9

    # Boundary masks hoisted once per kernel invocation (reused by every conv
    # of every residual block).
    mrows = [masks_ref[k:k + 1, :] for k in range(len(_TAPS))]   # each (1, L)

    def conv3x3(X, wt, bcol):
        # X: (R, L) f32, wt: (R, 9*C), bcol: (R, 1)
        acc = jnp.zeros((R, L), jnp.float32)
        for tap, (dy, dx) in enumerate(_TAPS):
            delta = dy * W + dx                    # flat offset of the neighbour
            sh = (-delta) % L                      # static, non-negative
            # shifted[:, q] = X[:, (q + delta) mod L]   (lane rotation, XLU slot)
            shifted = pltpu.roll(X, sh, axis=1) if sh != 0 else X
            # Zero contributions whose neighbour falls outside the image (this
            # also kills every circular-wrap position of the lane roll).
            tapval = shifted if (dy == 0 and dx == 0) else shifted * mrows[tap]
            for s in range(C):
                # rot[r] = tapval[(r + s*NB) mod R]  == the row holding input
                # channel (c + s) mod C of the SAME image (sublane rotation on
                # the XLU; the mod-R wrap realizes the mod-C channel wrap for
                # every packed image simultaneously because rows are
                # channel-major).
                rsh = (-s * NB) % R
                rot = pltpu.roll(tapval, rsh, axis=0) if rsh != 0 else tapval
                col = tap * C + s
                acc = acc + wt[:, col:col + 1] * rot      # (R,1)*(R,L) VPU MAC
        return acc + bcol

    X = x_ref[0].astype(jnp.float32)               # (R, L)

    if T <= 8:
        # Static unroll: weight indices are compile-time constants and the LLO
        # scheduler sees the whole straight-line block (live state is tiny).
        for t in range(T):
            h = jnp.maximum(conv3x3(X, w1_ref[t], b1_ref[t]), 0.0)
            X = X + conv3x3(h, w2_ref[t], b2_ref[t])
    else:
        def body(t, Xc):
            h = jnp.maximum(conv3x3(Xc, w1_ref[t], b1_ref[t]), 0.0)
            return Xc + conv3x3(h, w2_ref[t], b2_ref[t])
        X = lax.fori_loop(0, T, body, X)

    out_ref[0] = X.astype(out_ref.dtype)


def _pick_nb(N, C):
    """Images packed per grid step so C*NB fills the 8 sublanes of a vreg."""
    target = max(1, 8 // C)
    nb = 1
    for d in range(1, target + 1):
        if N % d == 0:
            nb = d
    return nb


def projnet_m(x, w1_hwio, b1, w2_hwio, b2):
    """x: (N, C, H, W) f32 (NCHW, like PyTorch); w*: (T, 3, 3, C_in, C_out); b*: (T, C)."""
    N, C, H, W = x.shape
    T = w1_hwio.shape[0]
    L = H * W
    NB = _pick_nb(N, C)
    G = N // NB
    R = C * NB

    # Packed lane-dense activations: (G, R, L); packed row r = c*NB + nb.
    xp = x.reshape(G, NB, C, L).transpose(0, 2, 1, 3).reshape(G, R, L)

    # Diagonal weight layout: wd[t, r, tap*C + s] = w[t, tap, ci=(c+s)%C, co=c].
    c_of_r = jnp.arange(R, dtype=jnp.int32) // NB                       # (R,)
    s_idx = jnp.arange(C, dtype=jnp.int32)                              # (C,)
    ci_idx = (c_of_r[:, None] + s_idx[None, :]) % C                     # (R, C)
    co_idx = jnp.broadcast_to(c_of_r[:, None], (R, C))                  # (R, C)

    def diag_weights(w_hwio):
        w9 = w_hwio.reshape(T, 9, C, C)                  # [t, tap, ci, co]
        wd = w9[:, :, ci_idx, co_idx]                    # (T, 9, R, C)
        return jnp.transpose(wd, (0, 2, 1, 3)).reshape(T, R, 9 * C)

    w1k = diag_weights(w1_hwio)
    w2k = diag_weights(w2_hwio)
    b1k = b1[:, c_of_r].reshape(T, R, 1)
    b2k = b2[:, c_of_r].reshape(T, R, 1)

    # Precompute the 9 boundary masks (one per tap) over the flattened image.
    idx = jnp.arange(L, dtype=jnp.int32)
    rr = idx // W
    cc = idx % W
    mask_rows = []
    for dy, dx in _TAPS:
        valid = jnp.ones((L,), dtype=bool)
        if dy < 0:
            valid = valid & (rr >= -dy)
        elif dy > 0:
            valid = valid & (rr < H - dy)
        if dx < 0:
            valid = valid & (cc >= -dx)
        elif dx > 0:
            valid = valid & (cc < W - dx)
        mask_rows.append(valid.astype(jnp.float32))
    masks = jnp.stack(mask_rows, axis=0)                                # (9, L)

    kernel = functools.partial(projnet_kernel, W=W, NB=NB)

    outp = pl.pallas_call(
        kernel,
        out_shape=jax.ShapeDtypeStruct((G, R, L), x.dtype),
        grid_spec=pltpu.PrefetchScalarGridSpec(
            num_scalar_prefetch=0,
            grid=(G,),                                # batch groups; megacore-parallel
            in_specs=[
                pl.BlockSpec((1, R, L), lambda g: (g, 0, 0)),        # activations
                pl.BlockSpec((9, L), lambda g: (0, 0)),              # boundary masks
                pl.BlockSpec((T, R, 9 * C), lambda g: (0, 0, 0)),    # w1 (resident)
                pl.BlockSpec((T, R, 1), lambda g: (0, 0, 0)),        # b1
                pl.BlockSpec((T, R, 9 * C), lambda g: (0, 0, 0)),    # w2
                pl.BlockSpec((T, R, 1), lambda g: (0, 0, 0)),        # b2
            ],
            out_specs=pl.BlockSpec((1, R, L), lambda g: (g, 0, 0)),
        ),
        compiler_params=pltpu.CompilerParams(
            dimension_semantics=("parallel",)),
    )(xp, masks, w1k, b1k, w2k, b2k)

    # Unpack back to NCHW.
    return outp.reshape(G, C, NB, L).transpose(0, 2, 1, 3).reshape(N, C, H, W)


def projnet_ref(x, w1_hwio, b1, w2_hwio, b2):
    """Pure-JAX reference matching the PyTorch forward (NCHW activations)."""
    T = w1_hwio.shape[0]
    dn = ('NCHW', 'HWIO', 'NCHW')
    X = x
    for i in range(T):
        h = lax.conv_general_dilated(X, w1_hwio[i], (1, 1), 'SAME', dimension_numbers=dn)
        h = jnp.maximum(h + b1[i].reshape(1, -1, 1, 1), 0.0)
        y = lax.conv_general_dilated(h, w2_hwio[i], (1, 1), 'SAME', dimension_numbers=dn)
        y = y + b2[i].reshape(1, -1, 1, 1)
        X = X + y
    return X


if __name__ == "__main__":
    N, C, H, W, T = 2, 4, 16, 16, 2   # channel=4, T=2 residual blocks

    key = jax.random.PRNGKey(0)
    kx, kw1, kb1, kw2, kb2 = jax.random.split(key, 5)

    # Init mimicking PyTorch Conv2d defaults: U(-1/sqrt(fan_in), 1/sqrt(fan_in)).
    fan_in = C * 3 * 3
    bound = 1.0 / np.sqrt(fan_in)
    x = jax.random.normal(kx, (N, C, H, W), jnp.float32)
    w1 = jax.random.uniform(kw1, (T, 3, 3, C, C), jnp.float32, -bound, bound)
    b1 = jax.random.uniform(kb1, (T, C), jnp.float32, -bound, bound)
    w2 = jax.random.uniform(kw2, (T, 3, 3, C, C), jnp.float32, -bound, bound)
    b2 = jax.random.uniform(kb2, (T, C), jnp.float32, -bound, bound)

    out = jax.block_until_ready(projnet_m(x, w1, b1, w2, b2))
    ref = jax.block_until_ready(projnet_ref(x, w1, b1, w2, b2))

    assert out.shape == (N, C, H, W)
    np.testing.assert_allclose(np.asarray(out), np.asarray(ref), rtol=1e-4, atol=1e-4)
    print("KERNEL_OK")
</pallas_src>

<mosaic_0001>
module attributes {stable_mosaic.version = 11 : i64} {
  func.func @projnet_kernel(%arg0: i32, %arg1: memref<1x8x256xf32, #tpu.memory_space<vmem>>, %arg2: memref<9x256xf32, #tpu.memory_space<vmem>>, %arg3: memref<2x8x36xf32, #tpu.memory_space<vmem>>, %arg4: memref<2x8x1xf32, #tpu.memory_space<vmem>>, %arg5: memref<2x8x36xf32, #tpu.memory_space<vmem>>, %arg6: memref<2x8x1xf32, #tpu.memory_space<vmem>>, %arg7: memref<1x8x256xf32, #tpu.memory_space<vmem>>) attributes {dimension_semantics = [#tpu.dimension_semantics<parallel>], iteration_bounds = array<i64: 1>, scalar_prefetch = 0 : i64, scratch_operands = 0 : i64, tpu.core_type = #tpu.core_type<tc>, window_params = [{transform_indices = @transform_0, window_bounds = array<i64: 1, 8, 256>}, {pipeline_mode = #tpu.pipeline_mode<synchronous>, transform_indices = @transform_1, window_bounds = array<i64: 9, 256>}, {pipeline_mode = #tpu.pipeline_mode<synchronous>, transform_indices = @transform_2, window_bounds = array<i64: 2, 8, 36>}, {pipeline_mode = #tpu.pipeline_mode<synchronous>, transform_indices = @transform_3, window_bounds = array<i64: 2, 8, 1>}, {pipeline_mode = #tpu.pipeline_mode<synchronous>, transform_indices = @transform_4, window_bounds = array<i64: 2, 8, 36>}, {pipeline_mode = #tpu.pipeline_mode<synchronous>, transform_indices = @transform_5, window_bounds = array<i64: 2, 8, 1>}, {transform_indices = @transform_6, window_bounds = array<i64: 1, 8, 256>}]} {
    %c0 = arith.constant 0 : index
    %c0_0 = arith.constant 0 : index
    %0 = vector.load %arg2[%c0, %c0_0] : memref<9x256xf32, #tpu.memory_space<vmem>>, vector<1x256xf32>
    %c1 = arith.constant 1 : index
    %c0_1 = arith.constant 0 : index
    %1 = vector.load %arg2[%c1, %c0_1] : memref<9x256xf32, #tpu.memory_space<vmem>>, vector<1x256xf32>
    %c2 = arith.constant 2 : index
    %c0_2 = arith.constant 0 : index
    %2 = vector.load %arg2[%c2, %c0_2] : memref<9x256xf32, #tpu.memory_space<vmem>>, vector<1x256xf32>
    %c3 = arith.constant 3 : index
    %c0_3 = arith.constant 0 : index
    %3 = vector.load %arg2[%c3, %c0_3] : memref<9x256xf32, #tpu.memory_space<vmem>>, vector<1x256xf32>
    %c5 = arith.constant 5 : index
    %c0_4 = arith.constant 0 : index
    %4 = vector.load %arg2[%c5, %c0_4] : memref<9x256xf32, #tpu.memory_space<vmem>>, vector<1x256xf32>
    %c6 = arith.constant 6 : index
    %c0_5 = arith.constant 0 : index
    %5 = vector.load %arg2[%c6, %c0_5] : memref<9x256xf32, #tpu.memory_space<vmem>>, vector<1x256xf32>
    %c7 = arith.constant 7 : index
    %c0_6 = arith.constant 0 : index
    %6 = vector.load %arg2[%c7, %c0_6] : memref<9x256xf32, #tpu.memory_space<vmem>>, vector<1x256xf32>
    %c8 = arith.constant 8 : index
    %c0_7 = arith.constant 0 : index
    %7 = vector.load %arg2[%c8, %c0_7] : memref<9x256xf32, #tpu.memory_space<vmem>>, vector<1x256xf32>
    %c0_8 = arith.constant 0 : index
    %c0_9 = arith.constant 0 : index
    %c0_10 = arith.constant 0 : index
    %8 = vector.load %arg1[%c0_8, %c0_9, %c0_10] : memref<1x8x256xf32, #tpu.memory_space<vmem>>, vector<1x8x256xf32>
    %9 = vector.shape_cast %8 : vector<1x8x256xf32> to vector<8x256xf32>
    %c0_11 = arith.constant 0 : index
    %c0_12 = arith.constant 0 : index
    %c0_13 = arith.constant 0 : index
    %10 = vector.load %arg3[%c0_11, %c0_12, %c0_13] : memref<2x8x36xf32, #tpu.memory_space<vmem>>, vector<1x8x36xf32>
    %11 = vector.shape_cast %10 : vector<1x8x36xf32> to vector<8x36xf32>
    %c0_14 = arith.constant 0 : index
    %c0_15 = arith.constant 0 : index
    %c0_16 = arith.constant 0 : index
    %12 = vector.load %arg4[%c0_14, %c0_15, %c0_16] : memref<2x8x1xf32, #tpu.memory_space<vmem>>, vector<1x8x1xf32>
    %13 = vector.shape_cast %12 : vector<1x8x1xf32> to vector<8x1xf32>
    %cst = arith.constant 0.000000e+00 : f32
    %14 = vector.broadcast %cst : f32 to vector<8x256xf32>
    %c17_i32 = arith.constant 17 : i32
    %15 = tpu.dynamic_rotate %9 by %c17_i32 dim 1 : vector<8x256xf32>, i32 -> vector<8x256xf32>
    %16 = vector.broadcast %0 : vector<1x256xf32> to vector<8x256xf32>
    %17 = arith.mulf %15, %16 : vector<8x256xf32>
    %18 = vector.extract_strided_slice %11 {offsets = [0, 0], sizes = [8, 1], strides = [1, 1]} : vector<8x36xf32> to vector<8x1xf32>
    %19 = vector.broadcast %18 : vector<8x1xf32> to vector<8x256xf32>
    %20 = arith.mulf %19, %17 : vector<8x256xf32>
    %21 = arith.addf %14, %20 : vector<8x256xf32>
    %c6_i32 = arith.constant 6 : i32
    %22 = tpu.dynamic_rotate %17 by %c6_i32 dim 0 : vector<8x256xf32>, i32 -> vector<8x256xf32>
    %23 = vector.extract_strided_slice %11 {offsets = [0, 1], sizes = [8, 1], strides = [1, 1]} : vector<8x36xf32> to vector<8x1xf32>
    %24 = vector.broadcast %23 : vector<8x1xf32> to vector<8x256xf32>
    %25 = arith.mulf %24, %22 : vector<8x256xf32>
    %26 = arith.addf %21, %25 : vector<8x256xf32>
    %c4_i32 = arith.constant 4 : i32
    %27 = tpu.dynamic_rotate %17 by %c4_i32 dim 0 : vector<8x256xf32>, i32 -> vector<8x256xf32>
    %28 = vector.extract_strided_slice %11 {offsets = [0, 2], sizes = [8, 1], strides = [1, 1]} : vector<8x36xf32> to vector<8x1xf32>
    %29 = vector.broadcast %28 : vector<8x1xf32> to vector<8x256xf32>
    %30 = arith.mulf %29, %27 : vector<8x256xf32>
    %31 = arith.addf %26, %30 : vector<8x256xf32>
    %c2_i32 = arith.constant 2 : i32
    %32 = tpu.dynamic_rotate %17 by %c2_i32 dim 0 : vector<8x256xf32>, i32 -> vector<8x256xf32>
    %33 = vector.extract_strided_slice %11 {offsets = [0, 3], sizes = [8, 1], strides = [1, 1]} : vector<8x36xf32> to vector<8x1xf32>
    %34 = vector.broadcast %33 : vector<8x1xf32> to vector<8x256xf32>
    %35 = arith.mulf %34, %32 : vector<8x256xf32>
    %36 = arith.addf %31, %35 : vector<8x256xf32>
    %c16_i32 = arith.constant 16 : i32
    %37 = tpu.dynamic_rotate %9 by %c16_i32 dim 1 : vector<8x256xf32>, i32 -> vector<8x256xf32>
    %38 = vector.broadcast %1 : vector<1x256xf32> to vector<8x256xf32>
    %39 = arith.mulf %37, %38 : vector<8x256xf32>
    %40 = vector.extract_strided_slice %11 {offsets = [0, 4], sizes = [8, 1], strides = [1, 1]} : vector<8x36xf32> to vector<8x1xf32>
    %41 = vector.broadcast %40 : vector<8x1xf32> to vector<8x256xf32>
    %42 = arith.mulf %41, %39 : vector<8x256xf32>
    %43 = arith.addf %36, %42 : vector<8x256xf32>
    %c6_i32_17 = arith.constant 6 : i32
    %44 = tpu.dynamic_rotate %39 by %c6_i32_17 dim 0 : vector<8x256xf32>, i32 -> vector<8x256xf32>
    %45 = vector.extract_strided_slice %11 {offsets = [0, 5], sizes = [8, 1], strides = [1, 1]} : vector<8x36xf32> to vector<8x1xf32>
    %46 = vector.broadcast %45 : vector<8x1xf32> to vector<8x256xf32>
    %47 = arith.mulf %46, %44 : vector<8x256xf32>
    %48 = arith.addf %43, %47 : vector<8x256xf32>
    %c4_i32_18 = arith.constant 4 : i32
    %49 = tpu.dynamic_rotate %39 by %c4_i32_18 dim 0 : vector<8x256xf32>, i32 -> vector<8x256xf32>
    %50 = vector.extract_strided_slice %11 {offsets = [0, 6], sizes = [8, 1], strides = [1, 1]} : vector<8x36xf32> to vector<8x1xf32>
    %51 = vector.broadcast %50 : vector<8x1xf32> to vector<8x256xf32>
    %52 = arith.mulf %51, %49 : vector<8x256xf32>
    %53 = arith.addf %48, %52 : vector<8x256xf32>
    %c2_i32_19 = arith.constant 2 : i32
    %54 = tpu.dynamic_rotate %39 by %c2_i32_19 dim 0 : vector<8x256xf32>, i32 -> vector<8x256xf32>
    %55 = vector.extract_strided_slice %11 {offsets = [0, 7], sizes = [8, 1], strides = [1, 1]} : vector<8x36xf32> to vector<8x1xf32>
    %56 = vector.broadcast %55 : vector<8x1xf32> to vector<8x256xf32>
    %57 = arith.mulf %56, %54 : vector<8x256xf32>
    %58 = arith.addf %53, %57 : vector<8x256xf32>
    %c15_i32 = arith.constant 15 : i32
    %59 = tpu.dynamic_rotate %9 by %c15_i32 dim 1 : vector<8x256xf32>, i32 -> vector<8x256xf32>
    %60 = vector.broadcast %2 : vector<1x256xf32> to vector<8x256xf32>
    %61 = arith.mulf %59, %60 : vector<8x256xf32>
    %62 = vector.extract_strided_slice %11 {offsets = [0, 8], sizes = [8, 1], strides = [1, 1]} : vector<8x36xf32> to vector<8x1xf32>
    %63 = vector.broadcast %62 : vector<8x1xf32> to vector<8x256xf32>
    %64 = arith.mulf %63, %61 : vector<8x256xf32>
    %65 = arith.addf %58, %64 : vector<8x256xf32>
    %c6_i32_20 = arith.constant 6 : i32
    %66 = tpu.dynamic_rotate %61 by %c6_i32_20 dim 0 : vector<8x256xf32>, i32 -> vector<8x256xf32>
    %67 = vector.extract_strided_slice %11 {offsets = [0, 9], sizes = [8, 1], strides = [1, 1]} : vector<8x36xf32> to vector<8x1xf32>
    %68 = vector.broadcast %67 : vector<8x1xf32> to vector<8x256xf32>
    %69 = arith.mulf %68, %66 : vector<8x256xf32>
    %70 = arith.addf %65, %69 : vector<8x256xf32>
    %c4_i32_21 = arith.constant 4 : i32
    %71 = tpu.dynamic_rotate %61 by %c4_i32_21 dim 0 : vector<8x256xf32>, i32 -> vector<8x256xf32>
    %72 = vector.extract_strided_slice %11 {offsets = [0, 10], sizes = [8, 1], strides = [1, 1]} : vector<8x36xf32> to vector<8x1xf32>
    %73 = vector.broadcast %72 : vector<8x1xf32> to vector<8x256xf32>
    %74 = arith.mulf %73, %71 : vector<8x256xf32>
    %75 = arith.addf %70, %74 : vector<8x256xf32>
    %c2_i32_22 = arith.constant 2 : i32
    %76 = tpu.dynamic_rotate %61 by %c2_i32_22 dim 0 : vector<8x256xf32>, i32 -> vector<8x256xf32>
    %77 = vector.extract_strided_slice %11 {offsets = [0, 11], sizes = [8, 1], strides = [1, 1]} : vector<8x36xf32> to vector<8x1xf32>
    %78 = vector.broadcast %77 : vector<8x1xf32> to vector<8x256xf32>
    %79 = arith.mulf %78, %76 : vector<8x256xf32>
    %80 = arith.addf %75, %79 : vector<8x256xf32>
    %c1_i32 = arith.constant 1 : i32
    %81 = tpu.dynamic_rotate %9 by %c1_i32 dim 1 : vector<8x256xf32>, i32 -> vector<8x256xf32>
    %82 = vector.broadcast %3 : vector<1x256xf32> to vector<8x256xf32>
    %83 = arith.mulf %81, %82 : vector<8x256xf32>
    %84 = vector.extract_strided_slice %11 {offsets = [0, 12], sizes = [8, 1], strides = [1, 1]} : vector<8x36xf32> to vector<8x1xf32>
    %85 = vector.broadcast %84 : vector<8x1xf32> to vector<8x256xf32>
    %86 = arith.mulf %85, %83 : vector<8x256xf32>
    %87 = arith.addf %80, %86 : vector<8x256xf32>
    %c6_i32_23 = arith.constant 6 : i32
    %88 = tpu.dynamic_rotate %83 by %c6_i32_23 dim 0 : vector<8x256xf32>, i32 -> vector<8x256xf32>
    %89 = vector.extract_strided_slice %11 {offsets = [0, 13], sizes = [8, 1], strides = [1, 1]} : vector<8x36xf32> to vector<8x1xf32>
    %90 = vector.broadcast %89 : vector<8x1xf32> to vector<8x256xf32>
    %91 = arith.mulf %90, %88 : vector<8x256xf32>
    %92 = arith.addf %87, %91 : vector<8x256xf32>
    %c4_i32_24 = arith.constant 4 : i32
    %93 = tpu.dynamic_rotate %83 by %c4_i32_24 dim 0 : vector<8x256xf32>, i32 -> vector<8x256xf32>
    %94 = vector.extract_strided_slice %11 {offsets = [0, 14], sizes = [8, 1], strides = [1, 1]} : vector<8x36xf32> to vector<8x1xf32>
    %95 = vector.broadcast %94 : vector<8x1xf32> to vector<8x256xf32>
    %96 = arith.mulf %95, %93 : vector<8x256xf32>
    %97 = arith.addf %92, %96 : vector<8x256xf32>
    %c2_i32_25 = arith.constant 2 : i32
    %98 = tpu.dynamic_rotate %83 by %c2_i32_25 dim 0 : vector<8x256xf32>, i32 -> vector<8x256xf32>
    %99 = vector.extract_strided_slice %11 {offsets = [0, 15], sizes = [8, 1], strides = [1, 1]} : vector<8x36xf32> to vector<8x1xf32>
    %100 = vector.broadcast %99 : vector<8x1xf32> to vector<8x256xf32>
    %101 = arith.mulf %100, %98 : vector<8x256xf32>
    %102 = arith.addf %97, %101 : vector<8x256xf32>
    %103 = vector.extract_strided_slice %11 {offsets = [0, 16], sizes = [8, 1], strides = [1, 1]} : vector<8x36xf32> to vector<8x1xf32>
    %104 = vector.broadcast %103 : vector<8x1xf32> to vector<8x256xf32>
    %105 = arith.mulf %104, %9 : vector<8x256xf32>
    %106 = arith.addf %102, %105 : vector<8x256xf32>
    %c6_i32_26 = arith.constant 6 : i32
    %107 = tpu.dynamic_rotate %9 by %c6_i32_26 dim 0 : vector<8x256xf32>, i32 -> vector<8x256xf32>
    %108 = vector.extract_strided_slice %11 {offsets = [0, 17], sizes = [8, 1], strides = [1, 1]} : vector<8x36xf32> to vector<8x1xf32>
    %109 = vector.broadcast %108 : vector<8x1xf32> to vector<8x256xf32>
    %110 = arith.mulf %109, %107 : vector<8x256xf32>
    %111 = arith.addf %106, %110 : vector<8x256xf32>
    %c4_i32_27 = arith.constant 4 : i32
    %112 = tpu.dynamic_rotate %9 by %c4_i32_27 dim 0 : vector<8x256xf32>, i32 -> vector<8x256xf32>
    %113 = vector.extract_strided_slice %11 {offsets = [0, 18], sizes = [8, 1], strides = [1, 1]} : vector<8x36xf32> to vector<8x1xf32>
    %114 = vector.broadcast %113 : vector<8x1xf32> to vector<8x256xf32>
    %115 = arith.mulf %114, %112 : vector<8x256xf32>
    %116 = arith.addf %111, %115 : vector<8x256xf32>
    %c2_i32_28 = arith.constant 2 : i32
    %117 = tpu.dynamic_rotate %9 by %c2_i32_28 dim 0 : vector<8x256xf32>, i32 -> vector<8x256xf32>
    %118 = vector.extract_strided_slice %11 {offsets = [0, 19], sizes = [8, 1], strides = [1, 1]} : vector<8x36xf32> to vector<8x1xf32>
    %119 = vector.broadcast %118 : vector<8x1xf32> to vector<8x256xf32>
    %120 = arith.mulf %119, %117 : vector<8x256xf32>
    %121 = arith.addf %116, %120 : vector<8x256xf32>
    %c255_i32 = arith.constant 255 : i32
    %122 = tpu.dynamic_rotate %9 by %c255_i32 dim 1 : vector<8x256xf32>, i32 -> vector<8x256xf32>
    %123 = vector.broadcast %4 : vector<1x256xf32> to vector<8x256xf32>
    %124 = arith.mulf %122, %123 : vector<8x256xf32>
    %125 = vector.extract_strided_slice %11 {offsets = [0, 20], sizes = [8, 1], strides = [1, 1]} : vector<8x36xf32> to vector<8x1xf32>
    %126 = vector.broadcast %125 : vector<8x1xf32> to vector<8x256xf32>
    %127 = arith.mulf %126, %124 : vector<8x256xf32>
    %128 = arith.addf %121, %127 : vector<8x256xf32>
    %c6_i32_29 = arith.constant 6 : i32
    %129 = tpu.dynamic_rotate %124 by %c6_i32_29 dim 0 : vector<8x256xf32>, i32 -> vector<8x256xf32>
    %130 = vector.extract_strided_slice %11 {offsets = [0, 21], sizes = [8, 1], strides = [1, 1]} : vector<8x36xf32> to vector<8x1xf32>
    %131 = vector.broadcast %130 : vector<8x1xf32> to vector<8x256xf32>
    %132 = arith.mulf %131, %129 : vector<8x256xf32>
    %133 = arith.addf %128, %132 : vector<8x256xf32>
    %c4_i32_30 = arith.constant 4 : i32
    %134 = tpu.dynamic_rotate %124 by %c4_i32_30 dim 0 : vector<8x256xf32>, i32 -> vector<8x256xf32>
    %135 = vector.extract_strided_slice %11 {offsets = [0, 22], sizes = [8, 1], strides = [1, 1]} : vector<8x36xf32> to vector<8x1xf32>
    %136 = vector.broadcast %135 : vector<8x1xf32> to vector<8x256xf32>
    %137 = arith.mulf %136, %134 : vector<8x256xf32>
    %138 = arith.addf %133, %137 : vector<8x256xf32>
    %c2_i32_31 = arith.constant 2 : i32
    %139 = tpu.dynamic_rotate %124 by %c2_i32_31 dim 0 : vector<8x256xf32>, i32 -> vector<8x256xf32>
    %140 = vector.extract_strided_slice %11 {offsets = [0, 23], sizes = [8, 1], strides = [1, 1]} : vector<8x36xf32> to vector<8x1xf32>
    %141 = vector.broadcast %140 : vector<8x1xf32> to vector<8x256xf32>
    %142 = arith.mulf %141, %139 : vector<8x256xf32>
    %143 = arith.addf %138, %142 : vector<8x256xf32>
    %c241_i32 = arith.constant 241 : i32
    %144 = tpu.dynamic_rotate %9 by %c241_i32 dim 1 : vector<8x256xf32>, i32 -> vector<8x256xf32>
    %145 = vector.broadcast %5 : vector<1x256xf32> to vector<8x256xf32>
    %146 = arith.mulf %144, %145 : vector<8x256xf32>
    %147 = vector.extract_strided_slice %11 {offsets = [0, 24], sizes = [8, 1], strides = [1, 1]} : vector<8x36xf32> to vector<8x1xf32>
    %148 = vector.broadcast %147 : vector<8x1xf32> to vector<8x256xf32>
    %149 = arith.mulf %148, %146 : vector<8x256xf32>
    %150 = arith.addf %143, %149 : vector<8x256xf32>
    %c6_i32_32 = arith.constant 6 : i32
    %151 = tpu.dynamic_rotate %146 by %c6_i32_32 dim 0 : vector<8x256xf32>, i32 -> vector<8x256xf32>
    %152 = vector.extract_strided_slice %11 {offsets = [0, 25], sizes = [8, 1], strides = [1, 1]} : vector<8x36xf32> to vector<8x1xf32>
    %153 = vector.broadcast %152 : vector<8x1xf32> to vector<8x256xf32>
    %154 = arith.mulf %153, %151 : vector<8x256xf32>
    %155 = arith.addf %150, %154 : vector<8x256xf32>
    %c4_i32_33 = arith.constant 4 : i32
    %156 = tpu.dynamic_rotate %146 by %c4_i32_33 dim 0 : vector<8x256xf32>, i32 -> vector<8x256xf32>
    %157 = vector.extract_strided_slice %11 {offsets = [0, 26], sizes = [8, 1], strides = [1, 1]} : vector<8x36xf32> to vector<8x1xf32>
    %158 = vector.broadcast %157 : vector<8x1xf32> to vector<8x256xf32>
    %159 = arith.mulf %158, %156 : vector<8x256xf32>
    %160 = arith.addf %155, %159 : vector<8x256xf32>
    %c2_i32_34 = arith.constant 2 : i32
    %161 = tpu.dynamic_rotate %146 by %c2_i32_34 dim 0 : vector<8x256xf32>, i32 -> vector<8x256xf32>
    %162 = vector.extract_strided_slice %11 {offsets = [0, 27], sizes = [8, 1], strides = [1, 1]} : vector<8x36xf32> to vector<8x1xf32>
    %163 = vector.broadcast %162 : vector<8x1xf32> to vector<8x256xf32>
    %164 = arith.mulf %163, %161 : vector<8x256xf32>
    %165 = arith.addf %160, %164 : vector<8x256xf32>
    %c240_i32 = arith.constant 240 : i32
    %166 = tpu.dynamic_rotate %9 by %c240_i32 dim 1 : vector<8x256xf32>, i32 -> vector<8x256xf32>
    %167 = vector.broadcast %6 : vector<1x256xf32> to vector<8x256xf32>
    %168 = arith.mulf %166, %167 : vector<8x256xf32>
    %169 = vector.extract_strided_slice %11 {offsets = [0, 28], sizes = [8, 1], strides = [1, 1]} : vector<8x36xf32> to vector<8x1xf32>
    %170 = vector.broadcast %169 : vector<8x1xf32> to vector<8x256xf32>
    %171 = arith.mulf %170, %168 : vector<8x256xf32>
    %172 = arith.addf %165, %171 : vector<8x256xf32>
    %c6_i32_35 = arith.constant 6 : i32
    %173 = tpu.dynamic_rotate %168 by %c6_i32_35 dim 0 : vector<8x256xf32>, i32 -> vector<8x256xf32>
    %174 = vector.extract_strided_slice %11 {offsets = [0, 29], sizes = [8, 1], strides = [1, 1]} : vector<8x36xf32> to vector<8x1xf32>
    %175 = vector.broadcast %174 : vector<8x1xf32> to vector<8x256xf32>
    %176 = arith.mulf %175, %173 : vector<8x256xf32>
    %177 = arith.addf %172, %176 : vector<8x256xf32>
    %c4_i32_36 = arith.constant 4 : i32
    %178 = tpu.dynamic_rotate %168 by %c4_i32_36 dim 0 : vector<8x256xf32>, i32 -> vector<8x256xf32>
    %179 = vector.extract_strided_slice %11 {offsets = [0, 30], sizes = [8, 1], strides = [1, 1]} : vector<8x36xf32> to vector<8x1xf32>
    %180 = vector.broadcast %179 : vector<8x1xf32> to vector<8x256xf32>
    %181 = arith.mulf %180, %178 : vector<8x256xf32>
    %182 = arith.addf %177, %181 : vector<8x256xf32>
    %c2_i32_37 = arith.constant 2 : i32
    %183 = tpu.dynamic_rotate %168 by %c2_i32_37 dim 0 : vector<8x256xf32>, i32 -> vector<8x256xf32>
    %184 = vector.extract_strided_slice %11 {offsets = [0, 31], sizes = [8, 1], strides = [1, 1]} : vector<8x36xf32> to vector<8x1xf32>
    %185 = vector.broadcast %184 : vector<8x1xf32> to vector<8x256xf32>
    %186 = arith.mulf %185, %183 : vector<8x256xf32>
    %187 = arith.addf %182, %186 : vector<8x256xf32>
    %c239_i32 = arith.constant 239 : i32
    %188 = tpu.dynamic_rotate %9 by %c239_i32 dim 1 : vector<8x256xf32>, i32 -> vector<8x256xf32>
    %189 = vector.broadcast %7 : vector<1x256xf32> to vector<8x256xf32>
    %190 = arith.mulf %188, %189 : vector<8x256xf32>
    %191 = vector.extract_strided_slice %11 {offsets = [0, 32], sizes = [8, 1], strides = [1, 1]} : vector<8x36xf32> to vector<8x1xf32>
    %192 = vector.broadcast %191 : vector<8x1xf32> to vector<8x256xf32>
    %193 = arith.mulf %192, %190 : vector<8x256xf32>
    %194 = arith.addf %187, %193 : vector<8x256xf32>
    %c6_i32_38 = arith.constant 6 : i32
    %195 = tpu.dynamic_rotate %190 by %c6_i32_38 dim 0 : vector<8x256xf32>, i32 -> vector<8x256xf32>
    %196 = vector.extract_strided_slice %11 {offsets = [0, 33], sizes = [8, 1], strides = [1, 1]} : vector<8x36xf32> to vector<8x1xf32>
    %197 = vector.broadcast %196 : vector<8x1xf32> to vector<8x256xf32>
    %198 = arith.mulf %197, %195 : vector<8x256xf32>
    %199 = arith.addf %194, %198 : vector<8x256xf32>
    %c4_i32_39 = arith.constant 4 : i32
    %200 = tpu.dynamic_rotate %190 by %c4_i32_39 dim 0 : vector<8x256xf32>, i32 -> vector<8x256xf32>
    %201 = vector.extract_strided_slice %11 {offsets = [0, 34], sizes = [8, 1], strides = [1, 1]} : vector<8x36xf32> to vector<8x1xf32>
    %202 = vector.broadcast %201 : vector<8x1xf32> to vector<8x256xf32>
    %203 = arith.mulf %202, %200 : vector<8x256xf32>
    %204 = arith.addf %199, %203 : vector<8x256xf32>
    %c2_i32_40 = arith.constant 2 : i32
    %205 = tpu.dynamic_rotate %190 by %c2_i32_40 dim 0 : vector<8x256xf32>, i32 -> vector<8x256xf32>
    %206 = vector.extract_strided_slice %11 {offsets = [0, 35], sizes = [8, 1], strides = [1, 1]} : vector<8x36xf32> to vector<8x1xf32>
    %207 = vector.broadcast %206 : vector<8x1xf32> to vector<8x256xf32>
    %208 = arith.mulf %207, %205 : vector<8x256xf32>
    %209 = arith.addf %204, %208 : vector<8x256xf32>
    %210 = vector.broadcast %13 : vector<8x1xf32> to vector<8x256xf32>
    %211 = arith.addf %209, %210 : vector<8x256xf32>
    %cst_41 = arith.constant 0.000000e+00 : f32
    %212 = vector.broadcast %cst_41 : f32 to vector<8x256xf32>
    %213 = arith.maximumf %211, %212 : vector<8x256xf32>
    %c0_42 = arith.constant 0 : index
    %c0_43 = arith.constant 0 : index
    %c0_44 = arith.constant 0 : index
    %214 = vector.load %arg5[%c0_42, %c0_43, %c0_44] : memref<2x8x36xf32, #tpu.memory_space<vmem>>, vector<1x8x36xf32>
    %215 = vector.shape_cast %214 : vector<1x8x36xf32> to vector<8x36xf32>
    %c0_45 = arith.constant 0 : index
    %c0_46 = arith.constant 0 : index
    %c0_47 = arith.constant 0 : index
    %216 = vector.load %arg6[%c0_45, %c0_46, %c0_47] : memref<2x8x1xf32, #tpu.memory_space<vmem>>, vector<1x8x1xf32>
    %217 = vector.shape_cast %216 : vector<1x8x1xf32> to vector<8x1xf32>
    %cst_48 = arith.constant 0.000000e+00 : f32
    %218 = vector.broadcast %cst_48 : f32 to vector<8x256xf32>
    %c17_i32_49 = arith.constant 17 : i32
    %219 = tpu.dynamic_rotate %213 by %c17_i32_49 dim 1 : vector<8x256xf32>, i32 -> vector<8x256xf32>
    %220 = vector.broadcast %0 : vector<1x256xf32> to vector<8x256xf32>
    %221 = arith.mulf %219, %220 : vector<8x256xf32>
    %222 = vector.extract_strided_slice %215 {offsets = [0, 0], sizes = [8, 1], strides = [1, 1]} : vector<8x36xf32> to vector<8x1xf32>
    %223 = vector.broadcast %222 : vector<8x1xf32> to vector<8x256xf32>
    %224 = arith.mulf %223, %221 : vector<8x256xf32>
    %225 = arith.addf %218, %224 : vector<8x256xf32>
    %c6_i32_50 = arith.constant 6 : i32
    %226 = tpu.dynamic_rotate %221 by %c6_i32_50 dim 0 : vector<8x256xf32>, i32 -> vector<8x256xf32>
    %227 = vector.extract_strided_slice %215 {offsets = [0, 1], sizes = [8, 1], strides = [1, 1]} : vector<8x36xf32> to vector<8x1xf32>
    %228 = vector.broadcast %227 : vector<8x1xf32> to vector<8x256xf32>
    %229 = arith.mulf %228, %226 : vector<8x256xf32>
    %230 = arith.addf %225, %229 : vector<8x256xf32>
    %c4_i32_51 = arith.constant 4 : i32
    %231 = tpu.dynamic_rotate %221 by %c4_i32_51 dim 0 : vector<8x256xf32>, i32 -> vector<8x256xf32>
    %232 = vector.extract_strided_slice %215 {offsets = [0, 2], sizes = [8, 1], strides = [1, 1]} : vector<8x36xf32> to vector<8x1xf32>
    %233 = vector.broadcast %232 : vector<8x1xf32> to vector<8x256xf32>
    %234 = arith.mulf %233, %231 : vector<8x256xf32>
    %235 = arith.addf %230, %234 : vector<8x256xf32>
    %c2_i32_52 = arith.constant 2 : i32
    %236 = tpu.dynamic_rotate %221 by %c2_i32_52 dim 0 : vector<8x256xf32>, i32 -> vector<8x256xf32>
    %237 = vector.extract_strided_slice %215 {offsets = [0, 3], sizes = [8, 1], strides = [1, 1]} : vector<8x36xf32> to vector<8x1xf32>
    %238 = vector.broadcast %237 : vector<8x1xf32> to vector<8x256xf32>
    %239 = arith.mulf %238, %236 : vector<8x256xf32>
    %240 = arith.addf %235, %239 : vector<8x256xf32>
    %c16_i32_53 = arith.constant 16 : i32
    %241 = tpu.dynamic_rotate %213 by %c16_i32_53 dim 1 : vector<8x256xf32>, i32 -> vector<8x256xf32>
    %242 = vector.broadcast %1 : vector<1x256xf32> to vector<8x256xf32>
    %243 = arith.mulf %241, %242 : vector<8x256xf32>
    %244 = vector.extract_strided_slice %215 {offsets = [0, 4], sizes = [8, 1], strides = [1, 1]} : vector<8x36xf32> to vector<8x1xf32>
    %245 = vector.broadcast %244 : vector<8x1xf32> to vector<8x256xf32>
    %246 = arith.mulf %245, %243 : vector<8x256xf32>
    %247 = arith.addf %240, %246 : vector<8x256xf32>
    %c6_i32_54 = arith.constant 6 : i32
    %248 = tpu.dynamic_rotate %243 by %c6_i32_54 dim 0 : vector<8x256xf32>, i32 -> vector<8x256xf32>
    %249 = vector.extract_strided_slice %215 {offsets = [0, 5], sizes = [8, 1], strides = [1, 1]} : vector<8x36xf32> to vector<8x1xf32>
    %250 = vector.broadcast %249 : vector<8x1xf32> to vector<8x256xf32>
    %251 = arith.mulf %250, %248 : vector<8x256xf32>
    %252 = arith.addf %247, %251 : vector<8x256xf32>
    %c4_i32_55 = arith.constant 4 : i32
    %253 = tpu.dynamic_rotate %243 by %c4_i32_55 dim 0 : vector<8x256xf32>, i32 -> vector<8x256xf32>
    %254 = vector.extract_strided_slice %215 {offsets = [0, 6], sizes = [8, 1], strides = [1, 1]} : vector<8x36xf32> to vector<8x1xf32>
    %255 = vector.broadcast %254 : vector<8x1xf32> to vector<8x256xf32>
    %256 = arith.mulf %255, %253 : vector<8x256xf32>
    %257 = arith.addf %252, %256 : vector<8x256xf32>
    %c2_i32_56 = arith.constant 2 : i32
    %258 = tpu.dynamic_rotate %243 by %c2_i32_56 dim 0 : vector<8x256xf32>, i32 -> vector<8x256xf32>
    %259 = vector.extract_strided_slice %215 {offsets = [0, 7], sizes = [8, 1], strides = [1, 1]} : vector<8x36xf32> to vector<8x1xf32>
    %260 = vector.broadcast %259 : vector<8x1xf32> to vector<8x256xf32>
    %261 = arith.mulf %260, %258 : vector<8x256xf32>
    %262 = arith.addf %257, %261 : vector<8x256xf32>
    %c15_i32_57 = arith.constant 15 : i32
    %263 = tpu.dynamic_rotate %213 by %c15_i32_57 dim 1 : vector<8x256xf32>, i32 -> vector<8x256xf32>
    %264 = vector.broadcast %2 : vector<1x256xf32> to vector<8x256xf32>
    %265 = arith.mulf %263, %264 : vector<8x256xf32>
    %266 = vector.extract_strided_slice %215 {offsets = [0, 8], sizes = [8, 1], strides = [1, 1]} : vector<8x36xf32> to vector<8x1xf32>
    %267 = vector.broadcast %266 : vector<8x1xf32> to vector<8x256xf32>
    %268 = arith.mulf %267, %265 : vector<8x256xf32>
    %269 = arith.addf %262, %268 : vector<8x256xf32>
    %c6_i32_58 = arith.constant 6 : i32
    %270 = tpu.dynamic_rotate %265 by %c6_i32_58 dim 0 : vector<8x256xf32>, i32 -> vector<8x256xf32>
    %271 = vector.extract_strided_slice %215 {offsets = [0, 9], sizes = [8, 1], strides = [1, 1]} : vector<8x36xf32> to vector<8x1xf32>
    %272 = vector.broadcast %271 : vector<8x1xf32> to vector<8x256xf32>
    %273 = arith.mulf %272, %270 : vector<8x256xf32>
    %274 = arith.addf %269, %273 : vector<8x256xf32>
    %c4_i32_59 = arith.constant 4 : i32
    %275 = tpu.dynamic_rotate %265 by %c4_i32_59 dim 0 : vector<8x256xf32>, i32 -> vector<8x256xf32>
    %276 = vector.extract_strided_slice %215 {offsets = [0, 10], sizes = [8, 1], strides = [1, 1]} : vector<8x36xf32> to vector<8x1xf32>
    %277 = vector.broadcast %276 : vector<8x1xf32> to vector<8x256xf32>
    %278 = arith.mulf %277, %275 : vector<8x256xf32>
    %279 = arith.addf %274, %278 : vector<8x256xf32>
    %c2_i32_60 = arith.constant 2 : i32
    %280 = tpu.dynamic_rotate %265 by %c2_i32_60 dim 0 : vector<8x256xf32>, i32 -> vector<8x256xf32>
    %281 = vector.extract_strided_slice %215 {offsets = [0, 11], sizes = [8, 1], strides = [1, 1]} : vector<8x36xf32> to vector<8x1xf32>
    %282 = vector.broadcast %281 : vector<8x1xf32> to vector<8x256xf32>
    %283 = arith.mulf %282, %280 : vector<8x256xf32>
    %284 = arith.addf %279, %283 : vector<8x256xf32>
    %c1_i32_61 = arith.constant 1 : i32
    %285 = tpu.dynamic_rotate %213 by %c1_i32_61 dim 1 : vector<8x256xf32>, i32 -> vector<8x256xf32>
    %286 = vector.broadcast %3 : vector<1x256xf32> to vector<8x256xf32>
    %287 = arith.mulf %285, %286 : vector<8x256xf32>
    %288 = vector.extract_strided_slice %215 {offsets = [0, 12], sizes = [8, 1], strides = [1, 1]} : vector<8x36xf32> to vector<8x1xf32>
    %289 = vector.broadcast %288 : vector<8x1xf32> to vector<8x256xf32>
    %290 = arith.mulf %289, %287 : vector<8x256xf32>
    %291 = arith.addf %284, %290 : vector<8x256xf32>
    %c6_i32_62 = arith.constant 6 : i32
    %292 = tpu.dynamic_rotate %287 by %c6_i32_62 dim 0 : vector<8x256xf32>, i32 -> vector<8x256xf32>
    %293 = vector.extract_strided_slice %215 {offsets = [0, 13], sizes = [8, 1], strides = [1, 1]} : vector<8x36xf32> to vector<8x1xf32>
    %294 = vector.broadcast %293 : vector<8x1xf32> to vector<8x256xf32>
    %295 = arith.mulf %294, %292 : vector<8x256xf32>
    %296 = arith.addf %291, %295 : vector<8x256xf32>
    %c4_i32_63 = arith.constant 4 : i32
    %297 = tpu.dynamic_rotate %287 by %c4_i32_63 dim 0 : vector<8x256xf32>, i32 -> vector<8x256xf32>
    %298 = vector.extract_strided_slice %215 {offsets = [0, 14], sizes = [8, 1], strides = [1, 1]} : vector<8x36xf32> to vector<8x1xf32>
    %299 = vector.broadcast %298 : vector<8x1xf32> to vector<8x256xf32>
    %300 = arith.mulf %299, %297 : vector<8x256xf32>
    %301 = arith.addf %296, %300 : vector<8x256xf32>
    %c2_i32_64 = arith.constant 2 : i32
    %302 = tpu.dynamic_rotate %287 by %c2_i32_64 dim 0 : vector<8x256xf32>, i32 -> vector<8x256xf32>
    %303 = vector.extract_strided_slice %215 {offsets = [0, 15], sizes = [8, 1], strides = [1, 1]} : vector<8x36xf32> to vector<8x1xf32>
    %304 = vector.broadcast %303 : vector<8x1xf32> to vector<8x256xf32>
    %305 = arith.mulf %304, %302 : vector<8x256xf32>
    %306 = arith.addf %301, %305 : vector<8x256xf32>
    %307 = vector.extract_strided_slice %215 {offsets = [0, 16], sizes = [8, 1], strides = [1, 1]} : vector<8x36xf32> to vector<8x1xf32>
    %308 = vector.broadcast %307 : vector<8x1xf32> to vector<8x256xf32>
    %309 = arith.mulf %308, %213 : vector<8x256xf32>
    %310 = arith.addf %306, %309 : vector<8x256xf32>
    %c6_i32_65 = arith.constant 6 : i32
    %311 = tpu.dynamic_rotate %213 by %c6_i32_65 dim 0 : vector<8x256xf32>, i32 -> vector<8x256xf32>
    %312 = vector.extract_strided_slice %215 {offsets = [0, 17], sizes = [8, 1], strides = [1, 1]} : vector<8x36xf32> to vector<8x1xf32>
    %313 = vector.broadcast %312 : vector<8x1xf32> to vector<8x256xf32>
    %314 = arith.mulf %313, %311 : vector<8x256xf32>
    %315 = arith.addf %310, %314 : vector<8x256xf32>
    %c4_i32_66 = arith.constant 4 : i32
    %316 = tpu.dynamic_rotate %213 by %c4_i32_66 dim 0 : vector<8x256xf32>, i32 -> vector<8x256xf32>
    %317 = vector.extract_strided_slice %215 {offsets = [0, 18], sizes = [8, 1], strides = [1, 1]} : vector<8x36xf32> to vector<8x1xf32>
    %318 = vector.broadcast %317 : vector<8x1xf32> to vector<8x256xf32>
    %319 = arith.mulf %318, %316 : vector<8x256xf32>
    %320 = arith.addf %315, %319 : vector<8x256xf32>
    %c2_i32_67 = arith.constant 2 : i32
    %321 = tpu.dynamic_rotate %213 by %c2_i32_67 dim 0 : vector<8x256xf32>, i32 -> vector<8x256xf32>
    %322 = vector.extract_strided_slice %215 {offsets = [0, 19], sizes = [8, 1], strides = [1, 1]} : vector<8x36xf32> to vector<8x1xf32>
    %323 = vector.broadcast %322 : vector<8x1xf32> to vector<8x256xf32>
    %324 = arith.mulf %323, %321 : vector<8x256xf32>
    %325 = arith.addf %320, %324 : vector<8x256xf32>
    %c255_i32_68 = arith.constant 255 : i32
    %326 = tpu.dynamic_rotate %213 by %c255_i32_68 dim 1 : vector<8x256xf32>, i32 -> vector<8x256xf32>
    %327 = vector.broadcast %4 : vector<1x256xf32> to vector<8x256xf32>
    %328 = arith.mulf %326, %327 : vector<8x256xf32>
    %329 = vector.extract_strided_slice %215 {offsets = [0, 20], sizes = [8, 1], strides = [1, 1]} : vector<8x36xf32> to vector<8x1xf32>
    %330 = vector.broadcast %329 : vector<8x1xf32> to vector<8x256xf32>
    %331 = arith.mulf %330, %328 : vector<8x256xf32>
    %332 = arith.addf %325, %331 : vector<8x256xf32>
    %c6_i32_69 = arith.constant 6 : i32
    %333 = tpu.dynamic_rotate %328 by %c6_i32_69 dim 0 : vector<8x256xf32>, i32 -> vector<8x256xf32>
    %334 = vector.extract_strided_slice %215 {offsets = [0, 21], sizes = [8, 1], strides = [1, 1]} : vector<8x36xf32> to vector<8x1xf32>
    %335 = vector.broadcast %334 : vector<8x1xf32> to vector<8x256xf32>
    %336 = arith.mulf %335, %333 : vector<8x256xf32>
    %337 = arith.addf %332, %336 : vector<8x256xf32>
    %c4_i32_70 = arith.constant 4 : i32
    %338 = tpu.dynamic_rotate %328 by %c4_i32_70 dim 0 : vector<8x256xf32>, i32 -> vector<8x256xf32>
    %339 = vector.extract_strided_slice %215 {offsets = [0, 22], sizes = [8, 1], strides = [1, 1]} : vector<8x36xf32> to vector<8x1xf32>
    %340 = vector.broadcast %339 : vector<8x1xf32> to vector<8x256xf32>
    %341 = arith.mulf %340, %338 : vector<8x256xf32>
    %342 = arith.addf %337, %341 : vector<8x256xf32>
    %c2_i32_71 = arith.constant 2 : i32
    %343 = tpu.dynamic_rotate %328 by %c2_i32_71 dim 0 : vector<8x256xf32>, i32 -> vector<8x256xf32>
    %344 = vector.extract_strided_slice %215 {offsets = [0, 23], sizes = [8, 1], strides = [1, 1]} : vector<8x36xf32> to vector<8x1xf32>
    %345 = vector.broadcast %344 : vector<8x1xf32> to vector<8x256xf32>
    %346 = arith.mulf %345, %343 : vector<8x256xf32>
    %347 = arith.addf %342, %346 : vector<8x256xf32>
    %c241_i32_72 = arith.constant 241 : i32
    %348 = tpu.dynamic_rotate %213 by %c241_i32_72 dim 1 : vector<8x256xf32>, i32 -> vector<8x256xf32>
    %349 = vector.broadcast %5 : vector<1x256xf32> to vector<8x256xf32>
    %350 = arith.mulf %348, %349 : vector<8x256xf32>
    %351 = vector.extract_strided_slice %215 {offsets = [0, 24], sizes = [8, 1], strides = [1, 1]} : vector<8x36xf32> to vector<8x1xf32>
    %352 = vector.broadcast %351 : vector<8x1xf32> to vector<8x256xf32>
    %353 = arith.mulf %352, %350 : vector<8x256xf32>
    %354 = arith.addf %347, %353 : vector<8x256xf32>
    %c6_i32_73 = arith.constant 6 : i32
    %355 = tpu.dynamic_rotate %350 by %c6_i32_73 dim 0 : vector<8x256xf32>, i32 -> vector<8x256xf32>
    %356 = vector.extract_strided_slice %215 {offsets = [0, 25], sizes = [8, 1], strides = [1, 1]} : vector<8x36xf32> to vector<8x1xf32>
    %357 = vector.broadcast %356 : vector<8x1xf32> to vector<8x256xf32>
    %358 = arith.mulf %357, %355 : vector<8x256xf32>
    %359 = arith.addf %354, %358 : vector<8x256xf32>
    %c4_i32_74 = arith.constant 4 : i32
    %360 = tpu.dynamic_rotate %350 by %c4_i32_74 dim 0 : vector<8x256xf32>, i32 -> vector<8x256xf32>
    %361 = vector.extract_strided_slice %215 {offsets = [0, 26], sizes = [8, 1], strides = [1, 1]} : vector<8x36xf32> to vector<8x1xf32>
    %362 = vector.broadcast %361 : vector<8x1xf32> to vector<8x256xf32>
    %363 = arith.mulf %362, %360 : vector<8x256xf32>
    %364 = arith.addf %359, %363 : vector<8x256xf32>
    %c2_i32_75 = arith.constant 2 : i32
    %365 = tpu.dynamic_rotate %350 by %c2_i32_75 dim 0 : vector<8x256xf32>, i32 -> vector<8x256xf32>
    %366 = vector.extract_strided_slice %215 {offsets = [0, 27], sizes = [8, 1], strides = [1, 1]} : vector<8x36xf32> to vector<8x1xf32>
    %367 = vector.broadcast %366 : vector<8x1xf32> to vector<8x256xf32>
    %368 = arith.mulf %367, %365 : vector<8x256xf32>
    %369 = arith.addf %364, %368 : vector<8x256xf32>
    %c240_i32_76 = arith.constant 240 : i32
    %370 = tpu.dynamic_rotate %213 by %c240_i32_76 dim 1 : vector<8x256xf32>, i32 -> vector<8x256xf32>
    %371 = vector.broadcast %6 : vector<1x256xf32> to vector<8x256xf32>
    %372 = arith.mulf %370, %371 : vector<8x256xf32>
    %373 = vector.extract_strided_slice %215 {offsets = [0, 28], sizes = [8, 1], strides = [1, 1]} : vector<8x36xf32> to vector<8x1xf32>
    %374 = vector.broadcast %373 : vector<8x1xf32> to vector<8x256xf32>
    %375 = arith.mulf %374, %372 : vector<8x256xf32>
    %376 = arith.addf %369, %375 : vector<8x256xf32>
    %c6_i32_77 = arith.constant 6 : i32
    %377 = tpu.dynamic_rotate %372 by %c6_i32_77 dim 0 : vector<8x256xf32>, i32 -> vector<8x256xf32>
    %378 = vector.extract_strided_slice %215 {offsets = [0, 29], sizes = [8, 1], strides = [1, 1]} : vector<8x36xf32> to vector<8x1xf32>
    %379 = vector.broadcast %378 : vector<8x1xf32> to vector<8x256xf32>
    %380 = arith.mulf %379, %377 : vector<8x256xf32>
    %381 = arith.addf %376, %380 : vector<8x256xf32>
    %c4_i32_78 = arith.constant 4 : i32
    %382 = tpu.dynamic_rotate %372 by %c4_i32_78 dim 0 : vector<8x256xf32>, i32 -> vector<8x256xf32>
    %383 = vector.extract_strided_slice %215 {offsets = [0, 30], sizes = [8, 1], strides = [1, 1]} : vector<8x36xf32> to vector<8x1xf32>
    %384 = vector.broadcast %383 : vector<8x1xf32> to vector<8x256xf32>
    %385 = arith.mulf %384, %382 : vector<8x256xf32>
    %386 = arith.addf %381, %385 : vector<8x256xf32>
    %c2_i32_79 = arith.constant 2 : i32
    %387 = tpu.dynamic_rotate %372 by %c2_i32_79 dim 0 : vector<8x256xf32>, i32 -> vector<8x256xf32>
    %388 = vector.extract_strided_slice %215 {offsets = [0, 31], sizes = [8, 1], strides = [1, 1]} : vector<8x36xf32> to vector<8x1xf32>
    %389 = vector.broadcast %388 : vector<8x1xf32> to vector<8x256xf32>
    %390 = arith.mulf %389, %387 : vector<8x256xf32>
    %391 = arith.addf %386, %390 : vector<8x256xf32>
    %c239_i32_80 = arith.constant 239 : i32
    %392 = tpu.dynamic_rotate %213 by %c239_i32_80 dim 1 : vector<8x256xf32>, i32 -> vector<8x256xf32>
    %393 = vector.broadcast %7 : vector<1x256xf32> to vector<8x256xf32>
    %394 = arith.mulf %392, %393 : vector<8x256xf32>
    %395 = vector.extract_strided_slice %215 {offsets = [0, 32], sizes = [8, 1], strides = [1, 1]} : vector<8x36xf32> to vector<8x1xf32>
    %396 = vector.broadcast %395 : vector<8x1xf32> to vector<8x256xf32>
    %397 = arith.mulf %396, %394 : vector<8x256xf32>
    %398 = arith.addf %391, %397 : vector<8x256xf32>
    %c6_i32_81 = arith.constant 6 : i32
    %399 = tpu.dynamic_rotate %394 by %c6_i32_81 dim 0 : vector<8x256xf32>, i32 -> vector<8x256xf32>
    %400 = vector.extract_strided_slice %215 {offsets = [0, 33], sizes = [8, 1], strides = [1, 1]} : vector<8x36xf32> to vector<8x1xf32>
    %401 = vector.broadcast %400 : vector<8x1xf32> to vector<8x256xf32>
    %402 = arith.mulf %401, %399 : vector<8x256xf32>
    %403 = arith.addf %398, %402 : vector<8x256xf32>
    %c4_i32_82 = arith.constant 4 : i32
    %404 = tpu.dynamic_rotate %394 by %c4_i32_82 dim 0 : vector<8x256xf32>, i32 -> vector<8x256xf32>
    %405 = vector.extract_strided_slice %215 {offsets = [0, 34], sizes = [8, 1], strides = [1, 1]} : vector<8x36xf32> to vector<8x1xf32>
    %406 = vector.broadcast %405 : vector<8x1xf32> to vector<8x256xf32>
    %407 = arith.mulf %406, %404 : vector<8x256xf32>
    %408 = arith.addf %403, %407 : vector<8x256xf32>
    %c2_i32_83 = arith.constant 2 : i32
    %409 = tpu.dynamic_rotate %394 by %c2_i32_83 dim 0 : vector<8x256xf32>, i32 -> vector<8x256xf32>
    %410 = vector.extract_strided_slice %215 {offsets = [0, 35], sizes = [8, 1], strides = [1, 1]} : vector<8x36xf32> to vector<8x1xf32>
    %411 = vector.broadcast %410 : vector<8x1xf32> to vector<8x256xf32>
    %412 = arith.mulf %411, %409 : vector<8x256xf32>
    %413 = arith.addf %408, %412 : vector<8x256xf32>
    %414 = vector.broadcast %217 : vector<8x1xf32> to vector<8x256xf32>
    %415 = arith.addf %413, %414 : vector<8x256xf32>
    %416 = arith.addf %9, %415 : vector<8x256xf32>
    %c1_84 = arith.constant 1 : index
    %c0_85 = arith.constant 0 : index
    %c0_86 = arith.constant 0 : index
    %417 = vector.load %arg3[%c1_84, %c0_85, %c0_86] : memref<2x8x36xf32, #tpu.memory_space<vmem>>, vector<1x8x36xf32>
    %418 = vector.shape_cast %417 : vector<1x8x36xf32> to vector<8x36xf32>
    %c1_87 = arith.constant 1 : index
    %c0_88 = arith.constant 0 : index
    %c0_89 = arith.constant 0 : index
    %419 = vector.load %arg4[%c1_87, %c0_88, %c0_89] : memref<2x8x1xf32, #tpu.memory_space<vmem>>, vector<1x8x1xf32>
    %420 = vector.shape_cast %419 : vector<1x8x1xf32> to vector<8x1xf32>
    %cst_90 = arith.constant 0.000000e+00 : f32
    %421 = vector.broadcast %cst_90 : f32 to vector<8x256xf32>
    %c17_i32_91 = arith.constant 17 : i32
    %422 = tpu.dynamic_rotate %416 by %c17_i32_91 dim 1 : vector<8x256xf32>, i32 -> vector<8x256xf32>
    %423 = vector.broadcast %0 : vector<1x256xf32> to vector<8x256xf32>
    %424 = arith.mulf %422, %423 : vector<8x256xf32>
    %425 = vector.extract_strided_slice %418 {offsets = [0, 0], sizes = [8, 1], strides = [1, 1]} : vector<8x36xf32> to vector<8x1xf32>
    %426 = vector.broadcast %425 : vector<8x1xf32> to vector<8x256xf32>
    %427 = arith.mulf %426, %424 : vector<8x256xf32>
    %428 = arith.addf %421, %427 : vector<8x256xf32>
    %c6_i32_92 = arith.constant 6 : i32
    %429 = tpu.dynamic_rotate %424 by %c6_i32_92 dim 0 : vector<8x256xf32>, i32 -> vector<8x256xf32>
    %430 = vector.extract_strided_slice %418 {offsets = [0, 1], sizes = [8, 1], strides = [1, 1]} : vector<8x36xf32> to vector<8x1xf32>
    %431 = vector.broadcast %430 : vector<8x1xf32> to vector<8x256xf32>
    %432 = arith.mulf %431, %429 : vector<8x256xf32>
    %433 = arith.addf %428, %432 : vector<8x256xf32>
    %c4_i32_93 = arith.constant 4 : i32
    %434 = tpu.dynamic_rotate %424 by %c4_i32_93 dim 0 : vector<8x256xf32>, i32 -> vector<8x256xf32>
    %435 = vector.extract_strided_slice %418 {offsets = [0, 2], sizes = [8, 1], strides = [1, 1]} : vector<8x36xf32> to vector<8x1xf32>
    %436 = vector.broadcast %435 : vector<8x1xf32> to vector<8x256xf32>
    %437 = arith.mulf %436, %434 : vector<8x256xf32>
    %438 = arith.addf %433, %437 : vector<8x256xf32>
    %c2_i32_94 = arith.constant 2 : i32
    %439 = tpu.dynamic_rotate %424 by %c2_i32_94 dim 0 : vector<8x256xf32>, i32 -> vector<8x256xf32>
    %440 = vector.extract_strided_slice %418 {offsets = [0, 3], sizes = [8, 1], strides = [1, 1]} : vector<8x36xf32> to vector<8x1xf32>
    %441 = vector.broadcast %440 : vector<8x1xf32> to vector<8x256xf32>
    %442 = arith.mulf %441, %439 : vector<8x256xf32>
    %443 = arith.addf %438, %442 : vector<8x256xf32>
    %c16_i32_95 = arith.constant 16 : i32
    %444 = tpu.dynamic_rotate %416 by %c16_i32_95 dim 1 : vector<8x256xf32>, i32 -> vector<8x256xf32>
    %445 = vector.broadcast %1 : vector<1x256xf32> to vector<8x256xf32>
    %446 = arith.mulf %444, %445 : vector<8x256xf32>
    %447 = vector.extract_strided_slice %418 {offsets = [0, 4], sizes = [8, 1], strides = [1, 1]} : vector<8x36xf32> to vector<8x1xf32>
    %448 = vector.broadcast %447 : vector<8x1xf32> to vector<8x256xf32>
    %449 = arith.mulf %448, %446 : vector<8x256xf32>
    %450 = arith.addf %443, %449 : vector<8x256xf32>
    %c6_i32_96 = arith.constant 6 : i32
    %451 = tpu.dynamic_rotate %446 by %c6_i32_96 dim 0 : vector<8x256xf32>, i32 -> vector<8x256xf32>
    %452 = vector.extract_strided_slice %418 {offsets = [0, 5], sizes = [8, 1], strides = [1, 1]} : vector<8x36xf32> to vector<8x1xf32>
    %453 = vector.broadcast %452 : vector<8x1xf32> to vector<8x256xf32>
    %454 = arith.mulf %453, %451 : vector<8x256xf32>
    %455 = arith.addf %450, %454 : vector<8x256xf32>
    %c4_i32_97 = arith.constant 4 : i32
    %456 = tpu.dynamic_rotate %446 by %c4_i32_97 dim 0 : vector<8x256xf32>, i32 -> vector<8x256xf32>
    %457 = vector.extract_strided_slice %418 {offsets = [0, 6], sizes = [8, 1], strides = [1, 1]} : vector<8x36xf32> to vector<8x1xf32>
    %458 = vector.broadcast %457 : vector<8x1xf32> to vector<8x256xf32>
    %459 = arith.mulf %458, %456 : vector<8x256xf32>
    %460 = arith.addf %455, %459 : vector<8x256xf32>
    %c2_i32_98 = arith.constant 2 : i32
    %461 = tpu.dynamic_rotate %446 by %c2_i32_98 dim 0 : vector<8x256xf32>, i32 -> vector<8x256xf32>
    %462 = vector.extract_strided_slice %418 {offsets = [0, 7], sizes = [8, 1], strides = [1, 1]} : vector<8x36xf32> to vector<8x1xf32>
    %463 = vector.broadcast %462 : vector<8x1xf32> to vector<8x256xf32>
    %464 = arith.mulf %463, %461 : vector<8x256xf32>
    %465 = arith.addf %460, %464 : vector<8x256xf32>
    %c15_i32_99 = arith.constant 15 : i32
    %466 = tpu.dynamic_rotate %416 by %c15_i32_99 dim 1 : vector<8x256xf32>, i32 -> vector<8x256xf32>
    %467 = vector.broadcast %2 : vector<1x256xf32> to vector<8x256xf32>
    %468 = arith.mulf %466, %467 : vector<8x256xf32>
    %469 = vector.extract_strided_slice %418 {offsets = [0, 8], sizes = [8, 1], strides = [1, 1]} : vector<8x36xf32> to vector<8x1xf32>
    %470 = vector.broadcast %469 : vector<8x1xf32> to vector<8x256xf32>
    %471 = arith.mulf %470, %468 : vector<8x256xf32>
    %472 = arith.addf %465, %471 : vector<8x256xf32>
    %c6_i32_100 = arith.constant 6 : i32
    %473 = tpu.dynamic_rotate %468 by %c6_i32_100 dim 0 : vector<8x256xf32>, i32 -> vector<8x256xf32>
    %474 = vector.extract_strided_slice %418 {offsets = [0, 9], sizes = [8, 1], strides = [1, 1]} : vector<8x36xf32> to vector<8x1xf32>
    %475 = vector.broadcast %474 : vector<8x1xf32> to vector<8x256xf32>
    %476 = arith.mulf %475, %473 : vector<8x256xf32>
    %477 = arith.addf %472, %476 : vector<8x256xf32>
    %c4_i32_101 = arith.constant 4 : i32
    %478 = tpu.dynamic_rotate %468 by %c4_i32_101 dim 0 : vector<8x256xf32>, i32 -> vector<8x256xf32>
    %479 = vector.extract_strided_slice %418 {offsets = [0, 10], sizes = [8, 1], strides = [1, 1]} : vector<8x36xf32> to vector<8x1xf32>
    %480 = vector.broadcast %479 : vector<8x1xf32> to vector<8x256xf32>
    %481 = arith.mulf %480, %478 : vector<8x256xf32>
    %482 = arith.addf %477, %481 : vector<8x256xf32>
    %c2_i32_102 = arith.constant 2 : i32
    %483 = tpu.dynamic_rotate %468 by %c2_i32_102 dim 0 : vector<8x256xf32>, i32 -> vector<8x256xf32>
    %484 = vector.extract_strided_slice %418 {offsets = [0, 11], sizes = [8, 1], strides = [1, 1]} : vector<8x36xf32> to vector<8x1xf32>
    %485 = vector.broadcast %484 : vector<8x1xf32> to vector<8x256xf32>
    %486 = arith.mulf %485, %483 : vector<8x256xf32>
    %487 = arith.addf %482, %486 : vector<8x256xf32>
    %c1_i32_103 = arith.constant 1 : i32
    %488 = tpu.dynamic_rotate %416 by %c1_i32_103 dim 1 : vector<8x256xf32>, i32 -> vector<8x256xf32>
    %489 = vector.broadcast %3 : vector<1x256xf32> to vector<8x256xf32>
    %490 = arith.mulf %488, %489 : vector<8x256xf32>
    %491 = vector.extract_strided_slice %418 {offsets = [0, 12], sizes = [8, 1], strides = [1, 1]} : vector<8x36xf32> to vector<8x1xf32>
    %492 = vector.broadcast %491 : vector<8x1xf32> to vector<8x256xf32>
    %493 = arith.mulf %492, %490 : vector<8x256xf32>
    %494 = arith.addf %487, %493 : vector<8x256xf32>
    %c6_i32_104 = arith.constant 6 : i32
    %495 = tpu.dynamic_rotate %490 by %c6_i32_104 dim 0 : vector<8x256xf32>, i32 -> vector<8x256xf32>
    %496 = vector.extract_strided_slice %418 {offsets = [0, 13], sizes = [8, 1], strides = [1, 1]} : vector<8x36xf32> to vector<8x1xf32>
    %497 = vector.broadcast %496 : vector<8x1xf32> to vector<8x256xf32>
    %498 = arith.mulf %497, %495 : vector<8x256xf32>
    %499 = arith.addf %494, %498 : vector<8x256xf32>
    %c4_i32_105 = arith.constant 4 : i32
    %500 = tpu.dynamic_rotate %490 by %c4_i32_105 dim 0 : vector<8x256xf32>, i32 -> vector<8x256xf32>
    %501 = vector.extract_strided_slice %418 {offsets = [0, 14], sizes = [8, 1], strides = [1, 1]} : vector<8x36xf32> to vector<8x1xf32>
    %502 = vector.broadcast %501 : vector<8x1xf32> to vector<8x256xf32>
    %503 = arith.mulf %502, %500 : vector<8x256xf32>
    %504 = arith.addf %499, %503 : vector<8x256xf32>
    %c2_i32_106 = arith.constant 2 : i32
    %505 = tpu.dynamic_rotate %490 by %c2_i32_106 dim 0 : vector<8x256xf32>, i32 -> vector<8x256xf32>
    %506 = vector.extract_strided_slice %418 {offsets = [0, 15], sizes = [8, 1], strides = [1, 1]} : vector<8x36xf32> to vector<8x1xf32>
    %507 = vector.broadcast %506 : vector<8x1xf32> to vector<8x256xf32>
    %508 = arith.mulf %507, %505 : vector<8x256xf32>
    %509 = arith.addf %504, %508 : vector<8x256xf32>
    %510 = vector.extract_strided_slice %418 {offsets = [0, 16], sizes = [8, 1], strides = [1, 1]} : vector<8x36xf32> to vector<8x1xf32>
    %511 = vector.broadcast %510 : vector<8x1xf32> to vector<8x256xf32>
    %512 = arith.mulf %511, %416 : vector<8x256xf32>
    %513 = arith.addf %509, %512 : vector<8x256xf32>
    %c6_i32_107 = arith.constant 6 : i32
    %514 = tpu.dynamic_rotate %416 by %c6_i32_107 dim 0 : vector<8x256xf32>, i32 -> vector<8x256xf32>
    %515 = vector.extract_strided_slice %418 {offsets = [0, 17], sizes = [8, 1], strides = [1, 1]} : vector<8x36xf32> to vector<8x1xf32>
    %516 = vector.broadcast %515 : vector<8x1xf32> to vector<8x256xf32>
    %517 = arith.mulf %516, %514 : vector<8x256xf32>
    %518 = arith.addf %513, %517 : vector<8x256xf32>
    %c4_i32_108 = arith.constant 4 : i32
    %519 = tpu.dynamic_rotate %416 by %c4_i32_108 dim 0 : vector<8x256xf32>, i32 -> vector<8x256xf32>
    %520 = vector.extract_strided_slice %418 {offsets = [0, 18], sizes = [8, 1], strides = [1, 1]} : vector<8x36xf32> to vector<8x1xf32>
    %521 = vector.broadcast %520 : vector<8x1xf32> to vector<8x256xf32>
    %522 = arith.mulf %521, %519 : vector<8x256xf32>
    %523 = arith.addf %518, %522 : vector<8x256xf32>
    %c2_i32_109 = arith.constant 2 : i32
    %524 = tpu.dynamic_rotate %416 by %c2_i32_109 dim 0 : vector<8x256xf32>, i32 -> vector<8x256xf32>
    %525 = vector.extract_strided_slice %418 {offsets = [0, 19], sizes = [8, 1], strides = [1, 1]} : vector<8x36xf32> to vector<8x1xf32>
    %526 = vector.broadcast %525 : vector<8x1xf32> to vector<8x256xf32>
    %527 = arith.mulf %526, %524 : vector<8x256xf32>
    %528 = arith.addf %523, %527 : vector<8x256xf32>
    %c255_i32_110 = arith.constant 255 : i32
    %529 = tpu.dynamic_rotate %416 by %c255_i32_110 dim 1 : vector<8x256xf32>, i32 -> vector<8x256xf32>
    %530 = vector.broadcast %4 : vector<1x256xf32> to vector<8x256xf32>
    %531 = arith.mulf %529, %530 : vector<8x256xf32>
    %532 = vector.extract_strided_slice %418 {offsets = [0, 20], sizes = [8, 1], strides = [1, 1]} : vector<8x36xf32> to vector<8x1xf32>
    %533 = vector.broadcast %532 : vector<8x1xf32> to vector<8x256xf32>
    %534 = arith.mulf %533, %531 : vector<8x256xf32>
    %535 = arith.addf %528, %534 : vector<8x256xf32>
    %c6_i32_111 = arith.constant 6 : i32
    %536 = tpu.dynamic_rotate %531 by %c6_i32_111 dim 0 : vector<8x256xf32>, i32 -> vector<8x256xf32>
    %537 = vector.extract_strided_slice %418 {offsets = [0, 21], sizes = [8, 1], strides = [1, 1]} : vector<8x36xf32> to vector<8x1xf32>
    %538 = vector.broadcast %537 : vector<8x1xf32> to vector<8x256xf32>
    %539 = arith.mulf %538, %536 : vector<8x256xf32>
    %540 = arith.addf %535, %539 : vector<8x256xf32>
    %c4_i32_112 = arith.constant 4 : i32
    %541 = tpu.dynamic_rotate %531 by %c4_i32_112 dim 0 : vector<8x256xf32>, i32 -> vector<8x256xf32>
    %542 = vector.extract_strided_slice %418 {offsets = [0, 22], sizes = [8, 1], strides = [1, 1]} : vector<8x36xf32> to vector<8x1xf32>
    %543 = vector.broadcast %542 : vector<8x1xf32> to vector<8x256xf32>
    %544 = arith.mulf %543, %541 : vector<8x256xf32>
    %545 = arith.addf %540, %544 : vector<8x256xf32>
    %c2_i32_113 = arith.constant 2 : i32
    %546 = tpu.dynamic_rotate %531 by %c2_i32_113 dim 0 : vector<8x256xf32>, i32 -> vector<8x256xf32>
    %547 = vector.extract_strided_slice %418 {offsets = [0, 23], sizes = [8, 1], strides = [1, 1]} : vector<8x36xf32> to vector<8x1xf32>
    %548 = vector.broadcast %547 : vector<8x1xf32> to vector<8x256xf32>
    %549 = arith.mulf %548, %546 : vector<8x256xf32>
    %550 = arith.addf %545, %549 : vector<8x256xf32>
    %c241_i32_114 = arith.constant 241 : i32
    %551 = tpu.dynamic_rotate %416 by %c241_i32_114 dim 1 : vector<8x256xf32>, i32 -> vector<8x256xf32>
    %552 = vector.broadcast %5 : vector<1x256xf32> to vector<8x256xf32>
    %553 = arith.mulf %551, %552 : vector<8x256xf32>
    %554 = vector.extract_strided_slice %418 {offsets = [0, 24], sizes = [8, 1], strides = [1, 1]} : vector<8x36xf32> to vector<8x1xf32>
    %555 = vector.broadcast %554 : vector<8x1xf32> to vector<8x256xf32>
    %556 = arith.mulf %555, %553 : vector<8x256xf32>
    %557 = arith.addf %550, %556 : vector<8x256xf32>
    %c6_i32_115 = arith.constant 6 : i32
    %558 = tpu.dynamic_rotate %553 by %c6_i32_115 dim 0 : vector<8x256xf32>, i32 -> vector<8x256xf32>
    %559 = vector.extract_strided_slice %418 {offsets = [0, 25], sizes = [8, 1], strides = [1, 1]} : vector<8x36xf32> to vector<8x1xf32>
    %560 = vector.broadcast %559 : vector<8x1xf32> to vector<8x256xf32>
    %561 = arith.mulf %560, %558 : vector<8x256xf32>
    %562 = arith.addf %557, %561 : vector<8x256xf32>
    %c4_i32_116 = arith.constant 4 : i32
    %563 = tpu.dynamic_rotate %553 by %c4_i32_116 dim 0 : vector<8x256xf32>, i32 -> vector<8x256xf32>
    %564 = vector.extract_strided_slice %418 {offsets = [0, 26], sizes = [8, 1], strides = [1, 1]} : vector<8x36xf32> to vector<8x1xf32>
    %565 = vector.broadcast %564 : vector<8x1xf32> to vector<8x256xf32>
    %566 = arith.mulf %565, %563 : vector<8x256xf32>
    %567 = arith.addf %562, %566 : vector<8x256xf32>
    %c2_i32_117 = arith.constant 2 : i32
    %568 = tpu.dynamic_rotate %553 by %c2_i32_117 dim 0 : vector<8x256xf32>, i32 -> vector<8x256xf32>
    %569 = vector.extract_strided_slice %418 {offsets = [0, 27], sizes = [8, 1], strides = [1, 1]} : vector<8x36xf32> to vector<8x1xf32>
    %570 = vector.broadcast %569 : vector<8x1xf32> to vector<8x256xf32>
    %571 = arith.mulf %570, %568 : vector<8x256xf32>
    %572 = arith.addf %567, %571 : vector<8x256xf32>
    %c240_i32_118 = arith.constant 240 : i32
    %573 = tpu.dynamic_rotate %416 by %c240_i32_118 dim 1 : vector<8x256xf32>, i32 -> vector<8x256xf32>
    %574 = vector.broadcast %6 : vector<1x256xf32> to vector<8x256xf32>
    %575 = arith.mulf %573, %574 : vector<8x256xf32>
    %576 = vector.extract_strided_slice %418 {offsets = [0, 28], sizes = [8, 1], strides = [1, 1]} : vector<8x36xf32> to vector<8x1xf32>
    %577 = vector.broadcast %576 : vector<8x1xf32> to vector<8x256xf32>
    %578 = arith.mulf %577, %575 : vector<8x256xf32>
    %579 = arith.addf %572, %578 : vector<8x256xf32>
    %c6_i32_119 = arith.constant 6 : i32
    %580 = tpu.dynamic_rotate %575 by %c6_i32_119 dim 0 : vector<8x256xf32>, i32 -> vector<8x256xf32>
    %581 = vector.extract_strided_slice %418 {offsets = [0, 29], sizes = [8, 1], strides = [1, 1]} : vector<8x36xf32> to vector<8x1xf32>
    %582 = vector.broadcast %581 : vector<8x1xf32> to vector<8x256xf32>
    %583 = arith.mulf %582, %580 : vector<8x256xf32>
    %584 = arith.addf %579, %583 : vector<8x256xf32>
    %c4_i32_120 = arith.constant 4 : i32
    %585 = tpu.dynamic_rotate %575 by %c4_i32_120 dim 0 : vector<8x256xf32>, i32 -> vector<8x256xf32>
    %586 = vector.extract_strided_slice %418 {offsets = [0, 30], sizes = [8, 1], strides = [1, 1]} : vector<8x36xf32> to vector<8x1xf32>
    %587 = vector.broadcast %586 : vector<8x1xf32> to vector<8x256xf32>
    %588 = arith.mulf %587, %585 : vector<8x256xf32>
    %589 = arith.addf %584, %588 : vector<8x256xf32>
    %c2_i32_121 = arith.constant 2 : i32
    %590 = tpu.dynamic_rotate %575 by %c2_i32_121 dim 0 : vector<8x256xf32>, i32 -> vector<8x256xf32>
    %591 = vector.extract_strided_slice %418 {offsets = [0, 31], sizes = [8, 1], strides = [1, 1]} : vector<8x36xf32> to vector<8x1xf32>
    %592 = vector.broadcast %591 : vector<8x1xf32> to vector<8x256xf32>
    %593 = arith.mulf %592, %590 : vector<8x256xf32>
    %594 = arith.addf %589, %593 : vector<8x256xf32>
    %c239_i32_122 = arith.constant 239 : i32
    %595 = tpu.dynamic_rotate %416 by %c239_i32_122 dim 1 : vector<8x256xf32>, i32 -> vector<8x256xf32>
    %596 = vector.broadcast %7 : vector<1x256xf32> to vector<8x256xf32>
    %597 = arith.mulf %595, %596 : vector<8x256xf32>
    %598 = vector.extract_strided_slice %418 {offsets = [0, 32], sizes = [8, 1], strides = [1, 1]} : vector<8x36xf32> to vector<8x1xf32>
    %599 = vector.broadcast %598 : vector<8x1xf32> to vector<8x256xf32>
    %600 = arith.mulf %599, %597 : vector<8x256xf32>
    %601 = arith.addf %594, %600 : vector<8x256xf32>
    %c6_i32_123 = arith.constant 6 : i32
    %602 = tpu.dynamic_rotate %597 by %c6_i32_123 dim 0 : vector<8x256xf32>, i32 -> vector<8x256xf32>
    %603 = vector.extract_strided_slice %418 {offsets = [0, 33], sizes = [8, 1], strides = [1, 1]} : vector<8x36xf32> to vector<8x1xf32>
    %604 = vector.broadcast %603 : vector<8x1xf32> to vector<8x256xf32>
    %605 = arith.mulf %604, %602 : vector<8x256xf32>
    %606 = arith.addf %601, %605 : vector<8x256xf32>
    %c4_i32_124 = arith.constant 4 : i32
    %607 = tpu.dynamic_rotate %597 by %c4_i32_124 dim 0 : vector<8x256xf32>, i32 -> vector<8x256xf32>
    %608 = vector.extract_strided_slice %418 {offsets = [0, 34], sizes = [8, 1], strides = [1, 1]} : vector<8x36xf32> to vector<8x1xf32>
    %609 = vector.broadcast %608 : vector<8x1xf32> to vector<8x256xf32>
    %610 = arith.mulf %609, %607 : vector<8x256xf32>
    %611 = arith.addf %606, %610 : vector<8x256xf32>
    %c2_i32_125 = arith.constant 2 : i32
    %612 = tpu.dynamic_rotate %597 by %c2_i32_125 dim 0 : vector<8x256xf32>, i32 -> vector<8x256xf32>
    %613 = vector.extract_strided_slice %418 {offsets = [0, 35], sizes = [8, 1], strides = [1, 1]} : vector<8x36xf32> to vector<8x1xf32>
    %614 = vector.broadcast %613 : vector<8x1xf32> to vector<8x256xf32>
    %615 = arith.mulf %614, %612 : vector<8x256xf32>
    %616 = arith.addf %611, %615 : vector<8x256xf32>
    %617 = vector.broadcast %420 : vector<8x1xf32> to vector<8x256xf32>
    %618 = arith.addf %616, %617 : vector<8x256xf32>
    %cst_126 = arith.constant 0.000000e+00 : f32
    %619 = vector.broadcast %cst_126 : f32 to vector<8x256xf32>
    %620 = arith.maximumf %618, %619 : vector<8x256xf32>
    %c1_127 = arith.constant 1 : index
    %c0_128 = arith.constant 0 : index
    %c0_129 = arith.constant 0 : index
    %621 = vector.load %arg5[%c1_127, %c0_128, %c0_129] : memref<2x8x36xf32, #tpu.memory_space<vmem>>, vector<1x8x36xf32>
    %622 = vector.shape_cast %621 : vector<1x8x36xf32> to vector<8x36xf32>
    %c1_130 = arith.constant 1 : index
    %c0_131 = arith.constant 0 : index
    %c0_132 = arith.constant 0 : index
    %623 = vector.load %arg6[%c1_130, %c0_131, %c0_132] : memref<2x8x1xf32, #tpu.memory_space<vmem>>, vector<1x8x1xf32>
    %624 = vector.shape_cast %623 : vector<1x8x1xf32> to vector<8x1xf32>
    %cst_133 = arith.constant 0.000000e+00 : f32
    %625 = vector.broadcast %cst_133 : f32 to vector<8x256xf32>
    %c17_i32_134 = arith.constant 17 : i32
    %626 = tpu.dynamic_rotate %620 by %c17_i32_134 dim 1 : vector<8x256xf32>, i32 -> vector<8x256xf32>
    %627 = vector.broadcast %0 : vector<1x256xf32> to vector<8x256xf32>
    %628 = arith.mulf %626, %627 : vector<8x256xf32>
    %629 = vector.extract_strided_slice %622 {offsets = [0, 0], sizes = [8, 1], strides = [1, 1]} : vector<8x36xf32> to vector<8x1xf32>
    %630 = vector.broadcast %629 : vector<8x1xf32> to vector<8x256xf32>
    %631 = arith.mulf %630, %628 : vector<8x256xf32>
    %632 = arith.addf %625, %631 : vector<8x256xf32>
    %c6_i32_135 = arith.constant 6 : i32
    %633 = tpu.dynamic_rotate %628 by %c6_i32_135 dim 0 : vector<8x256xf32>, i32 -> vector<8x256xf32>
    %634 = vector.extract_strided_slice %622 {offsets = [0, 1], sizes = [8, 1], strides = [1, 1]} : vector<8x36xf32> to vector<8x1xf32>
    %635 = vector.broadcast %634 : vector<8x1xf32> to vector<8x256xf32>
    %636 = arith.mulf %635, %633 : vector<8x256xf32>
    %637 = arith.addf %632, %636 : vector<8x256xf32>
    %c4_i32_136 = arith.constant 4 : i32
    %638 = tpu.dynamic_rotate %628 by %c4_i32_136 dim 0 : vector<8x256xf32>, i32 -> vector<8x256xf32>
    %639 = vector.extract_strided_slice %622 {offsets = [0, 2], sizes = [8, 1], strides = [1, 1]} : vector<8x36xf32> to vector<8x1xf32>
    %640 = vector.broadcast %639 : vector<8x1xf32> to vector<8x256xf32>
    %641 = arith.mulf %640, %638 : vector<8x256xf32>
    %642 = arith.addf %637, %641 : vector<8x256xf32>
    %c2_i32_137 = arith.constant 2 : i32
    %643 = tpu.dynamic_rotate %628 by %c2_i32_137 dim 0 : vector<8x256xf32>, i32 -> vector<8x256xf32>
    %644 = vector.extract_strided_slice %622 {offsets = [0, 3], sizes = [8, 1], strides = [1, 1]} : vector<8x36xf32> to vector<8x1xf32>
    %645 = vector.broadcast %644 : vector<8x1xf32> to vector<8x256xf32>
    %646 = arith.mulf %645, %643 : vector<8x256xf32>
    %647 = arith.addf %642, %646 : vector<8x256xf32>
    %c16_i32_138 = arith.constant 16 : i32
    %648 = tpu.dynamic_rotate %620 by %c16_i32_138 dim 1 : vector<8x256xf32>, i32 -> vector<8x256xf32>
    %649 = vector.broadcast %1 : vector<1x256xf32> to vector<8x256xf32>
    %650 = arith.mulf %648, %649 : vector<8x256xf32>
    %651 = vector.extract_strided_slice %622 {offsets = [0, 4], sizes = [8, 1], strides = [1, 1]} : vector<8x36xf32> to vector<8x1xf32>
    %652 = vector.broadcast %651 : vector<8x1xf32> to vector<8x256xf32>
    %653 = arith.mulf %652, %650 : vector<8x256xf32>
    %654 = arith.addf %647, %653 : vector<8x256xf32>
    %c6_i32_139 = arith.constant 6 : i32
    %655 = tpu.dynamic_rotate %650 by %c6_i32_139 dim 0 : vector<8x256xf32>, i32 -> vector<8x256xf32>
    %656 = vector.extract_strided_slice %622 {offsets = [0, 5], sizes = [8, 1], strides = [1, 1]} : vector<8x36xf32> to vector<8x1xf32>
    %657 = vector.broadcast %656 : vector<8x1xf32> to vector<8x256xf32>
    %658 = arith.mulf %657, %655 : vector<8x256xf32>
    %659 = arith.addf %654, %658 : vector<8x256xf32>
    %c4_i32_140 = arith.constant 4 : i32
    %660 = tpu.dynamic_rotate %650 by %c4_i32_140 dim 0 : vector<8x256xf32>, i32 -> vector<8x256xf32>
    %661 = vector.extract_strided_slice %622 {offsets = [0, 6], sizes = [8, 1], strides = [1, 1]} : vector<8x36xf32> to vector<8x1xf32>
    %662 = vector.broadcast %661 : vector<8x1xf32> to vector<8x256xf32>
    %663 = arith.mulf %662, %660 : vector<8x256xf32>
    %664 = arith.addf %659, %663 : vector<8x256xf32>
    %c2_i32_141 = arith.constant 2 : i32
    %665 = tpu.dynamic_rotate %650 by %c2_i32_141 dim 0 : vector<8x256xf32>, i32 -> vector<8x256xf32>
    %666 = vector.extract_strided_slice %622 {offsets = [0, 7], sizes = [8, 1], strides = [1, 1]} : vector<8x36xf32> to vector<8x1xf32>
    %667 = vector.broadcast %666 : vector<8x1xf32> to vector<8x256xf32>
    %668 = arith.mulf %667, %665 : vector<8x256xf32>
    %669 = arith.addf %664, %668 : vector<8x256xf32>
    %c15_i32_142 = arith.constant 15 : i32
    %670 = tpu.dynamic_rotate %620 by %c15_i32_142 dim 1 : vector<8x256xf32>, i32 -> vector<8x256xf32>
    %671 = vector.broadcast %2 : vector<1x256xf32> to vector<8x256xf32>
    %672 = arith.mulf %670, %671 : vector<8x256xf32>
    %673 = vector.extract_strided_slice %622 {offsets = [0, 8], sizes = [8, 1], strides = [1, 1]} : vector<8x36xf32> to vector<8x1xf32>
    %674 = vector.broadcast %673 : vector<8x1xf32> to vector<8x256xf32>
    %675 = arith.mulf %674, %672 : vector<8x256xf32>
    %676 = arith.addf %669, %675 : vector<8x256xf32>
    %c6_i32_143 = arith.constant 6 : i32
    %677 = tpu.dynamic_rotate %672 by %c6_i32_143 dim 0 : vector<8x256xf32>, i32 -> vector<8x256xf32>
    %678 = vector.extract_strided_slice %622 {offsets = [0, 9], sizes = [8, 1], strides = [1, 1]} : vector<8x36xf32> to vector<8x1xf32>
    %679 = vector.broadcast %678 : vector<8x1xf32> to vector<8x256xf32>
    %680 = arith.mulf %679, %677 : vector<8x256xf32>
    %681 = arith.addf %676, %680 : vector<8x256xf32>
    %c4_i32_144 = arith.constant 4 : i32
    %682 = tpu.dynamic_rotate %672 by %c4_i32_144 dim 0 : vector<8x256xf32>, i32 -> vector<8x256xf32>
    %683 = vector.extract_strided_slice %622 {offsets = [0, 10], sizes = [8, 1], strides = [1, 1]} : vector<8x36xf32> to vector<8x1xf32>
    %684 = vector.broadcast %683 : vector<8x1xf32> to vector<8x256xf32>
    %685 = arith.mulf %684, %682 : vector<8x256xf32>
    %686 = arith.addf %681, %685 : vector<8x256xf32>
    %c2_i32_145 = arith.constant 2 : i32
    %687 = tpu.dynamic_rotate %672 by %c2_i32_145 dim 0 : vector<8x256xf32>, i32 -> vector<8x256xf32>
    %688 = vector.extract_strided_slice %622 {offsets = [0, 11], sizes = [8, 1], strides = [1, 1]} : vector<8x36xf32> to vector<8x1xf32>
    %689 = vector.broadcast %688 : vector<8x1xf32> to vector<8x256xf32>
    %690 = arith.mulf %689, %687 : vector<8x256xf32>
    %691 = arith.addf %686, %690 : vector<8x256xf32>
    %c1_i32_146 = arith.constant 1 : i32
    %692 = tpu.dynamic_rotate %620 by %c1_i32_146 dim 1 : vector<8x256xf32>, i32 -> vector<8x256xf32>
    %693 = vector.broadcast %3 : vector<1x256xf32> to vector<8x256xf32>
    %694 = arith.mulf %692, %693 : vector<8x256xf32>
    %695 = vector.extract_strided_slice %622 {offsets = [0, 12], sizes = [8, 1], strides = [1, 1]} : vector<8x36xf32> to vector<8x1xf32>
    %696 = vector.broadcast %695 : vector<8x1xf32> to vector<8x256xf32>
    %697 = arith.mulf %696, %694 : vector<8x256xf32>
    %698 = arith.addf %691, %697 : vector<8x256xf32>
    %c6_i32_147 = arith.constant 6 : i32
    %699 = tpu.dynamic_rotate %694 by %c6_i32_147 dim 0 : vector<8x256xf32>, i32 -> vector<8x256xf32>
    %700 = vector.extract_strided_slice %622 {offsets = [0, 13], sizes = [8, 1], strides = [1, 1]} : vector<8x36xf32> to vector<8x1xf32>
    %701 = vector.broadcast %700 : vector<8x1xf32> to vector<8x256xf32>
    %702 = arith.mulf %701, %699 : vector<8x256xf32>
    %703 = arith.addf %698, %702 : vector<8x256xf32>
    %c4_i32_148 = arith.constant 4 : i32
    %704 = tpu.dynamic_rotate %694 by %c4_i32_148 dim 0 : vector<8x256xf32>, i32 -> vector<8x256xf32>
    %705 = vector.extract_strided_slice %622 {offsets = [0, 14], sizes = [8, 1], strides = [1, 1]} : vector<8x36xf32> to vector<8x1xf32>
    %706 = vector.broadcast %705 : vector<8x1xf32> to vector<8x256xf32>
    %707 = arith.mulf %706, %704 : vector<8x256xf32>
    %708 = arith.addf %703, %707 : vector<8x256xf32>
    %c2_i32_149 = arith.constant 2 : i32
    %709 = tpu.dynamic_rotate %694 by %c2_i32_149 dim 0 : vector<8x256xf32>, i32 -> vector<8x256xf32>
    %710 = vector.extract_strided_slice %622 {offsets = [0, 15], sizes = [8, 1], strides = [1, 1]} : vector<8x36xf32> to vector<8x1xf32>
    %711 = vector.broadcast %710 : vector<8x1xf32> to vector<8x256xf32>
    %712 = arith.mulf %711, %709 : vector<8x256xf32>
    %713 = arith.addf %708, %712 : vector<8x256xf32>
    %714 = vector.extract_strided_slice %622 {offsets = [0, 16], sizes = [8, 1], strides = [1, 1]} : vector<8x36xf32> to vector<8x1xf32>
    %715 = vector.broadcast %714 : vector<8x1xf32> to vector<8x256xf32>
    %716 = arith.mulf %715, %620 : vector<8x256xf32>
    %717 = arith.addf %713, %716 : vector<8x256xf32>
    %c6_i32_150 = arith.constant 6 : i32
    %718 = tpu.dynamic_rotate %620 by %c6_i32_150 dim 0 : vector<8x256xf32>, i32 -> vector<8x256xf32>
    %719 = vector.extract_strided_slice %622 {offsets = [0, 17], sizes = [8, 1], strides = [1, 1]} : vector<8x36xf32> to vector<8x1xf32>
    %720 = vector.broadcast %719 : vector<8x1xf32> to vector<8x256xf32>
    %721 = arith.mulf %720, %718 : vector<8x256xf32>
    %722 = arith.addf %717, %721 : vector<8x256xf32>
    %c4_i32_151 = arith.constant 4 : i32
    %723 = tpu.dynamic_rotate %620 by %c4_i32_151 dim 0 : vector<8x256xf32>, i32 -> vector<8x256xf32>
    %724 = vector.extract_strided_slice %622 {offsets = [0, 18], sizes = [8, 1], strides = [1, 1]} : vector<8x36xf32> to vector<8x1xf32>
    %725 = vector.broadcast %724 : vector<8x1xf32> to vector<8x256xf32>
    %726 = arith.mulf %725, %723 : vector<8x256xf32>
    %727 = arith.addf %722, %726 : vector<8x256xf32>
    %c2_i32_152 = arith.constant 2 : i32
    %728 = tpu.dynamic_rotate %620 by %c2_i32_152 dim 0 : vector<8x256xf32>, i32 -> vector<8x256xf32>
    %729 = vector.extract_strided_slice %622 {offsets = [0, 19], sizes = [8, 1], strides = [1, 1]} : vector<8x36xf32> to vector<8x1xf32>
    %730 = vector.broadcast %729 : vector<8x1xf32> to vector<8x256xf32>
    %731 = arith.mulf %730, %728 : vector<8x256xf32>
    %732 = arith.addf %727, %731 : vector<8x256xf32>
    %c255_i32_153 = arith.constant 255 : i32
    %733 = tpu.dynamic_rotate %620 by %c255_i32_153 dim 1 : vector<8x256xf32>, i32 -> vector<8x256xf32>
    %734 = vector.broadcast %4 : vector<1x256xf32> to vector<8x256xf32>
    %735 = arith.mulf %733, %734 : vector<8x256xf32>
    %736 = vector.extract_strided_slice %622 {offsets = [0, 20], sizes = [8, 1], strides = [1, 1]} : vector<8x36xf32> to vector<8x1xf32>
    %737 = vector.broadcast %736 : vector<8x1xf32> to vector<8x256xf32>
    %738 = arith.mulf %737, %735 : vector<8x256xf32>
    %739 = arith.addf %732, %738 : vector<8x256xf32>
    %c6_i32_154 = arith.constant 6 : i32
    %740 = tpu.dynamic_rotate %735 by %c6_i32_154 dim 0 : vector<8x256xf32>, i32 -> vector<8x256xf32>
    %741 = vector.extract_strided_slice %622 {offsets = [0, 21], sizes = [8, 1], strides = [1, 1]} : vector<8x36xf32> to vector<8x1xf32>
    %742 = vector.broadcast %741 : vector<8x1xf32> to vector<8x256xf32>
    %743 = arith.mulf %742, %740 : vector<8x256xf32>
    %744 = arith.addf %739, %743 : vector<8x256xf32>
    %c4_i32_155 = arith.constant 4 : i32
    %745 = tpu.dynamic_rotate %735 by %c4_i32_155 dim 0 : vector<8x256xf32>, i32 -> vector<8x256xf32>
    %746 = vector.extract_strided_slice %622 {offsets = [0, 22], sizes = [8, 1], strides = [1, 1]} : vector<8x36xf32> to vector<8x1xf32>
    %747 = vector.broadcast %746 : vector<8x1xf32> to vector<8x256xf32>
    %748 = arith.mulf %747, %745 : vector<8x256xf32>
    %749 = arith.addf %744, %748 : vector<8x256xf32>
    %c2_i32_156 = arith.constant 2 : i32
    %750 = tpu.dynamic_rotate %735 by %c2_i32_156 dim 0 : vector<8x256xf32>, i32 -> vector<8x256xf32>
    %751 = vector.extract_strided_slice %622 {offsets = [0, 23], sizes = [8, 1], strides = [1, 1]} : vector<8x36xf32> to vector<8x1xf32>
    %752 = vector.broadcast %751 : vector<8x1xf32> to vector<8x256xf32>
    %753 = arith.mulf %752, %750 : vector<8x256xf32>
    %754 = arith.addf %749, %753 : vector<8x256xf32>
    %c241_i32_157 = arith.constant 241 : i32
    %755 = tpu.dynamic_rotate %620 by %c241_i32_157 dim 1 : vector<8x256xf32>, i32 -> vector<8x256xf32>
    %756 = vector.broadcast %5 : vector<1x256xf32> to vector<8x256xf32>
    %757 = arith.mulf %755, %756 : vector<8x256xf32>
    %758 = vector.extract_strided_slice %622 {offsets = [0, 24], sizes = [8, 1], strides = [1, 1]} : vector<8x36xf32> to vector<8x1xf32>
    %759 = vector.broadcast %758 : vector<8x1xf32> to vector<8x256xf32>
    %760 = arith.mulf %759, %757 : vector<8x256xf32>
    %761 = arith.addf %754, %760 : vector<8x256xf32>
    %c6_i32_158 = arith.constant 6 : i32
    %762 = tpu.dynamic_rotate %757 by %c6_i32_158 dim 0 : vector<8x256xf32>, i32 -> vector<8x256xf32>
    %763 = vector.extract_strided_slice %622 {offsets = [0, 25], sizes = [8, 1], strides = [1, 1]} : vector<8x36xf32> to vector<8x1xf32>
    %764 = vector.broadcast %763 : vector<8x1xf32> to vector<8x256xf32>
    %765 = arith.mulf %764, %762 : vector<8x256xf32>
    %766 = arith.addf %761, %765 : vector<8x256xf32>
    %c4_i32_159 = arith.constant 4 : i32
    %767 = tpu.dynamic_rotate %757 by %c4_i32_159 dim 0 : vector<8x256xf32>, i32 -> vector<8x256xf32>
    %768 = vector.extract_strided_slice %622 {offsets = [0, 26], sizes = [8, 1], strides = [1, 1]} : vector<8x36xf32> to vector<8x1xf32>
    %769 = vector.broadcast %768 : vector<8x1xf32> to vector<8x256xf32>
    %770 = arith.mulf %769, %767 : vector<8x256xf32>
    %771 = arith.addf %766, %770 : vector<8x256xf32>
    %c2_i32_160 = arith.constant 2 : i32
    %772 = tpu.dynamic_rotate %757 by %c2_i32_160 dim 0 : vector<8x256xf32>, i32 -> vector<8x256xf32>
    %773 = vector.extract_strided_slice %622 {offsets = [0, 27], sizes = [8, 1], strides = [1, 1]} : vector<8x36xf32> to vector<8x1xf32>
    %774 = vector.broadcast %773 : vector<8x1xf32> to vector<8x256xf32>
    %775 = arith.mulf %774, %772 : vector<8x256xf32>
    %776 = arith.addf %771, %775 : vector<8x256xf32>
    %c240_i32_161 = arith.constant 240 : i32
    %777 = tpu.dynamic_rotate %620 by %c240_i32_161 dim 1 : vector<8x256xf32>, i32 -> vector<8x256xf32>
    %778 = vector.broadcast %6 : vector<1x256xf32> to vector<8x256xf32>
    %779 = arith.mulf %777, %778 : vector<8x256xf32>
    %780 = vector.extract_strided_slice %622 {offsets = [0, 28], sizes = [8, 1], strides = [1, 1]} : vector<8x36xf32> to vector<8x1xf32>
    %781 = vector.broadcast %780 : vector<8x1xf32> to vector<8x256xf32>
    %782 = arith.mulf %781, %779 : vector<8x256xf32>
    %783 = arith.addf %776, %782 : vector<8x256xf32>
    %c6_i32_162 = arith.constant 6 : i32
    %784 = tpu.dynamic_rotate %779 by %c6_i32_162 dim 0 : vector<8x256xf32>, i32 -> vector<8x256xf32>
    %785 = vector.extract_strided_slice %622 {offsets = [0, 29], sizes = [8, 1], strides = [1, 1]} : vector<8x36xf32> to vector<8x1xf32>
    %786 = vector.broadcast %785 : vector<8x1xf32> to vector<8x256xf32>
    %787 = arith.mulf %786, %784 : vector<8x256xf32>
    %788 = arith.addf %783, %787 : vector<8x256xf32>
    %c4_i32_163 = arith.constant 4 : i32
    %789 = tpu.dynamic_rotate %779 by %c4_i32_163 dim 0 : vector<8x256xf32>, i32 -> vector<8x256xf32>
    %790 = vector.extract_strided_slice %622 {offsets = [0, 30], sizes = [8, 1], strides = [1, 1]} : vector<8x36xf32> to vector<8x1xf32>
    %791 = vector.broadcast %790 : vector<8x1xf32> to vector<8x256xf32>
    %792 = arith.mulf %791, %789 : vector<8x256xf32>
    %793 = arith.addf %788, %792 : vector<8x256xf32>
    %c2_i32_164 = arith.constant 2 : i32
    %794 = tpu.dynamic_rotate %779 by %c2_i32_164 dim 0 : vector<8x256xf32>, i32 -> vector<8x256xf32>
    %795 = vector.extract_strided_slice %622 {offsets = [0, 31], sizes = [8, 1], strides = [1, 1]} : vector<8x36xf32> to vector<8x1xf32>
    %796 = vector.broadcast %795 : vector<8x1xf32> to vector<8x256xf32>
    %797 = arith.mulf %796, %794 : vector<8x256xf32>
    %798 = arith.addf %793, %797 : vector<8x256xf32>
    %c239_i32_165 = arith.constant 239 : i32
    %799 = tpu.dynamic_rotate %620 by %c239_i32_165 dim 1 : vector<8x256xf32>, i32 -> vector<8x256xf32>
    %800 = vector.broadcast %7 : vector<1x256xf32> to vector<8x256xf32>
    %801 = arith.mulf %799, %800 : vector<8x256xf32>
    %802 = vector.extract_strided_slice %622 {offsets = [0, 32], sizes = [8, 1], strides = [1, 1]} : vector<8x36xf32> to vector<8x1xf32>
    %803 = vector.broadcast %802 : vector<8x1xf32> to vector<8x256xf32>
    %804 = arith.mulf %803, %801 : vector<8x256xf32>
    %805 = arith.addf %798, %804 : vector<8x256xf32>
    %c6_i32_166 = arith.constant 6 : i32
    %806 = tpu.dynamic_rotate %801 by %c6_i32_166 dim 0 : vector<8x256xf32>, i32 -> vector<8x256xf32>
    %807 = vector.extract_strided_slice %622 {offsets = [0, 33], sizes = [8, 1], strides = [1, 1]} : vector<8x36xf32> to vector<8x1xf32>
    %808 = vector.broadcast %807 : vector<8x1xf32> to vector<8x256xf32>
    %809 = arith.mulf %808, %806 : vector<8x256xf32>
    %810 = arith.addf %805, %809 : vector<8x256xf32>
    %c4_i32_167 = arith.constant 4 : i32
    %811 = tpu.dynamic_rotate %801 by %c4_i32_167 dim 0 : vector<8x256xf32>, i32 -> vector<8x256xf32>
    %812 = vector.extract_strided_slice %622 {offsets = [0, 34], sizes = [8, 1], strides = [1, 1]} : vector<8x36xf32> to vector<8x1xf32>
    %813 = vector.broadcast %812 : vector<8x1xf32> to vector<8x256xf32>
    %814 = arith.mulf %813, %811 : vector<8x256xf32>
    %815 = arith.addf %810, %814 : vector<8x256xf32>
    %c2_i32_168 = arith.constant 2 : i32
    %816 = tpu.dynamic_rotate %801 by %c2_i32_168 dim 0 : vector<8x256xf32>, i32 -> vector<8x256xf32>
    %817 = vector.extract_strided_slice %622 {offsets = [0, 35], sizes = [8, 1], strides = [1, 1]} : vector<8x36xf32> to vector<8x1xf32>
    %818 = vector.broadcast %817 : vector<8x1xf32> to vector<8x256xf32>
    %819 = arith.mulf %818, %816 : vector<8x256xf32>
    %820 = arith.addf %815, %819 : vector<8x256xf32>
    %821 = vector.broadcast %624 : vector<8x1xf32> to vector<8x256xf32>
    %822 = arith.addf %820, %821 : vector<8x256xf32>
    %823 = arith.addf %416, %822 : vector<8x256xf32>
    %c0_169 = arith.constant 0 : index
    %c0_170 = arith.constant 0 : index
    %c0_171 = arith.constant 0 : index
    %824 = vector.load %arg7[%c0_169, %c0_170, %c0_171] : memref<1x8x256xf32, #tpu.memory_space<vmem>>, vector<1x8x256xf32>
    %825 = vector.shape_cast %824 : vector<1x8x256xf32> to vector<8x256xf32>
    %826 = vector.shape_cast %823 : vector<8x256xf32> to vector<1x8x256xf32>
    tpu.vector_store %arg7[%c0_169, %c0_170, %c0_171], %826 {strides = array<i32>} : memref<1x8x256xf32, #tpu.memory_space<vmem>>, vector<1x8x256xf32>,
    return
  }
  func.func @transform_0(%arg0: i32) -> (i32, i32, i32) {
    %c0_i32 = arith.constant 0 : i32
    %c0_i32_0 = arith.constant 0 : i32
    %c0_i32_1 = arith.constant 0 : i32
    return %arg0, %c0_i32, %c0_i32_0 : i32, i32, i32
  }
  func.func @transform_1(%arg0: i32) -> (i32, i32) {
    %c0_i32 = arith.constant 0 : i32
    %c0_i32_0 = arith.constant 0 : i32
    %c0_i32_1 = arith.constant 0 : i32
    return %c0_i32, %c0_i32_0 : i32, i32
  }
  func.func @transform_2(%arg0: i32) -> (i32, i32, i32) {
    %c0_i32 = arith.constant 0 : i32
    %c0_i32_0 = arith.constant 0 : i32
    %c0_i32_1 = arith.constant 0 : i32
    %c0_i32_2 = arith.constant 0 : i32
    return %c0_i32, %c0_i32_0, %c0_i32_1 : i32, i32, i32
  }
  func.func @transform_3(%arg0: i32) -> (i32, i32, i32) {
    %c0_i32 = arith.constant 0 : i32
    %c0_i32_0 = arith.constant 0 : i32
    %c0_i32_1 = arith.constant 0 : i32
    %c0_i32_2 = arith.constant 0 : i32
    return %c0_i32, %c0_i32_0, %c0_i32_1 : i32, i32, i32
  }
  func.func @transform_4(%arg0: i32) -> (i32, i32, i32) {
    %c0_i32 = arith.constant 0 : i32
    %c0_i32_0 = arith.constant 0 : i32
    %c0_i32_1 = arith.constant 0 : i32
    %c0_i32_2 = arith.constant 0 : i32
    return %c0_i32, %c0_i32_0, %c0_i32_1 : i32, i32, i32
  }
  func.func @transform_5(%arg0: i32) -> (i32, i32, i32) {
    %c0_i32 = arith.constant 0 : i32
    %c0_i32_0 = arith.constant 0 : i32
    %c0_i32_1 = arith.constant 0 : i32
    %c0_i32_2 = arith.constant 0 : i32
    return %c0_i32, %c0_i32_0, %c0_i32_1 : i32, i32, i32
  }
  func.func @transform_6(%arg0: i32) -> (i32, i32, i32) {
    %c0_i32 = arith.constant 0 : i32
    %c0_i32_0 = arith.constant 0 : i32
    %c0_i32_1 = arith.constant 0 : i32
    return %arg0, %c0_i32, %c0_i32_0 : i32, i32, i32
  }
}

</mosaic_0001>

<llo_original>
// kernel: tpu_custom_call.1
$region0: #{tpu_custom_call.1}
  #allocation0 [shape = 'u32[]', space=smem, size = 0x4, offset = 0x4, fixed_abs, tag = 'smem constant byte address 0x4 - core index']
  #allocation1 [shape = 'u32[144,128]{1,0:T(1,128)}', space=vmem, size = 0x12000, scoped, tag = 'internal scratch']
  %s0 = inlined_call_operand.hbm [shape: f32[1,8,256], index: 0, kind: input, shape index: {}]
  %s1 = inlined_call_operand.vmem [shape: f32[9,256], index: 1, kind: input, shape index: {}]
  %s2 = inlined_call_operand.hbm [shape: f32[2,8,36], index: 2, kind: input, shape index: {}]
  %s3 = inlined_call_operand.vmem [shape: f32[2,8,1], index: 3, kind: input, shape index: {}]
  %s4 = inlined_call_operand.vmem [shape: f32[2,8,36], index: 4, kind: input, shape index: {}]
  %s5 = inlined_call_operand.vmem [shape: f32[2,8,1], index: 5, kind: input, shape index: {}]
  %s6 = inlined_call_operand.hbm [shape: f32[1,8,256], index: 6, kind: output, shape index: {}]
  %s7 = sld [smem:[#allocation0]]
  $region42: #{tpu_custom_call.1} parent=0
    _
  %s9 = ssub.s32 1, %s7
  %s10 = scalar_select 0, %s9, %s7
  $region1: #{tpu_custom_call.1} parent=0
    #allocation2 [shape = 'u8[8192]{0}', space=vmem, size = 0x2000, scoped, tag = 'input window, operand 0, single buffered']
    #allocation3 [shape = 's32[1]{0}', space=sflag, size = 0x4, scoped, tag = 'scoped memory for tpu_custom_call.1']
    #allocation4 [shape = 's32[1]{0}', space=sflag, size = 0x4, scoped, tag = 'scoped memory for tpu_custom_call.1']
    #allocation5 [shape = 'u8[8192]{0}', space=vmem, size = 0x2000, scoped, tag = 'input window, operand 2, single buffered']
    #allocation6 [shape = 's32[1]{0}', space=sflag, size = 0x4, scoped, tag = 'scoped memory for tpu_custom_call.1']
    #allocation7 [shape = 'u8[8192]{0}', space=vmem, size = 0x2000, scoped, tag = 'output window, operand 0, single buffered']
    %11 = vsyncpa [#allocation3], 0
    %12 = vsyncpa [#allocation6], 0
    %13 = vsyncpa [#allocation4], 0
    // Predicated region
    $region2: #{tpu_custom_call.1} parent=1 // pred_check
      _
    $region3: #{tpu_custom_call.1} parent=1 // pred_check_branch
      %15 = sbr.rel (0) target = $region5
    $region4: #{tpu_custom_call.1} parent=1 // pred_region
      %s17 = ssub.s32 256, 256
      %18 = vsyncadd [#allocation3], %s17
      %s20 = sshll.u32 [#allocation2], 4
      %s21 = int_to_ptr.vmem [resolvable:$true] %s20
      %23 = dma.hbm_to_vmem [thread:$0]  %s0, 256, %s21, [#allocation3]
    $region5: #{tpu_custom_call.1} parent=1 // pred_fallthru
      _
    // Predicated region
    $region6: #{tpu_custom_call.1} parent=1 // pred_check
      _
    $region7: #{tpu_custom_call.1} parent=1 // pred_check_branch
      %25 = sbr.rel (0) target = $region9
    $region8: #{tpu_custom_call.1} parent=1 // pred_region
      _
    $region9: #{tpu_custom_call.1} parent=1 // pred_fallthru
      _
    // Predicated region
    $region10: #{tpu_custom_call.1} parent=1 // pred_check
      _
    $region11: #{tpu_custom_call.1} parent=1 // pred_check_branch
      %27 = sbr.rel (0) target = $region13
    $region12: #{tpu_custom_call.1} parent=1 // pred_region
      %s29 = ssub.s32 256, 256
      %30 = vsyncadd [#allocation6], %s29
      %s31 = sshll.u32 [#allocation5], 4
      %s32 = int_to_ptr.vmem [resolvable:$true] %s31
      %37 = dma.hbm_to_vmem [thread:$0]  %s2, 256, %s32, [#allocation6], 128, 128, 8
    $region13: #{tpu_custom_call.1} parent=1 // pred_fallthru
      _
    // Predicated region
    $region14: #{tpu_custom_call.1} parent=1 // pred_check
      _
    $region15: #{tpu_custom_call.1} parent=1 // pred_check_branch
      %39 = sbr.rel (0) target = $region17
    $region16: #{tpu_custom_call.1} parent=1 // pred_region
      _
    $region17: #{tpu_custom_call.1} parent=1 // pred_fallthru
      _
    // Predicated region
    $region18: #{tpu_custom_call.1} parent=1 // pred_check
      _
    $region19: #{tpu_custom_call.1} parent=1 // pred_check_branch
      %41 = sbr.rel (0) target = $region21
    $region20: #{tpu_custom_call.1} parent=1 // pred_region
      _
    $region21: #{tpu_custom_call.1} parent=1 // pred_fallthru
      _
    // Predicated region
    $region22: #{tpu_custom_call.1} parent=1 // pred_check
      _
    $region23: #{tpu_custom_call.1} parent=1 // pred_check_branch
      %43 = sbr.rel (0) target = $region25
    $region24: #{tpu_custom_call.1} parent=1 // pred_region
      _
    $region25: #{tpu_custom_call.1} parent=1 // pred_fallthru
      _
    // Predicated region
    $region26: #{tpu_custom_call.1} parent=1 // pred_check
      _
    $region27: #{tpu_custom_call.1} parent=1 // pred_check_branch
      %45 = sbr.rel (0) target = $region29
    $region28: #{tpu_custom_call.1} parent=1 // pred_region
      %46 = dma.done [#allocation3], 256
    $region29: #{tpu_custom_call.1} parent=1 // pred_fallthru
      _
    // Predicated region
    $region30: #{tpu_custom_call.1} parent=1 // pred_check
      _
    $region31: #{tpu_custom_call.1} parent=1 // pred_check_branch
      %48 = sbr.rel (0) target = $region33
    $region32: #{tpu_custom_call.1} parent=1 // pred_region
      %49 = dma.done [#allocation6], 256
    $region33: #{tpu_custom_call.1} parent=1 // pred_fallthru
      _
    %v50 = vld [vmem:[%s1] ss:$8 sm:$0x3]
    %s51 = scalar_lea.vmem %s1, 1
    %v52 = vld [vmem:[%s51] ss:$8 sm:$0x3]
    %s53 = scalar_lea.vmem %s1, 2
    %v54 = vld [vmem:[%s53] ss:$8 sm:$0x3]
    %s55 = scalar_lea.vmem %s1, 3
    %v56 = vld [vmem:[%s55] ss:$8 sm:$0x3]
    %s57 = scalar_lea.vmem %s1, 5
    %v58 = vld [vmem:[%s57] ss:$8 sm:$0x3]
    %s59 = scalar_lea.vmem %s1, 6
    %v60 = vld [vmem:[%s59] ss:$8 sm:$0x3]
    %s61 = scalar_lea.vmem %s1, 7
    %v62 = vld [vmem:[%s61] ss:$8 sm:$0x3]
    %s63 = scalar_lea.vmem %s1, 16
    %v64 = vld [vmem:[%s63] ss:$8 sm:$0x3]
    %v65 = vld [vmem:[#allocation2] sm:$0xff]
    %v66 = vld [vmem:[#allocation2 + $0x8] sm:$0xff]
    %v67 = vld [vmem:[#allocation5] sm:$0xff]
    %v68 = vld [vmem:[%s3] sm:$0xff]
    %69 = vrot.lane.b32.xlu0 %v65, 17
    %v70 = vpop.permute.xlu0 %69
    %71 = vrot.lane.b32.xlu0 %v66, 17
    %v72 = vpop.permute.xlu0 %71
    %v73 = vlaneseq
    %v74 = vand.u32 %v73, 127
    %vm75 = vcmp.lt.s32.totalorder %v74, 17
    %v76 = vsel %vm75, %v70, %v72
    %v77 = vsel %vm75, %v72, %v70
    %v79 = vlaneseq
    %v80 = vshrl.u32 %v79, 7
    %v81 = vsub.s32 0, %v80
    %v82 = vrot.slane %v50, %v81
    %v83 = vlaneseq
    %v84 = vshrl.u32 %v83, 7
    %v85 = vsub.s32 1, %v84
    %v86 = vrot.slane %v50, %v85
    %v89 = vmul.f32 %v77, %v82
    %v90 = vmul.f32 %v76, %v86
    %92 = vset.pattern.permute.xlu0 0
    %93 = vperm.xlu0 %92, %v67
    %v94 = vpop.permute.xlu0 %93
    %v96 = vmul.f32 %v94, %v89
    %v97 = vmul.f32 %v94, %v90
    %v98 = vadd.f32 %v96, 0.0
    %v99 = vadd.f32 %v97, 0.0
    %v100 = vrot.slane %v89, 2
    %v101 = vrot.slane %v90, 2
    %102 = vset.pattern.permute.xlu0 1
    %103 = vperm.xlu0 %102, %v67
    %v104 = vpop.permute.xlu0 %103
    %v106 = vmul.f32 %v104, %v100
    %v107 = vmul.f32 %v104, %v101
    %v108 = vadd.f32 %v98, %v106
    %v109 = vadd.f32 %v99, %v107
    %v110 = vrot.slane %v89, 4
    %v111 = vrot.slane %v90, 4
    %112 = vset.pattern.permute.xlu0 2
    %113 = vperm.xlu0 %112, %v67
    %v114 = vpop.permute.xlu0 %113
    %v116 = vmul.f32 %v114, %v110
    %v117 = vmul.f32 %v114, %v111
    %v118 = vadd.f32 %v108, %v116
    %v119 = vadd.f32 %v109, %v117
    %v120 = vrot.slane %v89, 6
    %v121 = vrot.slane %v90, 6
    %122 = vset.pattern.permute.xlu0 3
    %123 = vperm.xlu0 %122, %v67
    %v124 = vpop.permute.xlu0 %123
    %v126 = vmul.f32 %v124, %v120
    %v127 = vmul.f32 %v124, %v121
    %v128 = vadd.f32 %v118, %v126
    %v129 = vadd.f32 %v119, %v127
    %130 = vrot.lane.b32.xlu0 %v65, 16
    %v131 = vpop.permute.xlu0 %130
    %132 = vrot.lane.b32.xlu0 %v66, 16
    %v133 = vpop.permute.xlu0 %132
    %vm134 = vcmp.lt.s32.totalorder %v74, 16
    %v135 = vsel %vm134, %v131, %v133
    %v136 = vsel %vm134, %v133, %v131
    %v138 = vlaneseq
    %v139 = vshrl.u32 %v138, 7
    %v140 = vsub.s32 0, %v139
    %v141 = vrot.slane %v52, %v140
    %v142 = vlaneseq
    %v143 = vshrl.u32 %v142, 7
    %v144 = vsub.s32 1, %v143
    %v145 = vrot.slane %v52, %v144
    %v148 = vmul.f32 %v136, %v141
    %v149 = vmul.f32 %v135, %v145
    %150 = vset.pattern.permute.xlu0 4
    %151 = vperm.xlu0 %150, %v67
    %v152 = vpop.permute.xlu0 %151
    %v154 = vmul.f32 %v152, %v148
    %v155 = vmul.f32 %v152, %v149
    %v156 = vadd.f32 %v128, %v154
    %v157 = vadd.f32 %v129, %v155
    %v158 = vrot.slane %v148, 2
    %v159 = vrot.slane %v149, 2
    %160 = vset.pattern.permute.xlu0 5
    %161 = vperm.xlu0 %160, %v67
    %v162 = vpop.permute.xlu0 %161
    %v164 = vmul.f32 %v162, %v158
    %v165 = vmul.f32 %v162, %v159
    %v166 = vadd.f32 %v156, %v164
    %v167 = vadd.f32 %v157, %v165
    %v168 = vrot.slane %v148, 4
    %v169 = vrot.slane %v149, 4
    %170 = vset.pattern.permute.xlu0 6
    %171 = vperm.xlu0 %170, %v67
    %v172 = vpop.permute.xlu0 %171
    %v174 = vmul.f32 %v172, %v168
    %v175 = vmul.f32 %v172, %v169
    %v176 = vadd.f32 %v166, %v174
    %v177 = vadd.f32 %v167, %v175
    %v178 = vrot.slane %v148, 6
    %v179 = vrot.slane %v149, 6
    %180 = vset.pattern.permute.xlu0 7
    %181 = vperm.xlu0 %180, %v67
    %v182 = vpop.permute.xlu0 %181
    %v184 = vmul.f32 %v182, %v178
    %v185 = vmul.f32 %v182, %v179
    %v186 = vadd.f32 %v176, %v184
    %v187 = vadd.f32 %v177, %v185
    %188 = vrot.lane.b32.xlu0 %v65, 15
    %v189 = vpop.permute.xlu0 %188
    %190 = vrot.lane.b32.xlu0 %v66, 15
    %v191 = vpop.permute.xlu0 %190
    %vm192 = vcmp.lt.s32.totalorder %v74, 15
    %v193 = vsel %vm192, %v189, %v191
    %v194 = vsel %vm192, %v191, %v189
    %v196 = vlaneseq
    %v197 = vshrl.u32 %v196, 7
    %v198 = vsub.s32 0, %v197
    %v199 = vrot.slane %v54, %v198
    %v200 = vlaneseq
    %v201 = vshrl.u32 %v200, 7
    %v202 = vsub.s32 1, %v201
    %v203 = vrot.slane %v54, %v202
    %v206 = vmul.f32 %v194, %v199
    %v207 = vmul.f32 %v193, %v203
    %208 = vset.pattern.permute.xlu0 8
    %209 = vperm.xlu0 %208, %v67
    %v210 = vpop.permute.xlu0 %209
    %v212 = vmul.f32 %v210, %v206
    %v213 = vmul.f32 %v210, %v207
    %v214 = vadd.f32 %v186, %v212
    %v215 = vadd.f32 %v187, %v213
    %v216 = vrot.slane %v206, 2
    %v217 = vrot.slane %v207, 2
    %218 = vset.pattern.permute.xlu0 9
    %219 = vperm.xlu0 %218, %v67
    %v220 = vpop.permute.xlu0 %219
    %v222 = vmul.f32 %v220, %v216
    %v223 = vmul.f32 %v220, %v217
    %v224 = vadd.f32 %v214, %v222
    %v225 = vadd.f32 %v215, %v223
    %v226 = vrot.slane %v206, 4
    %v227 = vrot.slane %v207, 4
    %228 = vset.pattern.permute.xlu0 10
    %229 = vperm.xlu0 %228, %v67
    %v230 = vpop.permute.xlu0 %229
    %v232 = vmul.f32 %v230, %v226
    %v233 = vmul.f32 %v230, %v227
    %v234 = vadd.f32 %v224, %v232
    %v235 = vadd.f32 %v225, %v233
    %v236 = vrot.slane %v206, 6
    %v237 = vrot.slane %v207, 6
    %238 = vset.pattern.permute.xlu0 11
    %239 = vperm.xlu0 %238, %v67
    %v240 = vpop.permute.xlu0 %239
    %v242 = vmul.f32 %v240, %v236
    %v243 = vmul.f32 %v240, %v237
    %v244 = vadd.f32 %v234, %v242
    %v245 = vadd.f32 %v235, %v243
    %246 = vrot.lane.b32.xlu0 %v65, 1
    %v247 = vpop.permute.xlu0 %246
    %248 = vrot.lane.b32.xlu0 %v66, 1
    %v249 = vpop.permute.xlu0 %248
    %vm250 = vcmp.lt.s32.totalorder %v74, 1
    %v251 = vsel %vm250, %v247, %v249
    %v252 = vsel %vm250, %v249, %v247
    %v254 = vlaneseq
    %v255 = vshrl.u32 %v254, 7
    %v256 = vsub.s32 0, %v255
    %v257 = vrot.slane %v56, %v256
    %v258 = vlaneseq
    %v259 = vshrl.u32 %v258, 7
    %v260 = vsub.s32 1, %v259
    %v261 = vrot.slane %v56, %v260
    %v264 = vmul.f32 %v252, %v257
    %v265 = vmul.f32 %v251, %v261
    %266 = vset.pattern.permute.xlu0 12
    %267 = vperm.xlu0 %266, %v67
    %v268 = vpop.permute.xlu0 %267
    %v270 = vmul.f32 %v268, %v264
    %v271 = vmul.f32 %v268, %v265
    %v272 = vadd.f32 %v244, %v270
    %v273 = vadd.f32 %v245, %v271
    %v274 = vrot.slane %v264, 2
    %v275 = vrot.slane %v265, 2
    %276 = vset.pattern.permute.xlu0 13
    %277 = vperm.xlu0 %276, %v67
    %v278 = vpop.permute.xlu0 %277
    %v280 = vmul.f32 %v278, %v274
    %v281 = vmul.f32 %v278, %v275
    %v282 = vadd.f32 %v272, %v280
    %v283 = vadd.f32 %v273, %v281
    %v284 = vrot.slane %v264, 4
    %v285 = vrot.slane %v265, 4
    %286 = vset.pattern.permute.xlu0 14
    %287 = vperm.xlu0 %286, %v67
    %v288 = vpop.permute.xlu0 %287
    %v290 = vmul.f32 %v288, %v284
    %v291 = vmul.f32 %v288, %v285
    %v292 = vadd.f32 %v282, %v290
    %v293 = vadd.f32 %v283, %v291
    %v294 = vrot.slane %v264, 6
    %v295 = vrot.slane %v265, 6
    %296 = vset.pattern.permute.xlu0 15
    %297 = vperm.xlu0 %296, %v67
    %v298 = vpop.permute.xlu0 %297
    %v300 = vmul.f32 %v298, %v294
    %v301 = vmul.f32 %v298, %v295
    %v302 = vadd.f32 %v292, %v300
    %v303 = vadd.f32 %v293, %v301
    %304 = vset.pattern.permute.xlu0 16
    %305 = vperm.xlu0 %304, %v67
    %v306 = vpop.permute.xlu0 %305
    %v308 = vmul.f32 %v306, %v65
    %v309 = vmul.f32 %v306, %v66
    %v310 = vadd.f32 %v302, %v308
    %v311 = vadd.f32 %v303, %v309
    %v312 = vrot.slane %v65, 2
    %v313 = vrot.slane %v66, 2
    %314 = vset.pattern.permute.xlu0 17
    %315 = vperm.xlu0 %314, %v67
    %v316 = vpop.permute.xlu0 %315
    %v318 = vmul.f32 %v316, %v312
    %v319 = vmul.f32 %v316, %v313
    %v320 = vadd.f32 %v310, %v318
    %v321 = vadd.f32 %v311, %v319
    %v322 = vrot.slane %v65, 4
    %v323 = vrot.slane %v66, 4
    %324 = vset.pattern.permute.xlu0 18
    %325 = vperm.xlu0 %324, %v67
    %v326 = vpop.permute.xlu0 %325
    %v328 = vmul.f32 %v326, %v322
    %v329 = vmul.f32 %v326, %v323
    %v330 = vadd.f32 %v320, %v328
    %v331 = vadd.f32 %v321, %v329
    %v332 = vrot.slane %v65, 6
    %v333 = vrot.slane %v66, 6
    %334 = vset.pattern.permute.xlu0 19
    %335 = vperm.xlu0 %334, %v67
    %v336 = vpop.permute.xlu0 %335
    %v338 = vmul.f32 %v336, %v332
    %v339 = vmul.f32 %v336, %v333
    %v340 = vadd.f32 %v330, %v338
    %v341 = vadd.f32 %v331, %v339
    %342 = vrot.lane.b32.xlu0 %v65, 127
    %v343 = vpop.permute.xlu0 %342
    %344 = vrot.lane.b32.xlu0 %v66, 127
    %v345 = vpop.permute.xlu0 %344
    %vm346 = vcmp.lt.s32.totalorder %v74, 127
    %v347 = vsel %vm346, %v343, %v345
    %v348 = vsel %vm346, %v345, %v343
    %v350 = vlaneseq
    %v351 = vshrl.u32 %v350, 7
    %v352 = vsub.s32 0, %v351
    %v353 = vrot.slane %v58, %v352
    %v354 = vlaneseq
    %v355 = vshrl.u32 %v354, 7
    %v356 = vsub.s32 1, %v355
    %v357 = vrot.slane %v58, %v356
    %v360 = vmul.f32 %v347, %v353
    %v361 = vmul.f32 %v348, %v357
    %362 = vset.pattern.permute.xlu0 20
    %363 = vperm.xlu0 %362, %v67
    %v364 = vpop.permute.xlu0 %363
    %v366 = vmul.f32 %v364, %v360
    %v367 = vmul.f32 %v364, %v361
    %v368 = vadd.f32 %v340, %v366
    %v369 = vadd.f32 %v341, %v367
    %v370 = vrot.slane %v360, 2
    %v371 = vrot.slane %v361, 2
    %372 = vset.pattern.permute.xlu0 21
    %373 = vperm.xlu0 %372, %v67
    %v374 = vpop.permute.xlu0 %373
    %v376 = vmul.f32 %v374, %v370
    %v377 = vmul.f32 %v374, %v371
    %v378 = vadd.f32 %v368, %v376
    %v379 = vadd.f32 %v369, %v377
    %v380 = vrot.slane %v360, 4
    %v381 = vrot.slane %v361, 4
    %382 = vset.pattern.permute.xlu0 22
    %383 = vperm.xlu0 %382, %v67
    %v384 = vpop.permute.xlu0 %383
    %v386 = vmul.f32 %v384, %v380
    %v387 = vmul.f32 %v384, %v381
    %v388 = vadd.f32 %v378, %v386
    %v389 = vadd.f32 %v379, %v387
    %v390 = vrot.slane %v360, 6
    %v391 = vrot.slane %v361, 6
    %392 = vset.pattern.permute.xlu0 23
    %393 = vperm.xlu0 %392, %v67
    %v394 = vpop.permute.xlu0 %393
    %v396 = vmul.f32 %v394, %v390
    %v397 = vmul.f32 %v394, %v391
    %v398 = vadd.f32 %v388, %v396
    %v399 = vadd.f32 %v389, %v397
    %400 = vrot.lane.b32.xlu0 %v65, 113
    %v401 = vpop.permute.xlu0 %400
    %402 = vrot.lane.b32.xlu0 %v66, 113
    %v403 = vpop.permute.xlu0 %402
    %vm404 = vcmp.lt.s32.totalorder %v74, 113
    %v405 = vsel %vm404, %v401, %v403
    %v406 = vsel %vm404, %v403, %v401
    %v408 = vlaneseq
    %v409 = vshrl.u32 %v408, 7
    %v410 = vsub.s32 0, %v409
    %v411 = vrot.slane %v60, %v410
    %v412 = vlaneseq
    %v413 = vshrl.u32 %v412, 7
    %v414 = vsub.s32 1, %v413
    %v415 = vrot.slane %v60, %v414
    %v418 = vmul.f32 %v405, %v411
    %v419 = vmul.f32 %v406, %v415
    %420 = vset.pattern.permute.xlu0 24
    %421 = vperm.xlu0 %420, %v67
    %v422 = vpop.permute.xlu0 %421
    %v424 = vmul.f32 %v422, %v418
    %v425 = vmul.f32 %v422, %v419
    %v426 = vadd.f32 %v398, %v424
    %v427 = vadd.f32 %v399, %v425
    %v428 = vrot.slane %v418, 2
    %v429 = vrot.slane %v419, 2
    %430 = vset.pattern.permute.xlu0 25
    %431 = vperm.xlu0 %430, %v67
    %v432 = vpop.permute.xlu0 %431
    %v434 = vmul.f32 %v432, %v428
    %v435 = vmul.f32 %v432, %v429
    %v436 = vadd.f32 %v426, %v434
    %v437 = vadd.f32 %v427, %v435
    %v438 = vrot.slane %v418, 4
    %v439 = vrot.slane %v419, 4
    %440 = vset.pattern.permute.xlu0 26
    %441 = vperm.xlu0 %440, %v67
    %v442 = vpop.permute.xlu0 %441
    %v444 = vmul.f32 %v442, %v438
    %v445 = vmul.f32 %v442, %v439
    %v446 = vadd.f32 %v436, %v444
    %v447 = vadd.f32 %v437, %v445
    %v448 = vrot.slane %v418, 6
    %v449 = vrot.slane %v419, 6
    %450 = vset.pattern.permute.xlu0 27
    %451 = vperm.xlu0 %450, %v67
    %v452 = vpop.permute.xlu0 %451
    %v454 = vmul.f32 %v452, %v448
    %v455 = vmul.f32 %v452, %v449
    %v456 = vadd.f32 %v446, %v454
    %v457 = vadd.f32 %v447, %v455
    %458 = vrot.lane.b32.xlu0 %v65, 112
    %v459 = vpop.permute.xlu0 %458
    %460 = vrot.lane.b32.xlu0 %v66, 112
    %v461 = vpop.permute.xlu0 %460
    %vm462 = vcmp.lt.s32.totalorder %v74, 112
    %v463 = vsel %vm462, %v459, %v461
    %v464 = vsel %vm462, %v461, %v459
    %v466 = vlaneseq
    %v467 = vshrl.u32 %v466, 7
    %v468 = vsub.s32 0, %v467
    %v469 = vrot.slane %v62, %v468
    %v470 = vlaneseq
    %v471 = vshrl.u32 %v470, 7
    %v472 = vsub.s32 1, %v471
    %v473 = vrot.slane %v62, %v472
    %v476 = vmul.f32 %v463, %v469
    %v477 = vmul.f32 %v464, %v473
    %478 = vset.pattern.permute.xlu0 28
    %479 = vperm.xlu0 %478, %v67
    %v480 = vpop.permute.xlu0 %479
    %v482 = vmul.f32 %v480, %v476
    %v483 = vmul.f32 %v480, %v477
    %v484 = vadd.f32 %v456, %v482
    %v485 = vadd.f32 %v457, %v483
    %v486 = vrot.slane %v476, 2
    %v487 = vrot.slane %v477, 2
    %488 = vset.pattern.permute.xlu0 29
    %489 = vperm.xlu0 %488, %v67
    %v490 = vpop.permute.xlu0 %489
    %v492 = vmul.f32 %v490, %v486
    %v493 = vmul.f32 %v490, %v487
    %v494 = vadd.f32 %v484, %v492
    %v495 = vadd.f32 %v485, %v493
    %v496 = vrot.slane %v476, 4
    %v497 = vrot.slane %v477, 4
    %498 = vset.pattern.permute.xlu0 30
    %499 = vperm.xlu0 %498, %v67
    %v500 = vpop.permute.xlu0 %499
    %v502 = vmul.f32 %v500, %v496
    %v503 = vmul.f32 %v500, %v497
    %v504 = vadd.f32 %v494, %v502
    %v505 = vadd.f32 %v495, %v503
    %v506 = vrot.slane %v476, 6
    %v507 = vrot.slane %v477, 6
    %508 = vset.pattern.permute.xlu0 31
    %509 = vperm.xlu0 %508, %v67
    %v510 = vpop.permute.xlu0 %509
    %v512 = vmul.f32 %v510, %v506
    %v513 = vmul.f32 %v510, %v507
    %v514 = vadd.f32 %v504, %v512
    %v515 = vadd.f32 %v505, %v513
    %516 = vrot.lane.b32.xlu0 %v65, 111
    %v517 = vpop.permute.xlu0 %516
    %518 = vrot.lane.b32.xlu0 %v66, 111
    %v519 = vpop.permute.xlu0 %518
    %vm520 = vcmp.lt.s32.totalorder %v74, 111
    %v521 = vsel %vm520, %v517, %v519
    %v522 = vsel %vm520, %v519, %v517
    %v524 = vlaneseq
    %v525 = vshrl.u32 %v524, 7
    %v526 = vsub.s32 0, %v525
    %v527 = vrot.slane %v64, %v526
    %v528 = vlaneseq
    %v529 = vshrl.u32 %v528, 7
    %v530 = vsub.s32 1, %v529
    %v531 = vrot.slane %v64, %v530
    %v534 = vmul.f32 %v521, %v527
    %v535 = vmul.f32 %v522, %v531
    %536 = vset.pattern.permute.xlu0 32
    %537 = vperm.xlu0 %536, %v67
    %v538 = vpop.permute.xlu0 %537
    %v540 = vmul.f32 %v538, %v534
    %v541 = vmul.f32 %v538, %v535
    %v542 = vadd.f32 %v514, %v540
    %v543 = vadd.f32 %v515, %v541
    %v544 = vrot.slane %v534, 2
    %v545 = vrot.slane %v535, 2
    %546 = vset.pattern.permute.xlu0 33
    %547 = vperm.xlu0 %546, %v67
    %v548 = vpop.permute.xlu0 %547
    %v550 = vmul.f32 %v548, %v544
    %v551 = vmul.f32 %v548, %v545
    %v552 = vadd.f32 %v542, %v550
    %v553 = vadd.f32 %v543, %v551
    %v554 = vrot.slane %v534, 4
    %v555 = vrot.slane %v535, 4
    %556 = vset.pattern.permute.xlu0 34
    %557 = vperm.xlu0 %556, %v67
    %v558 = vpop.permute.xlu0 %557
    %v560 = vmul.f32 %v558, %v554
    %v561 = vmul.f32 %v558, %v555
    %v562 = vadd.f32 %v552, %v560
    %v563 = vadd.f32 %v553, %v561
    %v564 = vrot.slane %v534, 6
    %v565 = vrot.slane %v535, 6
    %566 = vset.pattern.permute.xlu0 35
    %567 = vperm.xlu0 %566, %v67
    %v568 = vpop.permute.xlu0 %567
    %v570 = vmul.f32 %v568, %v564
    %v571 = vmul.f32 %v568, %v565
    %v572 = vadd.f32 %v562, %v570
    %v573 = vadd.f32 %v563, %v571
    %575 = vset.pattern.permute.xlu0 0
    %576 = vperm.xlu0 %575, %v68
    %v577 = vpop.permute.xlu0 %576
    %v579 = vadd.f32 %v572, %v577
    %v580 = vadd.f32 %v573, %v577
    %v581 = vmax.f32 %v579, 0.0
    %v582 = vmax.f32 %v580, 0.0
    %v583 = vld [vmem:[%s4] sm:$0xff]
    %v584 = vld [vmem:[%s5] sm:$0xff]
    %585 = vrot.lane.b32.xlu0 %v581, 17
    %v586 = vpop.permute.xlu0 %585
    %587 = vrot.lane.b32.xlu0 %v582, 17
    %v588 = vpop.permute.xlu0 %587
    %v589 = vsel %vm75, %v586, %v588
    %v590 = vsel %vm75, %v588, %v586
    %v591 = vmul.f32 %v590, %v82
    %v592 = vmul.f32 %v589, %v86
    %594 = vset.pattern.permute.xlu0 0
    %595 = vperm.xlu0 %594, %v583
    %v596 = vpop.permute.xlu0 %595
    %v598 = vmul.f32 %v596, %v591
    %v599 = vmul.f32 %v596, %v592
    %v600 = vadd.f32 %v598, 0.0
    %v601 = vadd.f32 %v599, 0.0
    %v602 = vrot.slane %v591, 2
    %v603 = vrot.slane %v592, 2
    %604 = vset.pattern.permute.xlu0 1
    %605 = vperm.xlu0 %604, %v583
    %v606 = vpop.permute.xlu0 %605
    %v608 = vmul.f32 %v606, %v602
    %v609 = vmul.f32 %v606, %v603
    %v610 = vadd.f32 %v600, %v608
    %v611 = vadd.f32 %v601, %v609
    %v612 = vrot.slane %v591, 4
    %v613 = vrot.slane %v592, 4
    %614 = vset.pattern.permute.xlu0 2
    %615 = vperm.xlu0 %614, %v583
    %v616 = vpop.permute.xlu0 %615
    %v618 = vmul.f32 %v616, %v612
    %v619 = vmul.f32 %v616, %v613
    %v620 = vadd.f32 %v610, %v618
    %v621 = vadd.f32 %v611, %v619
    %v622 = vrot.slane %v591, 6
    %v623 = vrot.slane %v592, 6
    %624 = vset.pattern.permute.xlu0 3
    %625 = vperm.xlu0 %624, %v583
    %v626 = vpop.permute.xlu0 %625
    %v628 = vmul.f32 %v626, %v622
    %v629 = vmul.f32 %v626, %v623
    %v630 = vadd.f32 %v620, %v628
    %v631 = vadd.f32 %v621, %v629
    %632 = vrot.lane.b32.xlu0 %v581, 16
    %v633 = vpop.permute.xlu0 %632
    %634 = vrot.lane.b32.xlu0 %v582, 16
    %v635 = vpop.permute.xlu0 %634
    %v636 = vsel %vm134, %v633, %v635
    %v637 = vsel %vm134, %v635, %v633
    %v638 = vmul.f32 %v637, %v141
    %v639 = vmul.f32 %v636, %v145
    %640 = vset.pattern.permute.xlu0 4
    %641 = vperm.xlu0 %640, %v583
    %v642 = vpop.permute.xlu0 %641
    %v644 = vmul.f32 %v642, %v638
    %v645 = vmul.f32 %v642, %v639
    %v646 = vadd.f32 %v630, %v644
    %v647 = vadd.f32 %v631, %v645
    %v648 = vrot.slane %v638, 2
    %v649 = vrot.slane %v639, 2
    %650 = vset.pattern.permute.xlu0 5
    %651 = vperm.xlu0 %650, %v583
    %v652 = vpop.permute.xlu0 %651
    %v654 = vmul.f32 %v652, %v648
    %v655 = vmul.f32 %v652, %v649
    %v656 = vadd.f32 %v646, %v654
    %v657 = vadd.f32 %v647, %v655
    %v658 = vrot.slane %v638, 4
    %v659 = vrot.slane %v639, 4
    %660 = vset.pattern.permute.xlu0 6
    %661 = vperm.xlu0 %660, %v583
    %v662 = vpop.permute.xlu0 %661
    %v664 = vmul.f32 %v662, %v658
    %v665 = vmul.f32 %v662, %v659
    %v666 = vadd.f32 %v656, %v664
    %v667 = vadd.f32 %v657, %v665
    %v668 = vrot.slane %v638, 6
    %v669 = vrot.slane %v639, 6
    %670 = vset.pattern.permute.xlu0 7
    %671 = vperm.xlu0 %670, %v583
    %v672 = vpop.permute.xlu0 %671
    %v674 = vmul.f32 %v672, %v668
    %v675 = vmul.f32 %v672, %v669
    %v676 = vadd.f32 %v666, %v674
    %v677 = vadd.f32 %v667, %v675
    %678 = vrot.lane.b32.xlu0 %v581, 15
    %v679 = vpop.permute.xlu0 %678
    %680 = vrot.lane.b32.xlu0 %v582, 15
    %v681 = vpop.permute.xlu0 %680
    %v682 = vsel %vm192, %v679, %v681
    %v683 = vsel %vm192, %v681, %v679
    %v684 = vmul.f32 %v683, %v199
    %v685 = vmul.f32 %v682, %v203
    %686 = vset.pattern.permute.xlu0 8
    %687 = vperm.xlu0 %686, %v583
    %v688 = vpop.permute.xlu0 %687
    %v690 = vmul.f32 %v688, %v684
    %v691 = vmul.f32 %v688, %v685
    %v692 = vadd.f32 %v676, %v690
    %v693 = vadd.f32 %v677, %v691
    %v694 = vrot.slane %v684, 2
    %v695 = vrot.slane %v685, 2
    %696 = vset.pattern.permute.xlu0 9
    %697 = vperm.xlu0 %696, %v583
    %v698 = vpop.permute.xlu0 %697
    %v700 = vmul.f32 %v698, %v694
    %v701 = vmul.f32 %v698, %v695
    %v702 = vadd.f32 %v692, %v700
    %v703 = vadd.f32 %v693, %v701
    %v704 = vrot.slane %v684, 4
    %v705 = vrot.slane %v685, 4
    %706 = vset.pattern.permute.xlu0 10
    %707 = vperm.xlu0 %706, %v583
    %v708 = vpop.permute.xlu0 %707
    %v710 = vmul.f32 %v708, %v704
    %v711 = vmul.f32 %v708, %v705
    %v712 = vadd.f32 %v702, %v710
    %v713 = vadd.f32 %v703, %v711
    %v714 = vrot.slane %v684, 6
    %v715 = vrot.slane %v685, 6
    %716 = vset.pattern.permute.xlu0 11
    %717 = vperm.xlu0 %716, %v583
    %v718 = vpop.permute.xlu0 %717
    %v720 = vmul.f32 %v718, %v714
    %v721 = vmul.f32 %v718, %v715
    %v722 = vadd.f32 %v712, %v720
    %v723 = vadd.f32 %v713, %v721
    %724 = vrot.lane.b32.xlu0 %v581, 1
    %v725 = vpop.permute.xlu0 %724
    %726 = vrot.lane.b32.xlu0 %v582, 1
    %v727 = vpop.permute.xlu0 %726
    %v728 = vsel %vm250, %v725, %v727
    %v729 = vsel %vm250, %v727, %v725
    %v730 = vmul.f32 %v729, %v257
    %v731 = vmul.f32 %v728, %v261
    %732 = vset.pattern.permute.xlu0 12
    %733 = vperm.xlu0 %732, %v583
    %v734 = vpop.permute.xlu0 %733
    %v736 = vmul.f32 %v734, %v730
    %v737 = vmul.f32 %v734, %v731
    %v738 = vadd.f32 %v722, %v736
    %v739 = vadd.f32 %v723, %v737
    %v740 = vrot.slane %v730, 2
    %v741 = vrot.slane %v731, 2
    %742 = vset.pattern.permute.xlu0 13
    %743 = vperm.xlu0 %742, %v583
    %v744 = vpop.permute.xlu0 %743
    %v746 = vmul.f32 %v744, %v740
    %v747 = vmul.f32 %v744, %v741
    %v748 = vadd.f32 %v738, %v746
    %v749 = vadd.f32 %v739, %v747
    %v750 = vrot.slane %v730, 4
    %v751 = vrot.slane %v731, 4
    %752 = vset.pattern.permute.xlu0 14
    %753 = vperm.xlu0 %752, %v583
    %v754 = vpop.permute.xlu0 %753
    %v756 = vmul.f32 %v754, %v750
    %v757 = vmul.f32 %v754, %v751
    %v758 = vadd.f32 %v748, %v756
    %v759 = vadd.f32 %v749, %v757
    %v760 = vrot.slane %v730, 6
    %v761 = vrot.slane %v731, 6
    %762 = vset.pattern.permute.xlu0 15
    %763 = vperm.xlu0 %762, %v583
    %v764 = vpop.permute.xlu0 %763
    %v766 = vmul.f32 %v764, %v760
    %v767 = vmul.f32 %v764, %v761
    %v768 = vadd.f32 %v758, %v766
    %v769 = vadd.f32 %v759, %v767
    %770 = vset.pattern.permute.xlu0 16
    %771 = vperm.xlu0 %770, %v583
    %v772 = vpop.permute.xlu0 %771
    %v774 = vmul.f32 %v772, %v581
    %v775 = vmul.f32 %v772, %v582
    %v776 = vadd.f32 %v768, %v774
    %v777 = vadd.f32 %v769, %v775
    %v778 = vrot.slane %v581, 2
    %v779 = vrot.slane %v582, 2
    %780 = vset.pattern.permute.xlu0 17
    %781 = vperm.xlu0 %780, %v583
    %v782 = vpop.permute.xlu0 %781
    %v784 = vmul.f32 %v782, %v778
    %v785 = vmul.f32 %v782, %v779
    %v786 = vadd.f32 %v776, %v784
    %v787 = vadd.f32 %v777, %v785
    %v788 = vrot.slane %v581, 4
    %v789 = vrot.slane %v582, 4
    %790 = vset.pattern.permute.xlu0 18
    %791 = vperm.xlu0 %790, %v583
    %v792 = vpop.permute.xlu0 %791
    %v794 = vmul.f32 %v792, %v788
    %v795 = vmul.f32 %v792, %v789
    %v796 = vadd.f32 %v786, %v794
    %v797 = vadd.f32 %v787, %v795
    %v798 = vrot.slane %v581, 6
    %v799 = vrot.slane %v582, 6
    %800 = vset.pattern.permute.xlu0 19
    %801 = vperm.xlu0 %800, %v583
    %v802 = vpop.permute.xlu0 %801
    %v804 = vmul.f32 %v802, %v798
    %v805 = vmul.f32 %v802, %v799
    %v806 = vadd.f32 %v796, %v804
    %v807 = vadd.f32 %v797, %v805
    %808 = vrot.lane.b32.xlu0 %v581, 127
    %v809 = vpop.permute.xlu0 %808
    %810 = vrot.lane.b32.xlu0 %v582, 127
    %v811 = vpop.permute.xlu0 %810
    %v812 = vsel %vm346, %v809, %v811
    %v813 = vsel %vm346, %v811, %v809
    %v814 = vmul.f32 %v812, %v353
    %v815 = vmul.f32 %v813, %v357
    %816 = vset.pattern.permute.xlu0 20
    %817 = vperm.xlu0 %816, %v583
    %v818 = vpop.permute.xlu0 %817
    %v820 = vmul.f32 %v818, %v814
    %v821 = vmul.f32 %v818, %v815
    %v822 = vadd.f32 %v806, %v820
    %v823 = vadd.f32 %v807, %v821
    %v824 = vrot.slane %v814, 2
    %v825 = vrot.slane %v815, 2
    %826 = vset.pattern.permute.xlu0 21
    %827 = vperm.xlu0 %826, %v583
    %v828 = vpop.permute.xlu0 %827
    %v830 = vmul.f32 %v828, %v824
    %v831 = vmul.f32 %v828, %v825
    %v832 = vadd.f32 %v822, %v830
    %v833 = vadd.f32 %v823, %v831
    %v834 = vrot.slane %v814, 4
    %v835 = vrot.slane %v815, 4
    %836 = vset.pattern.permute.xlu0 22
    %837 = vperm.xlu0 %836, %v583
    %v838 = vpop.permute.xlu0 %837
    %v840 = vmul.f32 %v838, %v834
    %v841 = vmul.f32 %v838, %v835
    %v842 = vadd.f32 %v832, %v840
    %v843 = vadd.f32 %v833, %v841
    %v844 = vrot.slane %v814, 6
    %v845 = vrot.slane %v815, 6
    %846 = vset.pattern.permute.xlu0 23
    %847 = vperm.xlu0 %846, %v583
    %v848 = vpop.permute.xlu0 %847
    %v850 = vmul.f32 %v848, %v844
    %v851 = vmul.f32 %v848, %v845
    %v852 = vadd.f32 %v842, %v850
    %v853 = vadd.f32 %v843, %v851
    %854 = vrot.lane.b32.xlu0 %v581, 113
    %v855 = vpop.permute.xlu0 %854
    %856 = vrot.lane.b32.xlu0 %v582, 113
    %v857 = vpop.permute.xlu0 %856
    %v858 = vsel %vm404, %v855, %v857
    %v859 = vsel %vm404, %v857, %v855
    %v860 = vmul.f32 %v858, %v411
    %v861 = vmul.f32 %v859, %v415
    %862 = vset.pattern.permute.xlu0 24
    %863 = vperm.xlu0 %862, %v583
    %v864 = vpop.permute.xlu0 %863
    %v866 = vmul.f32 %v864, %v860
    %v867 = vmul.f32 %v864, %v861
    %v868 = vadd.f32 %v852, %v866
    %v869 = vadd.f32 %v853, %v867
    %v870 = vrot.slane %v860, 2
    %v871 = vrot.slane %v861, 2
    %872 = vset.pattern.permute.xlu0 25
    %873 = vperm.xlu0 %872, %v583
    %v874 = vpop.permute.xlu0 %873
    %v876 = vmul.f32 %v874, %v870
    %v877 = vmul.f32 %v874, %v871
    %v878 = vadd.f32 %v868, %v876
    %v879 = vadd.f32 %v869, %v877
    %v880 = vrot.slane %v860, 4
    %v881 = vrot.slane %v861, 4
    %882 = vset.pattern.permute.xlu0 26
    %883 = vperm.xlu0 %882, %v583
    %v884 = vpop.permute.xlu0 %883
    %v886 = vmul.f32 %v884, %v880
    %v887 = vmul.f32 %v884, %v881
    %v888 = vadd.f32 %v878, %v886
    %v889 = vadd.f32 %v879, %v887
    %v890 = vrot.slane %v860, 6
    %v891 = vrot.slane %v861, 6
    %892 = vset.pattern.permute.xlu0 27
    %893 = vperm.xlu0 %892, %v583
    %v894 = vpop.permute.xlu0 %893
    %v896 = vmul.f32 %v894, %v890
    %v897 = vmul.f32 %v894, %v891
    %v898 = vadd.f32 %v888, %v896
    %v899 = vadd.f32 %v889, %v897
    %900 = vrot.lane.b32.xlu0 %v581, 112
    %v901 = vpop.permute.xlu0 %900
    %902 = vrot.lane.b32.xlu0 %v582, 112
    %v903 = vpop.permute.xlu0 %902
    %v904 = vsel %vm462, %v901, %v903
    %v905 = vsel %vm462, %v903, %v901
    %v906 = vmul.f32 %v904, %v469
    %v907 = vmul.f32 %v905, %v473
    %908 = vset.pattern.permute.xlu0 28
    %909 = vperm.xlu0 %908, %v583
    %v910 = vpop.permute.xlu0 %909
    %v912 = vmul.f32 %v910, %v906
    %v913 = vmul.f32 %v910, %v907
    %v914 = vadd.f32 %v898, %v912
    %v915 = vadd.f32 %v899, %v913
    %v916 = vrot.slane %v906, 2
    %v917 = vrot.slane %v907, 2
    %918 = vset.pattern.permute.xlu0 29
    %919 = vperm.xlu0 %918, %v583
    %v920 = vpop.permute.xlu0 %919
    %v922 = vmul.f32 %v920, %v916
    %v923 = vmul.f32 %v920, %v917
    %v924 = vadd.f32 %v914, %v922
    %v925 = vadd.f32 %v915, %v923
    %v926 = vrot.slane %v906, 4
    %v927 = vrot.slane %v907, 4
    %928 = vset.pattern.permute.xlu0 30
    %929 = vperm.xlu0 %928, %v583
    %v930 = vpop.permute.xlu0 %929
    %v932 = vmul.f32 %v930, %v926
    %v933 = vmul.f32 %v930, %v927
    %v934 = vadd.f32 %v924, %v932
    %v935 = vadd.f32 %v925, %v933
    %v936 = vrot.slane %v906, 6
    %v937 = vrot.slane %v907, 6
    %938 = vset.pattern.permute.xlu0 31
    %939 = vperm.xlu0 %938, %v583
    %v940 = vpop.permute.xlu0 %939
    %v942 = vmul.f32 %v940, %v936
    %v943 = vmul.f32 %v940, %v937
    %v944 = vadd.f32 %v934, %v942
    %v945 = vadd.f32 %v935, %v943
    %946 = vrot.lane.b32.xlu0 %v581, 111
    %v947 = vpop.permute.xlu0 %946
    %948 = vrot.lane.b32.xlu0 %v582, 111
    %v949 = vpop.permute.xlu0 %948
    %v950 = vsel %vm520, %v947, %v949
    %v951 = vsel %vm520, %v949, %v947
    %v952 = vmul.f32 %v950, %v527
    %v953 = vmul.f32 %v951, %v531
    %954 = vset.pattern.permute.xlu0 32
    %955 = vperm.xlu0 %954, %v583
    %v956 = vpop.permute.xlu0 %955
    %v958 = vmul.f32 %v956, %v952
    %v959 = vmul.f32 %v956, %v953
    %v960 = vadd.f32 %v944, %v958
    %v961 = vadd.f32 %v945, %v959
    %v962 = vrot.slane %v952, 2
    %v963 = vrot.slane %v953, 2
    %964 = vset.pattern.permute.xlu0 33
    %965 = vperm.xlu0 %964, %v583
    %v966 = vpop.permute.xlu0 %965
    %v968 = vmul.f32 %v966, %v962
    %v969 = vmul.f32 %v966, %v963
    %v970 = vadd.f32 %v960, %v968
    %v971 = vadd.f32 %v961, %v969
    %v972 = vrot.slane %v952, 4
    %v973 = vrot.slane %v953, 4
    %974 = vset.pattern.permute.xlu0 34
    %975 = vperm.xlu0 %974, %v583
    %v976 = vpop.permute.xlu0 %975
    %v978 = vmul.f32 %v976, %v972
    %v979 = vmul.f32 %v976, %v973
    %v980 = vadd.f32 %v970, %v978
    %v981 = vadd.f32 %v971, %v979
    %v982 = vrot.slane %v952, 6
    %v983 = vrot.slane %v953, 6
    %984 = vset.pattern.permute.xlu0 35
    %985 = vperm.xlu0 %984, %v583
    %v986 = vpop.permute.xlu0 %985
    %v988 = vmul.f32 %v986, %v982
    %v989 = vmul.f32 %v986, %v983
    %v990 = vadd.f32 %v980, %v988
    %v991 = vadd.f32 %v981, %v989
    %993 = vset.pattern.permute.xlu0 0
    %994 = vperm.xlu0 %993, %v584
    %v995 = vpop.permute.xlu0 %994
    %v997 = vadd.f32 %v990, %v995
    %v998 = vadd.f32 %v991, %v995
    %v999 = vadd.f32 %v65, %v997
    %v1000 = vadd.f32 %v66, %v998
    %s1001 = scalar_lea.vmem [#allocation5], 8
    %v1002 = vld [vmem:[%s1001] sm:$0xff]
    %s1003 = scalar_lea.vmem %s3, 8
    %v1004 = vld [vmem:[%s1003] sm:$0xff]
    %1005 = vrot.lane.b32.xlu0 %v999, 17
    %v1006 = vpop.permute.xlu0 %1005
    %1007 = vrot.lane.b32.xlu0 %v1000, 17
    %v1008 = vpop.permute.xlu0 %1007
    %v1009 = vsel %vm75, %v1006, %v1008
    %v1010 = vsel %vm75, %v1008, %v1006
    %v1011 = vmul.f32 %v1010, %v82
    %v1012 = vmul.f32 %v1009, %v86
    %1014 = vset.pattern.permute.xlu0 0
    %1015 = vperm.xlu0 %1014, %v1002
    %v1016 = vpop.permute.xlu0 %1015
    %v1018 = vmul.f32 %v1016, %v1011
    %v1019 = vmul.f32 %v1016, %v1012
    %v1020 = vadd.f32 %v1018, 0.0
    %v1021 = vadd.f32 %v1019, 0.0
    %v1022 = vrot.slane %v1011, 2
    %v1023 = vrot.slane %v1012, 2
    %1024 = vset.pattern.permute.xlu0 1
    %1025 = vperm.xlu0 %1024, %v1002
    %v1026 = vpop.permute.xlu0 %1025
    %v1028 = vmul.f32 %v1026, %v1022
    %v1029 = vmul.f32 %v1026, %v1023
    %v1030 = vadd.f32 %v1020, %v1028
    %v1031 = vadd.f32 %v1021, %v1029
    %v1032 = vrot.slane %v1011, 4
    %v1033 = vrot.slane %v1012, 4
    %1034 = vset.pattern.permute.xlu0 2
    %1035 = vperm.xlu0 %1034, %v1002
    %v1036 = vpop.permute.xlu0 %1035
    %v1038 = vmul.f32 %v1036, %v1032
    %v1039 = vmul.f32 %v1036, %v1033
    %v1040 = vadd.f32 %v1030, %v1038
    %v1041 = vadd.f32 %v1031, %v1039
    %v1042 = vrot.slane %v1011, 6
    %v1043 = vrot.slane %v1012, 6
    %1044 = vset.pattern.permute.xlu0 3
    %1045 = vperm.xlu0 %1044, %v1002
    %v1046 = vpop.permute.xlu0 %1045
    %v1048 = vmul.f32 %v1046, %v1042
    %v1049 = vmul.f32 %v1046, %v1043
    %v1050 = vadd.f32 %v1040, %v1048
    %v1051 = vadd.f32 %v1041, %v1049
    %1052 = vrot.lane.b32.xlu0 %v999, 16
    %v1053 = vpop.permute.xlu0 %1052
    %1054 = vrot.lane.b32.xlu0 %v1000, 16
    %v1055 = vpop.permute.xlu0 %1054
    %v1056 = vsel %vm134, %v1053, %v1055
    %v1057 = vsel %vm134, %v1055, %v1053
    %v1058 = vmul.f32 %v1057, %v141
    %v1059 = vmul.f32 %v1056, %v145
    %1060 = vset.pattern.permute.xlu0 4
    %1061 = vperm.xlu0 %1060, %v1002
    %v1062 = vpop.permute.xlu0 %1061
    %v1064 = vmul.f32 %v1062, %v1058
    %v1065 = vmul.f32 %v1062, %v1059
    %v1066 = vadd.f32 %v1050, %v1064
    %v1067 = vadd.f32 %v1051, %v1065
    %v1068 = vrot.slane %v1058, 2
    %v1069 = vrot.slane %v1059, 2
    %1070 = vset.pattern.permute.xlu0 5
    %1071 = vperm.xlu0 %1070, %v1002
    %v1072 = vpop.permute.xlu0 %1071
    %v1074 = vmul.f32 %v1072, %v1068
    %v1075 = vmul.f32 %v1072, %v1069
    %v1076 = vadd.f32 %v1066, %v1074
    %v1077 = vadd.f32 %v1067, %v1075
    %v1078 = vrot.slane %v1058, 4
    %v1079 = vrot.slane %v1059, 4
    %1080 = vset.pattern.permute.xlu0 6
    %1081 = vperm.xlu0 %1080, %v1002
    %v1082 = vpop.permute.xlu0 %1081
    %v1084 = vmul.f32 %v1082, %v1078
    %v1085 = vmul.f32 %v1082, %v1079
    %v1086 = vadd.f32 %v1076, %v1084
    %v1087 = vadd.f32 %v1077, %v1085
    %v1088 = vrot.slane %v1058, 6
    %v1089 = vrot.slane %v1059, 6
    %1090 = vset.pattern.permute.xlu0 7
    %1091 = vperm.xlu0 %1090, %v1002
    %v1092 = vpop.permute.xlu0 %1091
    %v1094 = vmul.f32 %v1092, %v1088
    %v1095 = vmul.f32 %v1092, %v1089
    %v1096 = vadd.f32 %v1086, %v1094
    %v1097 = vadd.f32 %v1087, %v1095
    %1098 = vrot.lane.b32.xlu0 %v999, 15
    %v1099 = vpop.permute.xlu0 %1098
    %1100 = vrot.lane.b32.xlu0 %v1000, 15
    %v1101 = vpop.permute.xlu0 %1100
    %v1102 = vsel %vm192, %v1099, %v1101
    %v1103 = vsel %vm192, %v1101, %v1099
    %v1104 = vmul.f32 %v1103, %v199
    %v1105 = vmul.f32 %v1102, %v203
    %1106 = vset.pattern.permute.xlu0 8
    %1107 = vperm.xlu0 %1106, %v1002
    %v1108 = vpop.permute.xlu0 %1107
    %v1110 = vmul.f32 %v1108, %v1104
    %v1111 = vmul.f32 %v1108, %v1105
    %v1112 = vadd.f32 %v1096, %v1110
    %v1113 = vadd.f32 %v1097, %v1111
    %v1114 = vrot.slane %v1104, 2
    %v1115 = vrot.slane %v1105, 2
    %1116 = vset.pattern.permute.xlu0 9
    %1117 = vperm.xlu0 %1116, %v1002
    %v1118 = vpop.permute.xlu0 %1117
    %v1120 = vmul.f32 %v1118, %v1114
    %v1121 = vmul.f32 %v1118, %v1115
    %v1122 = vadd.f32 %v1112, %v1120
    %v1123 = vadd.f32 %v1113, %v1121
    %v1124 = vrot.slane %v1104, 4
    %v1125 = vrot.slane %v1105, 4
    %1126 = vset.pattern.permute.xlu0 10
    %1127 = vperm.xlu0 %1126, %v1002
    %v1128 = vpop.permute.xlu0 %1127
    %v1130 = vmul.f32 %v1128, %v1124
    %v1131 = vmul.f32 %v1128, %v1125
    %v1132 = vadd.f32 %v1122, %v1130
    %v1133 = vadd.f32 %v1123, %v1131
    %v1134 = vrot.slane %v1104, 6
    %v1135 = vrot.slane %v1105, 6
    %1136 = vset.pattern.permute.xlu0 11
    %1137 = vperm.xlu0 %1136, %v1002
    %v1138 = vpop.permute.xlu0 %1137
    %v1140 = vmul.f32 %v1138, %v1134
    %v1141 = vmul.f32 %v1138, %v1135
    %v1142 = vadd.f32 %v1132, %v1140
    %v1143 = vadd.f32 %v1133, %v1141
    %1144 = vrot.lane.b32.xlu0 %v999, 1
    %v1145 = vpop.permute.xlu0 %1144
    %1146 = vrot.lane.b32.xlu0 %v1000, 1
    %v1147 = vpop.permute.xlu0 %1146
    %v1148 = vsel %vm250, %v1145, %v1147
    %v1149 = vsel %vm250, %v1147, %v1145
    %v1150 = vmul.f32 %v1149, %v257
    %v1151 = vmul.f32 %v1148, %v261
    %1152 = vset.pattern.permute.xlu0 12
    %1153 = vperm.xlu0 %1152, %v1002
    %v1154 = vpop.permute.xlu0 %1153
    %v1156 = vmul.f32 %v1154, %v1150
    %v1157 = vmul.f32 %v1154, %v1151
    %v1158 = vadd.f32 %v1142, %v1156
    %v1159 = vadd.f32 %v1143, %v1157
    %v1160 = vrot.slane %v1150, 2
    %v1161 = vrot.slane %v1151, 2
    %1162 = vset.pattern.permute.xlu0 13
    %1163 = vperm.xlu0 %1162, %v1002
    %v1164 = vpop.permute.xlu0 %1163
    %v1166 = vmul.f32 %v1164, %v1160
    %v1167 = vmul.f32 %v1164, %v1161
    %v1168 = vadd.f32 %v1158, %v1166
    %v1169 = vadd.f32 %v1159, %v1167
    %v1170 = vrot.slane %v1150, 4
    %v1171 = vrot.slane %v1151, 4
    %1172 = vset.pattern.permute.xlu0 14
    %1173 = vperm.xlu0 %1172, %v1002
    %v1174 = vpop.permute.xlu0 %1173
    %v1176 = vmul.f32 %v1174, %v1170
    %v1177 = vmul.f32 %v1174, %v1171
    %v1178 = vadd.f32 %v1168, %v1176
    %v1179 = vadd.f32 %v1169, %v1177
    %v1180 = vrot.slane %v1150, 6
    %v1181 = vrot.slane %v1151, 6
    %1182 = vset.pattern.permute.xlu0 15
    %1183 = vperm.xlu0 %1182, %v1002
    %v1184 = vpop.permute.xlu0 %1183
    %v1186 = vmul.f32 %v1184, %v1180
    %v1187 = vmul.f32 %v1184, %v1181
    %v1188 = vadd.f32 %v1178, %v1186
    %v1189 = vadd.f32 %v1179, %v1187
    %1190 = vset.pattern.permute.xlu0 16
    %1191 = vperm.xlu0 %1190, %v1002
    %v1192 = vpop.permute.xlu0 %1191
    %v1194 = vmul.f32 %v1192, %v999
    %v1195 = vmul.f32 %v1192, %v1000
    %v1196 = vadd.f32 %v1188, %v1194
    %v1197 = vadd.f32 %v1189, %v1195
    %v1198 = vrot.slane %v999, 2
    %v1199 = vrot.slane %v1000, 2
    %1200 = vset.pattern.permute.xlu0 17
    %1201 = vperm.xlu0 %1200, %v1002
    %v1202 = vpop.permute.xlu0 %1201
    %v1204 = vmul.f32 %v1202, %v1198
    %v1205 = vmul.f32 %v1202, %v1199
    %v1206 = vadd.f32 %v1196, %v1204
    %v1207 = vadd.f32 %v1197, %v1205
    %v1208 = vrot.slane %v999, 4
    %v1209 = vrot.slane %v1000, 4
    %1210 = vset.pattern.permute.xlu0 18
    %1211 = vperm.xlu0 %1210, %v1002
    %v1212 = vpop.permute.xlu0 %1211
    %v1214 = vmul.f32 %v1212, %v1208
    %v1215 = vmul.f32 %v1212, %v1209
    %v1216 = vadd.f32 %v1206, %v1214
    %v1217 = vadd.f32 %v1207, %v1215
    %v1218 = vrot.slane %v999, 6
    %v1219 = vrot.slane %v1000, 6
    %1220 = vset.pattern.permute.xlu0 19
    %1221 = vperm.xlu0 %1220, %v1002
    %v1222 = vpop.permute.xlu0 %1221
    %v1224 = vmul.f32 %v1222, %v1218
    %v1225 = vmul.f32 %v1222, %v1219
    %v1226 = vadd.f32 %v1216, %v1224
    %v1227 = vadd.f32 %v1217, %v1225
    %1228 = vrot.lane.b32.xlu0 %v999, 127
    %v1229 = vpop.permute.xlu0 %1228
    %1230 = vrot.lane.b32.xlu0 %v1000, 127
    %v1231 = vpop.permute.xlu0 %1230
    %v1232 = vsel %vm346, %v1229, %v1231
    %v1233 = vsel %vm346, %v1231, %v1229
    %v1234 = vmul.f32 %v1232, %v353
    %v1235 = vmul.f32 %v1233, %v357
    %1236 = vset.pattern.permute.xlu0 20
    %1237 = vperm.xlu0 %1236, %v1002
    %v1238 = vpop.permute.xlu0 %1237
    %v1240 = vmul.f32 %v1238, %v1234
    %v1241 = vmul.f32 %v1238, %v1235
    %v1242 = vadd.f32 %v1226, %v1240
    %v1243 = vadd.f32 %v1227, %v1241
    %v1244 = vrot.slane %v1234, 2
    %v1245 = vrot.slane %v1235, 2
    %1246 = vset.pattern.permute.xlu0 21
    %1247 = vperm.xlu0 %1246, %v1002
    %v1248 = vpop.permute.xlu0 %1247
    %v1250 = vmul.f32 %v1248, %v1244
    %v1251 = vmul.f32 %v1248, %v1245
    %v1252 = vadd.f32 %v1242, %v1250
    %v1253 = vadd.f32 %v1243, %v1251
    %v1254 = vrot.slane %v1234, 4
    %v1255 = vrot.slane %v1235, 4
    %1256 = vset.pattern.permute.xlu0 22
    %1257 = vperm.xlu0 %1256, %v1002
    %v1258 = vpop.permute.xlu0 %1257
    %v1260 = vmul.f32 %v1258, %v1254
    %v1261 = vmul.f32 %v1258, %v1255
    %v1262 = vadd.f32 %v1252, %v1260
    %v1263 = vadd.f32 %v1253, %v1261
    %v1264 = vrot.slane %v1234, 6
    %v1265 = vrot.slane %v1235, 6
    %1266 = vset.pattern.permute.xlu0 23
    %1267 = vperm.xlu0 %1266, %v1002
    %v1268 = vpop.permute.xlu0 %1267
    %v1270 = vmul.f32 %v1268, %v1264
    %v1271 = vmul.f32 %v1268, %v1265
    %v1272 = vadd.f32 %v1262, %v1270
    %v1273 = vadd.f32 %v1263, %v1271
    %1274 = vrot.lane.b32.xlu0 %v999, 113
    %v1275 = vpop.permute.xlu0 %1274
    %1276 = vrot.lane.b32.xlu0 %v1000, 113
    %v1277 = vpop.permute.xlu0 %1276
    %v1278 = vsel %vm404, %v1275, %v1277
    %v1279 = vsel %vm404, %v1277, %v1275
    %v1280 = vmul.f32 %v1278, %v411
    %v1281 = vmul.f32 %v1279, %v415
    %1282 = vset.pattern.permute.xlu0 24
    %1283 = vperm.xlu0 %1282, %v1002
    %v1284 = vpop.permute.xlu0 %1283
    %v1286 = vmul.f32 %v1284, %v1280
    %v1287 = vmul.f32 %v1284, %v1281
    %v1288 = vadd.f32 %v1272, %v1286
    %v1289 = vadd.f32 %v1273, %v1287
    %v1290 = vrot.slane %v1280, 2
    %v1291 = vrot.slane %v1281, 2
    %1292 = vset.pattern.permute.xlu0 25
    %1293 = vperm.xlu0 %1292, %v1002
    %v1294 = vpop.permute.xlu0 %1293
    %v1296 = vmul.f32 %v1294, %v1290
    %v1297 = vmul.f32 %v1294, %v1291
    %v1298 = vadd.f32 %v1288, %v1296
    %v1299 = vadd.f32 %v1289, %v1297
    %v1300 = vrot.slane %v1280, 4
    %v1301 = vrot.slane %v1281, 4
    %1302 = vset.pattern.permute.xlu0 26
    %1303 = vperm.xlu0 %1302, %v1002
    %v1304 = vpop.permute.xlu0 %1303
    %v1306 = vmul.f32 %v1304, %v1300
    %v1307 = vmul.f32 %v1304, %v1301
    %v1308 = vadd.f32 %v1298, %v1306
    %v1309 = vadd.f32 %v1299, %v1307
    %v1310 = vrot.slane %v1280, 6
    %v1311 = vrot.slane %v1281, 6
    %1312 = vset.pattern.permute.xlu0 27
    %1313 = vperm.xlu0 %1312, %v1002
    %v1314 = vpop.permute.xlu0 %1313
    %v1316 = vmul.f32 %v1314, %v1310
    %v1317 = vmul.f32 %v1314, %v1311
    %v1318 = vadd.f32 %v1308, %v1316
    %v1319 = vadd.f32 %v1309, %v1317
    %1320 = vrot.lane.b32.xlu0 %v999, 112
    %v1321 = vpop.permute.xlu0 %1320
    %1322 = vrot.lane.b32.xlu0 %v1000, 112
    %v1323 = vpop.permute.xlu0 %1322
    %v1324 = vsel %vm462, %v1321, %v1323
    %v1325 = vsel %vm462, %v1323, %v1321
    %v1326 = vmul.f32 %v1324, %v469
    %v1327 = vmul.f32 %v1325, %v473
    %1328 = vset.pattern.permute.xlu0 28
    %1329 = vperm.xlu0 %1328, %v1002
    %v1330 = vpop.permute.xlu0 %1329
    %v1332 = vmul.f32 %v1330, %v1326
    %v1333 = vmul.f32 %v1330, %v1327
    %v1334 = vadd.f32 %v1318, %v1332
    %v1335 = vadd.f32 %v1319, %v1333
    %v1336 = vrot.slane %v1326, 2
    %v1337 = vrot.slane %v1327, 2
    %1338 = vset.pattern.permute.xlu0 29
    %1339 = vperm.xlu0 %1338, %v1002
    %v1340 = vpop.permute.xlu0 %1339
    %v1342 = vmul.f32 %v1340, %v1336
    %v1343 = vmul.f32 %v1340, %v1337
    %v1344 = vadd.f32 %v1334, %v1342
    %v1345 = vadd.f32 %v1335, %v1343
    %v1346 = vrot.slane %v1326, 4
    %v1347 = vrot.slane %v1327, 4
    %1348 = vset.pattern.permute.xlu0 30
    %1349 = vperm.xlu0 %1348, %v1002
    %v1350 = vpop.permute.xlu0 %1349
    %v1352 = vmul.f32 %v1350, %v1346
    %v1353 = vmul.f32 %v1350, %v1347
    %v1354 = vadd.f32 %v1344, %v1352
    %v1355 = vadd.f32 %v1345, %v1353
    %v1356 = vrot.slane %v1326, 6
    %v1357 = vrot.slane %v1327, 6
    %1358 = vset.pattern.permute.xlu0 31
    %1359 = vperm.xlu0 %1358, %v1002
    %v1360 = vpop.permute.xlu0 %1359
    %v1362 = vmul.f32 %v1360, %v1356
    %v1363 = vmul.f32 %v1360, %v1357
    %v1364 = vadd.f32 %v1354, %v1362
    %v1365 = vadd.f32 %v1355, %v1363
    %1366 = vrot.lane.b32.xlu0 %v999, 111
    %v1367 = vpop.permute.xlu0 %1366
    %1368 = vrot.lane.b32.xlu0 %v1000, 111
    %v1369 = vpop.permute.xlu0 %1368
    %v1370 = vsel %vm520, %v1367, %v1369
    %v1371 = vsel %vm520, %v1369, %v1367
    %v1372 = vmul.f32 %v1370, %v527
    %v1373 = vmul.f32 %v1371, %v531
    %1374 = vset.pattern.permute.xlu0 32
    %1375 = vperm.xlu0 %1374, %v1002
    %v1376 = vpop.permute.xlu0 %1375
    %v1378 = vmul.f32 %v1376, %v1372
    %v1379 = vmul.f32 %v1376, %v1373
    %v1380 = vadd.f32 %v1364, %v1378
    %v1381 = vadd.f32 %v1365, %v1379
    %v1382 = vrot.slane %v1372, 2
    %v1383 = vrot.slane %v1373, 2
    %1384 = vset.pattern.permute.xlu0 33
    %1385 = vperm.xlu0 %1384, %v1002
    %v1386 = vpop.permute.xlu0 %1385
    %v1388 = vmul.f32 %v1386, %v1382
    %v1389 = vmul.f32 %v1386, %v1383
    %v1390 = vadd.f32 %v1380, %v1388
    %v1391 = vadd.f32 %v1381, %v1389
    %v1392 = vrot.slane %v1372, 4
    %v1393 = vrot.slane %v1373, 4
    %1394 = vset.pattern.permute.xlu0 34
    %1395 = vperm.xlu0 %1394, %v1002
    %v1396 = vpop.permute.xlu0 %1395
    %v1398 = vmul.f32 %v1396, %v1392
    %v1399 = vmul.f32 %v1396, %v1393
    %v1400 = vadd.f32 %v1390, %v1398
    %v1401 = vadd.f32 %v1391, %v1399
    %v1402 = vrot.slane %v1372, 6
    %v1403 = vrot.slane %v1373, 6
    %1404 = vset.pattern.permute.xlu0 35
    %1405 = vperm.xlu0 %1404, %v1002
    %v1406 = vpop.permute.xlu0 %1405
    %v1408 = vmul.f32 %v1406, %v1402
    %v1409 = vmul.f32 %v1406, %v1403
    %v1410 = vadd.f32 %v1400, %v1408
    %v1411 = vadd.f32 %v1401, %v1409
    %1413 = vset.pattern.permute.xlu0 0
    %1414 = vperm.xlu0 %1413, %v1004
    %v1415 = vpop.permute.xlu0 %1414
    %v1417 = vadd.f32 %v1410, %v1415
    %v1418 = vadd.f32 %v1411, %v1415
    %v1419 = vmax.f32 %v1417, 0.0
    %v1420 = vmax.f32 %v1418, 0.0
    %s1421 = scalar_lea.vmem %s4, 8
    %v1422 = vld [vmem:[%s1421] sm:$0xff]
    %s1423 = scalar_lea.vmem %s5, 8
    %v1424 = vld [vmem:[%s1423] sm:$0xff]
    %1425 = vrot.lane.b32.xlu0 %v1419, 17
    %v1426 = vpop.permute.xlu0 %1425
    %1427 = vrot.lane.b32.xlu0 %v1420, 17
    %v1428 = vpop.permute.xlu0 %1427
    %v1429 = vsel %vm75, %v1426, %v1428
    %v1430 = vsel %vm75, %v1428, %v1426
    %v1431 = vmul.f32 %v1430, %v82
    %v1432 = vmul.f32 %v1429, %v86
    %1434 = vset.pattern.permute.xlu0 0
    %1435 = vperm.xlu0 %1434, %v1422
    %v1436 = vpop.permute.xlu0 %1435
    %v1438 = vmul.f32 %v1436, %v1431
    %v1439 = vmul.f32 %v1436, %v1432
    %v1440 = vadd.f32 %v1438, 0.0
    %v1441 = vadd.f32 %v1439, 0.0
    %v1442 = vrot.slane %v1431, 2
    %v1443 = vrot.slane %v1432, 2
    %1444 = vset.pattern.permute.xlu0 1
    %1445 = vperm.xlu0 %1444, %v1422
    %v1446 = vpop.permute.xlu0 %1445
    %v1448 = vmul.f32 %v1446, %v1442
    %v1449 = vmul.f32 %v1446, %v1443
    %v1450 = vadd.f32 %v1440, %v1448
    %v1451 = vadd.f32 %v1441, %v1449
    %v1452 = vrot.slane %v1431, 4
    %v1453 = vrot.slane %v1432, 4
    %1454 = vset.pattern.permute.xlu0 2
    %1455 = vperm.xlu0 %1454, %v1422
    %v1456 = vpop.permute.xlu0 %1455
    %v1458 = vmul.f32 %v1456, %v1452
    %v1459 = vmul.f32 %v1456, %v1453
    %v1460 = vadd.f32 %v1450, %v1458
    %v1461 = vadd.f32 %v1451, %v1459
    %v1462 = vrot.slane %v1431, 6
    %v1463 = vrot.slane %v1432, 6
    %1464 = vset.pattern.permute.xlu0 3
    %1465 = vperm.xlu0 %1464, %v1422
    %v1466 = vpop.permute.xlu0 %1465
    %v1468 = vmul.f32 %v1466, %v1462
    %v1469 = vmul.f32 %v1466, %v1463
    %v1470 = vadd.f32 %v1460, %v1468
    %v1471 = vadd.f32 %v1461, %v1469
    %1472 = vrot.lane.b32.xlu0 %v1419, 16
    %v1473 = vpop.permute.xlu0 %1472
    %1474 = vrot.lane.b32.xlu0 %v1420, 16
    %v1475 = vpop.permute.xlu0 %1474
    %v1476 = vsel %vm134, %v1473, %v1475
    %v1477 = vsel %vm134, %v1475, %v1473
    %v1478 = vmul.f32 %v1477, %v141
    %v1479 = vmul.f32 %v1476, %v145
    %1480 = vset.pattern.permute.xlu0 4
    %1481 = vperm.xlu0 %1480, %v1422
    %v1482 = vpop.permute.xlu0 %1481
    %v1484 = vmul.f32 %v1482, %v1478
    %v1485 = vmul.f32 %v1482, %v1479
    %v1486 = vadd.f32 %v1470, %v1484
    %v1487 = vadd.f32 %v1471, %v1485
    %v1488 = vrot.slane %v1478, 2
    %v1489 = vrot.slane %v1479, 2
    %1490 = vset.pattern.permute.xlu0 5
    %1491 = vperm.xlu0 %1490, %v1422
    %v1492 = vpop.permute.xlu0 %1491
    %v1494 = vmul.f32 %v1492, %v1488
    %v1495 = vmul.f32 %v1492, %v1489
    %v1496 = vadd.f32 %v1486, %v1494
    %v1497 = vadd.f32 %v1487, %v1495
    %v1498 = vrot.slane %v1478, 4
    %v1499 = vrot.slane %v1479, 4
    %1500 = vset.pattern.permute.xlu0 6
    %1501 = vperm.xlu0 %1500, %v1422
    %v1502 = vpop.permute.xlu0 %1501
    %v1504 = vmul.f32 %v1502, %v1498
    %v1505 = vmul.f32 %v1502, %v1499
    %v1506 = vadd.f32 %v1496, %v1504
    %v1507 = vadd.f32 %v1497, %v1505
    %v1508 = vrot.slane %v1478, 6
    %v1509 = vrot.slane %v1479, 6
    %1510 = vset.pattern.permute.xlu0 7
    %1511 = vperm.xlu0 %1510, %v1422
    %v1512 = vpop.permute.xlu0 %1511
    %v1514 = vmul.f32 %v1512, %v1508
    %v1515 = vmul.f32 %v1512, %v1509
    %v1516 = vadd.f32 %v1506, %v1514
    %v1517 = vadd.f32 %v1507, %v1515
    %1518 = vrot.lane.b32.xlu0 %v1419, 15
    %v1519 = vpop.permute.xlu0 %1518
    %1520 = vrot.lane.b32.xlu0 %v1420, 15
    %v1521 = vpop.permute.xlu0 %1520
    %v1522 = vsel %vm192, %v1519, %v1521
    %v1523 = vsel %vm192, %v1521, %v1519
    %v1524 = vmul.f32 %v1523, %v199
    %v1525 = vmul.f32 %v1522, %v203
    %1526 = vset.pattern.permute.xlu0 8
    %1527 = vperm.xlu0 %1526, %v1422
    %v1528 = vpop.permute.xlu0 %1527
    %v1530 = vmul.f32 %v1528, %v1524
    %v1531 = vmul.f32 %v1528, %v1525
    %v1532 = vadd.f32 %v1516, %v1530
    %v1533 = vadd.f32 %v1517, %v1531
    %v1534 = vrot.slane %v1524, 2
    %v1535 = vrot.slane %v1525, 2
    %1536 = vset.pattern.permute.xlu0 9
    %1537 = vperm.xlu0 %1536, %v1422
    %v1538 = vpop.permute.xlu0 %1537
    %v1540 = vmul.f32 %v1538, %v1534
    %v1541 = vmul.f32 %v1538, %v1535
    %v1542 = vadd.f32 %v1532, %v1540
    %v1543 = vadd.f32 %v1533, %v1541
    %v1544 = vrot.slane %v1524, 4
    %v1545 = vrot.slane %v1525, 4
    %1546 = vset.pattern.permute.xlu0 10
    %1547 = vperm.xlu0 %1546, %v1422
    %v1548 = vpop.permute.xlu0 %1547
    %v1550 = vmul.f32 %v1548, %v1544
    %v1551 = vmul.f32 %v1548, %v1545
    %v1552 = vadd.f32 %v1542, %v1550
    %v1553 = vadd.f32 %v1543, %v1551
    %v1554 = vrot.slane %v1524, 6
    %v1555 = vrot.slane %v1525, 6
    %1556 = vset.pattern.permute.xlu0 11
    %1557 = vperm.xlu0 %1556, %v1422
    %v1558 = vpop.permute.xlu0 %1557
    %v1560 = vmul.f32 %v1558, %v1554
    %v1561 = vmul.f32 %v1558, %v1555
    %v1562 = vadd.f32 %v1552, %v1560
    %v1563 = vadd.f32 %v1553, %v1561
    %1564 = vrot.lane.b32.xlu0 %v1419, 1
    %v1565 = vpop.permute.xlu0 %1564
    %1566 = vrot.lane.b32.xlu0 %v1420, 1
    %v1567 = vpop.permute.xlu0 %1566
    %v1568 = vsel %vm250, %v1565, %v1567
    %v1569 = vsel %vm250, %v1567, %v1565
    %v1570 = vmul.f32 %v1569, %v257
    %v1571 = vmul.f32 %v1568, %v261
    %1572 = vset.pattern.permute.xlu0 12
    %1573 = vperm.xlu0 %1572, %v1422
    %v1574 = vpop.permute.xlu0 %1573
    %v1576 = vmul.f32 %v1574, %v1570
    %v1577 = vmul.f32 %v1574, %v1571
    %v1578 = vadd.f32 %v1562, %v1576
    %v1579 = vadd.f32 %v1563, %v1577
    %v1580 = vrot.slane %v1570, 2
    %v1581 = vrot.slane %v1571, 2
    %1582 = vset.pattern.permute.xlu0 13
    %1583 = vperm.xlu0 %1582, %v1422
    %v1584 = vpop.permute.xlu0 %1583
    %v1586 = vmul.f32 %v1584, %v1580
    %v1587 = vmul.f32 %v1584, %v1581
    %v1588 = vadd.f32 %v1578, %v1586
    %v1589 = vadd.f32 %v1579, %v1587
    %v1590 = vrot.slane %v1570, 4
    %v1591 = vrot.slane %v1571, 4
    %1592 = vset.pattern.permute.xlu0 14
    %1593 = vperm.xlu0 %1592, %v1422
    %v1594 = vpop.permute.xlu0 %1593
    %v1596 = vmul.f32 %v1594, %v1590
    %v1597 = vmul.f32 %v1594, %v1591
    %v1598 = vadd.f32 %v1588, %v1596
    %v1599 = vadd.f32 %v1589, %v1597
    %v1600 = vrot.slane %v1570, 6
    %v1601 = vrot.slane %v1571, 6
    %1602 = vset.pattern.permute.xlu0 15
    %1603 = vperm.xlu0 %1602, %v1422
    %v1604 = vpop.permute.xlu0 %1603
    %v1606 = vmul.f32 %v1604, %v1600
    %v1607 = vmul.f32 %v1604, %v1601
    %v1608 = vadd.f32 %v1598, %v1606
    %v1609 = vadd.f32 %v1599, %v1607
    %1610 = vset.pattern.permute.xlu0 16
    %1611 = vperm.xlu0 %1610, %v1422
    %v1612 = vpop.permute.xlu0 %1611
    %v1614 = vmul.f32 %v1612, %v1419
    %v1615 = vmul.f32 %v1612, %v1420
    %v1616 = vadd.f32 %v1608, %v1614
    %v1617 = vadd.f32 %v1609, %v1615
    %v1618 = vrot.slane %v1419, 2
    %v1619 = vrot.slane %v1420, 2
    %1620 = vset.pattern.permute.xlu0 17
    %1621 = vperm.xlu0 %1620, %v1422
    %v1622 = vpop.permute.xlu0 %1621
    %v1624 = vmul.f32 %v1622, %v1618
    %v1625 = vmul.f32 %v1622, %v1619
    %v1626 = vadd.f32 %v1616, %v1624
    %v1627 = vadd.f32 %v1617, %v1625
    %v1628 = vrot.slane %v1419, 4
    %v1629 = vrot.slane %v1420, 4
    %1630 = vset.pattern.permute.xlu0 18
    %1631 = vperm.xlu0 %1630, %v1422
    %v1632 = vpop.permute.xlu0 %1631
    %v1634 = vmul.f32 %v1632, %v1628
    %v1635 = vmul.f32 %v1632, %v1629
    %v1636 = vadd.f32 %v1626, %v1634
    %v1637 = vadd.f32 %v1627, %v1635
    %v1638 = vrot.slane %v1419, 6
    %v1639 = vrot.slane %v1420, 6
    %1640 = vset.pattern.permute.xlu0 19
    %1641 = vperm.xlu0 %1640, %v1422
    %v1642 = vpop.permute.xlu0 %1641
    %v1644 = vmul.f32 %v1642, %v1638
    %v1645 = vmul.f32 %v1642, %v1639
    %v1646 = vadd.f32 %v1636, %v1644
    %v1647 = vadd.f32 %v1637, %v1645
    %1648 = vrot.lane.b32.xlu0 %v1419, 127
    %v1649 = vpop.permute.xlu0 %1648
    %1650 = vrot.lane.b32.xlu0 %v1420, 127
    %v1651 = vpop.permute.xlu0 %1650
    %v1652 = vsel %vm346, %v1649, %v1651
    %v1653 = vsel %vm346, %v1651, %v1649
    %v1654 = vmul.f32 %v1652, %v353
    %v1655 = vmul.f32 %v1653, %v357
    %1656 = vset.pattern.permute.xlu0 20
    %1657 = vperm.xlu0 %1656, %v1422
    %v1658 = vpop.permute.xlu0 %1657
    %v1660 = vmul.f32 %v1658, %v1654
    %v1661 = vmul.f32 %v1658, %v1655
    %v1662 = vadd.f32 %v1646, %v1660
    %v1663 = vadd.f32 %v1647, %v1661
    %v1664 = vrot.slane %v1654, 2
    %v1665 = vrot.slane %v1655, 2
    %1666 = vset.pattern.permute.xlu0 21
    %1667 = vperm.xlu0 %1666, %v1422
    %v1668 = vpop.permute.xlu0 %1667
    %v1670 = vmul.f32 %v1668, %v1664
    %v1671 = vmul.f32 %v1668, %v1665
    %v1672 = vadd.f32 %v1662, %v1670
    %v1673 = vadd.f32 %v1663, %v1671
    %v1674 = vrot.slane %v1654, 4
    %v1675 = vrot.slane %v1655, 4
    %1676 = vset.pattern.permute.xlu0 22
    %1677 = vperm.xlu0 %1676, %v1422
    %v1678 = vpop.permute.xlu0 %1677
    %v1680 = vmul.f32 %v1678, %v1674
    %v1681 = vmul.f32 %v1678, %v1675
    %v1682 = vadd.f32 %v1672, %v1680
    %v1683 = vadd.f32 %v1673, %v1681
    %v1684 = vrot.slane %v1654, 6
    %v1685 = vrot.slane %v1655, 6
    %1686 = vset.pattern.permute.xlu0 23
    %1687 = vperm.xlu0 %1686, %v1422
    %v1688 = vpop.permute.xlu0 %1687
    %v1690 = vmul.f32 %v1688, %v1684
    %v1691 = vmul.f32 %v1688, %v1685
    %v1692 = vadd.f32 %v1682, %v1690
    %v1693 = vadd.f32 %v1683, %v1691
    %1694 = vrot.lane.b32.xlu0 %v1419, 113
    %v1695 = vpop.permute.xlu0 %1694
    %1696 = vrot.lane.b32.xlu0 %v1420, 113
    %v1697 = vpop.permute.xlu0 %1696
    %v1698 = vsel %vm404, %v1695, %v1697
    %v1699 = vsel %vm404, %v1697, %v1695
    %v1700 = vmul.f32 %v1698, %v411
    %v1701 = vmul.f32 %v1699, %v415
    %1702 = vset.pattern.permute.xlu0 24
    %1703 = vperm.xlu0 %1702, %v1422
    %v1704 = vpop.permute.xlu0 %1703
    %v1706 = vmul.f32 %v1704, %v1700
    %v1707 = vmul.f32 %v1704, %v1701
    %v1708 = vadd.f32 %v1692, %v1706
    %v1709 = vadd.f32 %v1693, %v1707
    %v1710 = vrot.slane %v1700, 2
    %v1711 = vrot.slane %v1701, 2
    %1712 = vset.pattern.permute.xlu0 25
    %1713 = vperm.xlu0 %1712, %v1422
    %v1714 = vpop.permute.xlu0 %1713
    %v1716 = vmul.f32 %v1714, %v1710
    %v1717 = vmul.f32 %v1714, %v1711
    %v1718 = vadd.f32 %v1708, %v1716
    %v1719 = vadd.f32 %v1709, %v1717
    %v1720 = vrot.slane %v1700, 4
    %v1721 = vrot.slane %v1701, 4
    %1722 = vset.pattern.permute.xlu0 26
    %1723 = vperm.xlu0 %1722, %v1422
    %v1724 = vpop.permute.xlu0 %1723
    %v1726 = vmul.f32 %v1724, %v1720
    %v1727 = vmul.f32 %v1724, %v1721
    %v1728 = vadd.f32 %v1718, %v1726
    %v1729 = vadd.f32 %v1719, %v1727
    %v1730 = vrot.slane %v1700, 6
    %v1731 = vrot.slane %v1701, 6
    %1732 = vset.pattern.permute.xlu0 27
    %1733 = vperm.xlu0 %1732, %v1422
    %v1734 = vpop.permute.xlu0 %1733
    %v1736 = vmul.f32 %v1734, %v1730
    %v1737 = vmul.f32 %v1734, %v1731
    %v1738 = vadd.f32 %v1728, %v1736
    %v1739 = vadd.f32 %v1729, %v1737
    %1740 = vrot.lane.b32.xlu0 %v1419, 112
    %v1741 = vpop.permute.xlu0 %1740
    %1742 = vrot.lane.b32.xlu0 %v1420, 112
    %v1743 = vpop.permute.xlu0 %1742
    %v1744 = vsel %vm462, %v1741, %v1743
    %v1745 = vsel %vm462, %v1743, %v1741
    %v1746 = vmul.f32 %v1744, %v469
    %v1747 = vmul.f32 %v1745, %v473
    %1748 = vset.pattern.permute.xlu0 28
    %1749 = vperm.xlu0 %1748, %v1422
    %v1750 = vpop.permute.xlu0 %1749
    %v1752 = vmul.f32 %v1750, %v1746
    %v1753 = vmul.f32 %v1750, %v1747
    %v1754 = vadd.f32 %v1738, %v1752
    %v1755 = vadd.f32 %v1739, %v1753
    %v1756 = vrot.slane %v1746, 2
    %v1757 = vrot.slane %v1747, 2
    %1758 = vset.pattern.permute.xlu0 29
    %1759 = vperm.xlu0 %1758, %v1422
    %v1760 = vpop.permute.xlu0 %1759
    %v1762 = vmul.f32 %v1760, %v1756
    %v1763 = vmul.f32 %v1760, %v1757
    %v1764 = vadd.f32 %v1754, %v1762
    %v1765 = vadd.f32 %v1755, %v1763
    %v1766 = vrot.slane %v1746, 4
    %v1767 = vrot.slane %v1747, 4
    %1768 = vset.pattern.permute.xlu0 30
    %1769 = vperm.xlu0 %1768, %v1422
    %v1770 = vpop.permute.xlu0 %1769
    %v1772 = vmul.f32 %v1770, %v1766
    %v1773 = vmul.f32 %v1770, %v1767
    %v1774 = vadd.f32 %v1764, %v1772
    %v1775 = vadd.f32 %v1765, %v1773
    %v1776 = vrot.slane %v1746, 6
    %v1777 = vrot.slane %v1747, 6
    %1778 = vset.pattern.permute.xlu0 31
    %1779 = vperm.xlu0 %1778, %v1422
    %v1780 = vpop.permute.xlu0 %1779
    %v1782 = vmul.f32 %v1780, %v1776
    %v1783 = vmul.f32 %v1780, %v1777
    %v1784 = vadd.f32 %v1774, %v1782
    %v1785 = vadd.f32 %v1775, %v1783
    %1786 = vrot.lane.b32.xlu0 %v1419, 111
    %v1787 = vpop.permute.xlu0 %1786
    %1788 = vrot.lane.b32.xlu0 %v1420, 111
    %v1789 = vpop.permute.xlu0 %1788
    %v1790 = vsel %vm520, %v1787, %v1789
    %v1791 = vsel %vm520, %v1789, %v1787
    %v1792 = vmul.f32 %v1790, %v527
    %v1793 = vmul.f32 %v1791, %v531
    %1794 = vset.pattern.permute.xlu0 32
    %1795 = vperm.xlu0 %1794, %v1422
    %v1796 = vpop.permute.xlu0 %1795
    %v1798 = vmul.f32 %v1796, %v1792
    %v1799 = vmul.f32 %v1796, %v1793
    %v1800 = vadd.f32 %v1784, %v1798
    %v1801 = vadd.f32 %v1785, %v1799
    %v1802 = vrot.slane %v1792, 2
    %v1803 = vrot.slane %v1793, 2
    %1804 = vset.pattern.permute.xlu0 33
    %1805 = vperm.xlu0 %1804, %v1422
    %v1806 = vpop.permute.xlu0 %1805
    %v1808 = vmul.f32 %v1806, %v1802
    %v1809 = vmul.f32 %v1806, %v1803
    %v1810 = vadd.f32 %v1800, %v1808
    %v1811 = vadd.f32 %v1801, %v1809
    %v1812 = vrot.slane %v1792, 4
    %v1813 = vrot.slane %v1793, 4
    %1814 = vset.pattern.permute.xlu0 34
    %1815 = vperm.xlu0 %1814, %v1422
    %v1816 = vpop.permute.xlu0 %1815
    %v1818 = vmul.f32 %v1816, %v1812
    %v1819 = vmul.f32 %v1816, %v1813
    %v1820 = vadd.f32 %v1810, %v1818
    %v1821 = vadd.f32 %v1811, %v1819
    %v1822 = vrot.slane %v1792, 6
    %v1823 = vrot.slane %v1793, 6
    %1824 = vset.pattern.permute.xlu0 35
    %1825 = vperm.xlu0 %1824, %v1422
    %v1826 = vpop.permute.xlu0 %1825
    %v1828 = vmul.f32 %v1826, %v1822
    %v1829 = vmul.f32 %v1826, %v1823
    %v1830 = vadd.f32 %v1820, %v1828
    %v1831 = vadd.f32 %v1821, %v1829
    %1833 = vset.pattern.permute.xlu0 0
    %1834 = vperm.xlu0 %1833, %v1424
    %v1835 = vpop.permute.xlu0 %1834
    %v1837 = vadd.f32 %v1830, %v1835
    %v1838 = vadd.f32 %v1831, %v1835
    %v1839 = vadd.f32 %v999, %v1837
    %v1840 = vadd.f32 %v1000, %v1838
    %1841 = vst [vmem:[#allocation7] sm:$0xff] %v1839
    %1842 = vst [vmem:[#allocation7 + $0x8] sm:$0xff] %v1840
    // Predicated region
    $region34: #{tpu_custom_call.1} parent=1 // pred_check
      _
    $region35: #{tpu_custom_call.1} parent=1 // pred_check_branch
      %1844 = sbr.rel (0) target = $region37
    $region36: #{tpu_custom_call.1} parent=1 // pred_region
      %s1846 = ssub.s32 256, 256
      %1847 = vsyncadd [#allocation4], %s1846
      %s1849 = sshll.u32 [#allocation7], 4
      %s1850 = int_to_ptr.vmem [resolvable:$true] %s1849
      %1852 = dma.vmem_to_hbm [thread:$0]  %s1850, 256, %s6, [#allocation4]
    $region37: #{tpu_custom_call.1} parent=1 // pred_fallthru
      _
    // Predicated region
    $region38: #{tpu_custom_call.1} parent=1 // pred_check
      _
    $region39: #{tpu_custom_call.1} parent=1 // pred_check_branch
      %1854 = sbr.rel (0) target = $region41
    $region40: #{tpu_custom_call.1} parent=1 // pred_region
      %1855 = dma.done [#allocation4], 256
    $region41: #{tpu_custom_call.1} parent=1 // pred_fallthru
      _
    %1856 = vsyncpa [#allocation3], 1
    %1857 = vsyncpa [#allocation6], 1
    %1858 = vsyncpa [#allocation4], 1

</llo_original>
